<compile_context>
chip_gen: v6e
topology: v6e:2x2x1
jax: 0.10.0
libtpu: 0.0.40
codegen_flags: <defaults>
</compile_context>

<pallas_src>
import jax
import jax.numpy as jnp
from jax.experimental import pallas as pl
from jax.experimental.pallas import tpu as pltpu

BN_EPS = 1e-5

# DARTS-like normal genotype (reduction=False, reduction_prev=False).
GENOTYPE_NORMAL = [
    ('sep_conv_3x3', 0), ('skip_connect', 1),   # step 0
    ('sep_conv_3x3', 0), ('skip_connect', 1),   # step 1
    ('max_pool_3x3', 1), ('skip_connect', 0),   # step 2
    ('avg_pool_3x3', 1), ('sep_conv_3x3', 2),   # step 3
]
NORMAL_CONCAT = [2, 3, 4, 5]
STAGE = [0, 2, 5, 9]          # same mixop indexing as Cell._compile
SEP_MIXOPS = [0, 2, 11]       # mixop ids of the three sep_conv_3x3 branches


# ---------------------------- fused cell kernel -----------------------------

def _cell_kernel(s0_ref, s1_ref, pre0_w_ref, pre1_w_ref, pre_sh_ref,
                 sep_dw_ref, sep_pw_ref, sep_sh_ref, inv_cnt_ref,
                 out_ref, pad_ref):
    """Whole cell for one batch element; everything stays in VMEM/vregs."""
    _, H, W, _ = s0_ref.shape
    C = pre0_w_ref.shape[1]

    def conv1x1(x, w, shift, relu=False):
        # [ReLU ->] 1x1 conv (BN scale pre-folded into w) -> + shift
        cin = x.shape[-1]
        cout = w.shape[-1]
        xm = x.reshape(H * W, cin)
        if relu:
            xm = jnp.maximum(xm, 0.0)
        # TODO(synk): pass precision=jax.lax.Precision.HIGHEST if bit-level
        # parity with f32 PyTorch conv is required.
        y = jnp.dot(xm, w, preferred_element_type=jnp.float32) + shift
        return y.reshape(1, H, W, cout)

    def fill_pad(x, fill):
        # In-kernel padding: fill VMEM scratch, write the interior.
        pad_ref[...] = jnp.full(pad_ref.shape, fill, jnp.float32)
        pad_ref[:, 1:H + 1, 1:W + 1, :] = x

    def dwconv3x3_relu(x, w9):
        # ReLU -> depthwise 3x3, stride 1, pad 1.  ReLU(0)=0, so applying the
        # ReLU before the zero-padded interior write is exact.  w9: (9, C).
        fill_pad(jnp.maximum(x, 0.0), 0.0)
        acc = jnp.zeros((1, H, W, C), jnp.float32)
        for k in range(9):
            ky, kx = k // 3, k % 3
            # NOTE: the kx (sublane) shifted reads could become pltpu.roll +
            # edge mask at larger W; at this size they are negligible.
            acc = acc + pad_ref[:, ky:ky + H, kx:kx + W, :] * \
                w9[k:k + 1, :].reshape(1, 1, 1, C)
        return acc

    def maxpool3x3(x):
        fill_pad(x, -jnp.inf)
        acc = jnp.full((1, H, W, C), -jnp.inf, jnp.float32)
        for k in range(9):
            ky, kx = k // 3, k % 3
            acc = jnp.maximum(acc, pad_ref[:, ky:ky + H, kx:kx + W, :])
        return acc

    def avgpool3x3(x):
        # count_include_pad=False: multiply by precomputed 1/valid_count.
        fill_pad(x, 0.0)
        acc = jnp.zeros((1, H, W, C), jnp.float32)
        for k in range(9):
            ky, kx = k // 3, k % 3
            acc = acc + pad_ref[:, ky:ky + H, kx:kx + W, :]
        return acc * inv_cnt_ref[...]

    dw_all = sep_dw_ref[...]   # (3, 2, 9, C)
    pw_all = sep_pw_ref[...]   # (3, 2, C, C)  (BN scale folded in)
    sh_all = sep_sh_ref[...]   # (3, 2, 1, C)

    def sep_conv(x, op):
        # DARTS SepConv stride 1: (ReLU -> dw3x3 -> pw1x1 -> BN) twice.
        y = dwconv3x3_relu(x, dw_all[op, 0])
        y = conv1x1(y, pw_all[op, 0], sh_all[op, 0])
        y = dwconv3x3_relu(y, dw_all[op, 1])
        y = conv1x1(y, pw_all[op, 1], sh_all[op, 1])
        return y

    pre_sh = pre_sh_ref[...]   # (2, 1, C)

    # preprocess0 / preprocess1 : MetaReLUConvBN
    s0 = conv1x1(s0_ref[...], pre0_w_ref[...], pre_sh[0], relu=True)
    s1 = conv1x1(s1_ref[...], pre1_w_ref[...], pre_sh[1], relu=True)

    # step 0: sep_conv_3x3(s0) + skip(s1)
    s2 = sep_conv(s0, 0) + s1
    # step 1: sep_conv_3x3(s0) + skip(s1)
    s3 = sep_conv(s0, 1) + s1
    # step 2: max_pool_3x3(s1) + skip(s0)
    s4 = maxpool3x3(s1) + s0
    # step 3: avg_pool_3x3(s1) + sep_conv_3x3(s2)
    s5 = avgpool3x3(s1) + sep_conv(s2, 2)

    # Single (1, H, W, 4C) output slab = concat(states[2:6], channel axis).
    out_ref[:, :, :, 0 * C:1 * C] = s2
    out_ref[:, :, :, 1 * C:2 * C] = s3
    out_ref[:, :, :, 2 * C:3 * C] = s4
    out_ref[:, :, :, 3 * C:4 * C] = s5


# ------------------------------ host wrapper --------------------------------

def _avgpool_inv_count(H, W):
    # 1 / (number of valid taps) for 3x3, stride 1, pad 1, no-pad counting.
    r = (3.0 - (jnp.arange(H) == 0).astype(jnp.float32)
             - (jnp.arange(H) == H - 1).astype(jnp.float32))
    c = (3.0 - (jnp.arange(W) == 0).astype(jnp.float32)
             - (jnp.arange(W) == W - 1).astype(jnp.float32))
    return (1.0 / (r[:, None] * c[None, :])).reshape(1, H, W, 1)


def _pack_params(params):
    """Fold BN scales into the 1x1 conv weights and stack per-op params."""
    pre0_w = params['pre0_w'] * params['pre0_scale'][None, :]
    pre1_w = params['pre1_w'] * params['pre1_scale'][None, :]
    pre_sh = jnp.stack([params['pre0_shift'],
                        params['pre1_shift']])[:, None, :]          # (2,1,C)

    dw, pw, sh = [], [], []
    for m in SEP_MIXOPS:
        p = params['mixop_%d' % m]
        dw.append(jnp.stack([p['dw1'], p['dw2']]))                  # (2,9,C)
        pw.append(jnp.stack([p['pw1'] * p['bn1_scale'][None, :],
                             p['pw2'] * p['bn2_scale'][None, :]]))  # (2,C,C)
        sh.append(jnp.stack([p['bn1_shift'],
                             p['bn2_shift']])[:, None, :])          # (2,1,C)
    return (pre0_w, pre1_w, pre_sh,
            jnp.stack(dw), jnp.stack(pw), jnp.stack(sh))


@jax.jit
def cell_forward(s0_nchw, s1_nchw, params):
    N, C_pp, H, W = s0_nchw.shape
    C_p = s1_nchw.shape[1]
    C = params['pre0_w'].shape[1]

    # NCHW (PyTorch) -> NHWC (channels on lanes) for the kernel.
    s0 = jnp.transpose(s0_nchw, (0, 2, 3, 1)).astype(jnp.float32)
    s1 = jnp.transpose(s1_nchw, (0, 2, 3, 1)).astype(jnp.float32)

    pre0_w, pre1_w, pre_sh, sep_dw, sep_pw, sep_sh = _pack_params(params)
    inv_cnt = _avgpool_inv_count(H, W)

    grid_spec = pltpu.PrefetchScalarGridSpec(
        num_scalar_prefetch=0,
        grid=(N,),
        in_specs=[
            pl.BlockSpec((1, H, W, C_pp), lambda n: (n, 0, 0, 0)),
            pl.BlockSpec((1, H, W, C_p), lambda n: (n, 0, 0, 0)),
            pl.BlockSpec((C_pp, C), lambda n: (0, 0)),
            pl.BlockSpec((C_p, C), lambda n: (0, 0)),
            pl.BlockSpec((2, 1, C), lambda n: (0, 0, 0)),
            pl.BlockSpec((3, 2, 9, C), lambda n: (0, 0, 0, 0)),
            pl.BlockSpec((3, 2, C, C), lambda n: (0, 0, 0, 0)),
            pl.BlockSpec((3, 2, 1, C), lambda n: (0, 0, 0, 0)),
            pl.BlockSpec((1, H, W, 1), lambda n: (0, 0, 0, 0)),
        ],
        out_specs=pl.BlockSpec((1, H, W, 4 * C), lambda n: (n, 0, 0, 0)),
        scratch_shapes=[pltpu.VMEM((1, H + 2, W + 2, C), jnp.float32)],
    )

    out_nhwc = pl.pallas_call(
        _cell_kernel,
        out_shape=jax.ShapeDtypeStruct((N, H, W, 4 * C), jnp.float32),
        grid_spec=grid_spec,
        compiler_params=pltpu.CompilerParams(
            dimension_semantics=("parallel",)),   # shards batch over 2 TCs (v7x)
    )(s0, s1, pre0_w, pre1_w, pre_sh, sep_dw, sep_pw, sep_sh, inv_cnt)

    return jnp.transpose(out_nhwc, (0, 3, 1, 2))  # back to NCHW


# ------------------------ deterministic param init --------------------------

def fresh_bn(C):
    # Freshly initialized BatchNorm in eval mode, as scale/shift.
    gamma = jnp.ones((C,), jnp.float32)
    beta = jnp.zeros((C,), jnp.float32)
    rm = jnp.zeros((C,), jnp.float32)
    rv = jnp.ones((C,), jnp.float32)
    scale = gamma / jnp.sqrt(rv + BN_EPS)
    shift = beta - rm * scale
    return scale, shift


def init_sep_conv_params(key, C):
    k1, k2, k3, k4 = jax.random.split(key, 4)
    s1, b1 = fresh_bn(C)
    s2, b2 = fresh_bn(C)
    return {
        'dw1': jax.random.normal(k1, (9, C), jnp.float32) * 0.2,
        'pw1': jax.random.normal(k2, (C, C), jnp.float32) * 0.2,
        'bn1_scale': s1, 'bn1_shift': b1,
        'dw2': jax.random.normal(k3, (9, C), jnp.float32) * 0.2,
        'pw2': jax.random.normal(k4, (C, C), jnp.float32) * 0.2,
        'bn2_scale': s2, 'bn2_shift': b2,
    }


def init_cell_params(key, C_pp, C_p, C):
    keys = jax.random.split(key, 2 + len(GENOTYPE_NORMAL))
    p0s, p0b = fresh_bn(C)
    p1s, p1b = fresh_bn(C)
    params = {
        'pre0_w': jax.random.normal(keys[0], (C_pp, C), jnp.float32) * 0.2,
        'pre0_scale': p0s, 'pre0_shift': p0b,
        'pre1_w': jax.random.normal(keys[1], (C_p, C), jnp.float32) * 0.2,
        'pre1_scale': p1s, 'pre1_shift': p1b,
    }
    for count, (name, index) in enumerate(GENOTYPE_NORMAL):
        mix_idx = index + STAGE[count // 2]
        if name == 'sep_conv_3x3':
            params['mixop_%d' % mix_idx] = init_sep_conv_params(keys[2 + count], C)
    return params


# ----------------------------------- main ------------------------------------

if __name__ == "__main__":
    key = jax.random.PRNGKey(0)
    kp, k0, k1 = jax.random.split(key, 3)

    N, C_pp, C_p, C, H, W = 2, 8, 8, 8, 8, 8
    params = init_cell_params(kp, C_pp, C_p, C)

    s0 = jax.random.normal(k0, (N, C_pp, H, W), jnp.float32)  # NCHW
    s1 = jax.random.normal(k1, (N, C_p, H, W), jnp.float32)   # NCHW

    out = cell_forward(s0, s1, params)
    out = jax.block_until_ready(out)
    assert out.shape == (N, 4 * C, H, W), out.shape
    assert bool(jnp.all(jnp.isfinite(out)))
    print("KERNEL_OK")
</pallas_src>

<mosaic_0001>
module attributes {stable_mosaic.version = 11 : i64} {
  func.func @_cell_kernel(%arg0: i32, %arg1: memref<1x8x8x8xf32, #tpu.memory_space<vmem>>, %arg2: memref<1x8x8x8xf32, #tpu.memory_space<vmem>>, %arg3: memref<8x8xf32, #tpu.memory_space<vmem>>, %arg4: memref<8x8xf32, #tpu.memory_space<vmem>>, %arg5: memref<2x1x8xf32, #tpu.memory_space<vmem>>, %arg6: memref<3x2x9x8xf32, #tpu.memory_space<vmem>>, %arg7: memref<3x2x8x8xf32, #tpu.memory_space<vmem>>, %arg8: memref<3x2x1x8xf32, #tpu.memory_space<vmem>>, %arg9: memref<1x8x8x1xf32, #tpu.memory_space<vmem>>, %arg10: memref<1x8x8x32xf32, #tpu.memory_space<vmem>>, %arg11: memref<1x10x10x8xf32, #tpu.memory_space<vmem>>) attributes {dimension_semantics = [#tpu.dimension_semantics<parallel>], iteration_bounds = array<i64: 2>, scalar_prefetch = 0 : i64, scratch_operands = 1 : i64, tpu.core_type = #tpu.core_type<tc>, window_params = [{transform_indices = @transform_0, window_bounds = array<i64: 1, 8, 8, 8>}, {transform_indices = @transform_1, window_bounds = array<i64: 1, 8, 8, 8>}, {pipeline_mode = #tpu.pipeline_mode<synchronous>, transform_indices = @transform_2, window_bounds = array<i64: 8, 8>}, {pipeline_mode = #tpu.pipeline_mode<synchronous>, transform_indices = @transform_3, window_bounds = array<i64: 8, 8>}, {pipeline_mode = #tpu.pipeline_mode<synchronous>, transform_indices = @transform_4, window_bounds = array<i64: 2, 1, 8>}, {pipeline_mode = #tpu.pipeline_mode<synchronous>, transform_indices = @transform_5, window_bounds = array<i64: 3, 2, 9, 8>}, {pipeline_mode = #tpu.pipeline_mode<synchronous>, transform_indices = @transform_6, window_bounds = array<i64: 3, 2, 8, 8>}, {pipeline_mode = #tpu.pipeline_mode<synchronous>, transform_indices = @transform_7, window_bounds = array<i64: 3, 2, 1, 8>}, {pipeline_mode = #tpu.pipeline_mode<synchronous>, transform_indices = @transform_8, window_bounds = array<i64: 1, 8, 8, 1>}, {transform_indices = @transform_9, window_bounds = array<i64: 1, 8, 8, 32>}]} {
    %c0 = arith.constant 0 : index
    %c0_0 = arith.constant 0 : index
    %c0_1 = arith.constant 0 : index
    %c0_2 = arith.constant 0 : index
    %0 = vector.load %arg6[%c0, %c0_0, %c0_1, %c0_2] : memref<3x2x9x8xf32, #tpu.memory_space<vmem>>, vector<3x2x9x8xf32>
    %c0_3 = arith.constant 0 : index
    %c0_4 = arith.constant 0 : index
    %c0_5 = arith.constant 0 : index
    %c0_6 = arith.constant 0 : index
    %1 = vector.load %arg7[%c0_3, %c0_4, %c0_5, %c0_6] : memref<3x2x8x8xf32, #tpu.memory_space<vmem>>, vector<3x2x8x8xf32>
    %c0_7 = arith.constant 0 : index
    %c0_8 = arith.constant 0 : index
    %c0_9 = arith.constant 0 : index
    %c0_10 = arith.constant 0 : index
    %2 = vector.load %arg8[%c0_7, %c0_8, %c0_9, %c0_10] : memref<3x2x1x8xf32, #tpu.memory_space<vmem>>, vector<3x2x1x8xf32>
    %c0_11 = arith.constant 0 : index
    %c0_12 = arith.constant 0 : index
    %c0_13 = arith.constant 0 : index
    %3 = vector.load %arg5[%c0_11, %c0_12, %c0_13] : memref<2x1x8xf32, #tpu.memory_space<vmem>>, vector<2x1x8xf32>
    %c0_14 = arith.constant 0 : index
    %c0_15 = arith.constant 0 : index
    %c0_16 = arith.constant 0 : index
    %c0_17 = arith.constant 0 : index
    %4 = vector.load %arg1[%c0_14, %c0_15, %c0_16, %c0_17] : memref<1x8x8x8xf32, #tpu.memory_space<vmem>>, vector<1x8x8x8xf32>
    %c0_18 = arith.constant 0 : index
    %c0_19 = arith.constant 0 : index
    %5 = vector.load %arg3[%c0_18, %c0_19] : memref<8x8xf32, #tpu.memory_space<vmem>>, vector<8x8xf32>
    %6 = vector.extract_strided_slice %3 {offsets = [0, 0, 0], sizes = [1, 1, 8], strides = [1, 1, 1]} : vector<2x1x8xf32> to vector<1x1x8xf32>
    %7 = vector.shape_cast %6 : vector<1x1x8xf32> to vector<1x8xf32>
    %8 = vector.shape_cast %4 : vector<1x8x8x8xf32> to vector<64x8xf32>
    %cst = arith.constant 0.000000e+00 : f32
    %9 = vector.broadcast %cst : f32 to vector<64x8xf32>
    %10 = arith.maximumf %8, %9 : vector<64x8xf32>
    %cst_20 = arith.constant dense<0.000000e+00> : vector<64x8xf32>
    %11 = tpu.matmul %10, %5, %cst_20 {dimension_numbers = #tpu.dot_dimension_numbers<[1], [0], [0], [1], [0, 0, 1, 1], [], []>} : vector<64x8xf32>, vector<8x8xf32>, vector<64x8xf32> -> vector<64x8xf32>
    %12 = vector.broadcast %7 : vector<1x8xf32> to vector<64x8xf32>
    %13 = arith.addf %11, %12 : vector<64x8xf32>
    %14 = vector.shape_cast %13 : vector<64x8xf32> to vector<1x8x8x8xf32>
    %c0_21 = arith.constant 0 : index
    %c0_22 = arith.constant 0 : index
    %c0_23 = arith.constant 0 : index
    %c0_24 = arith.constant 0 : index
    %15 = vector.load %arg2[%c0_21, %c0_22, %c0_23, %c0_24] : memref<1x8x8x8xf32, #tpu.memory_space<vmem>>, vector<1x8x8x8xf32>
    %c0_25 = arith.constant 0 : index
    %c0_26 = arith.constant 0 : index
    %16 = vector.load %arg4[%c0_25, %c0_26] : memref<8x8xf32, #tpu.memory_space<vmem>>, vector<8x8xf32>
    %17 = vector.extract_strided_slice %3 {offsets = [1, 0, 0], sizes = [1, 1, 8], strides = [1, 1, 1]} : vector<2x1x8xf32> to vector<1x1x8xf32>
    %18 = vector.shape_cast %17 : vector<1x1x8xf32> to vector<1x8xf32>
    %19 = vector.shape_cast %15 : vector<1x8x8x8xf32> to vector<64x8xf32>
    %cst_27 = arith.constant 0.000000e+00 : f32
    %20 = vector.broadcast %cst_27 : f32 to vector<64x8xf32>
    %21 = arith.maximumf %19, %20 : vector<64x8xf32>
    %cst_28 = arith.constant dense<0.000000e+00> : vector<64x8xf32>
    %22 = tpu.matmul %21, %16, %cst_28 {dimension_numbers = #tpu.dot_dimension_numbers<[1], [0], [0], [1], [0, 0, 1, 1], [], []>} : vector<64x8xf32>, vector<8x8xf32>, vector<64x8xf32> -> vector<64x8xf32>
    %23 = vector.broadcast %18 : vector<1x8xf32> to vector<64x8xf32>
    %24 = arith.addf %22, %23 : vector<64x8xf32>
    %25 = vector.shape_cast %24 : vector<64x8xf32> to vector<1x8x8x8xf32>
    %26 = vector.extract_strided_slice %0 {offsets = [0, 0, 0, 0], sizes = [1, 1, 9, 8], strides = [1, 1, 1, 1]} : vector<3x2x9x8xf32> to vector<1x1x9x8xf32>
    %27 = vector.shape_cast %26 : vector<1x1x9x8xf32> to vector<9x8xf32>
    %cst_29 = arith.constant 0.000000e+00 : f32
    %28 = vector.broadcast %cst_29 : f32 to vector<1x8x8x8xf32>
    %29 = arith.maximumf %14, %28 : vector<1x8x8x8xf32>
    %cst_30 = arith.constant 0.000000e+00 : f32
    %30 = vector.broadcast %cst_30 : f32 to vector<1x10x10x8xf32>
    %c0_31 = arith.constant 0 : index
    %c0_32 = arith.constant 0 : index
    %c0_33 = arith.constant 0 : index
    %c0_34 = arith.constant 0 : index
    %31 = vector.load %arg11[%c0_31, %c0_32, %c0_33, %c0_34] : memref<1x10x10x8xf32, #tpu.memory_space<vmem>>, vector<1x10x10x8xf32>
    tpu.vector_store %arg11[%c0_31, %c0_32, %c0_33, %c0_34], %30 {strides = array<i32>} : memref<1x10x10x8xf32, #tpu.memory_space<vmem>>, vector<1x10x10x8xf32>,
    %c0_35 = arith.constant 0 : index
    %c1 = arith.constant 1 : index
    %c1_36 = arith.constant 1 : index
    %c0_37 = arith.constant 0 : index
    %32 = vector.load %arg11[%c0_35, %c1, %c1_36, %c0_37] : memref<1x10x10x8xf32, #tpu.memory_space<vmem>>, vector<1x8x8x8xf32>
    tpu.vector_store %arg11[%c0_35, %c1, %c1_36, %c0_37], %29 {strides = array<i32>} : memref<1x10x10x8xf32, #tpu.memory_space<vmem>>, vector<1x8x8x8xf32>,
    %cst_38 = arith.constant 0.000000e+00 : f32
    %33 = vector.broadcast %cst_38 : f32 to vector<1x8x8x8xf32>
    %c0_39 = arith.constant 0 : index
    %c0_40 = arith.constant 0 : index
    %c0_41 = arith.constant 0 : index
    %c0_42 = arith.constant 0 : index
    %34 = vector.load %arg11[%c0_39, %c0_40, %c0_41, %c0_42] : memref<1x10x10x8xf32, #tpu.memory_space<vmem>>, vector<1x8x8x8xf32>
    %35 = vector.extract_strided_slice %27 {offsets = [0, 0], sizes = [1, 8], strides = [1, 1]} : vector<9x8xf32> to vector<1x8xf32>
    %36 = vector.shape_cast %35 : vector<1x8xf32> to vector<1x1x1x8xf32>
    %37 = vector.broadcast %36 : vector<1x1x1x8xf32> to vector<1x8x8x8xf32>
    %38 = arith.mulf %34, %37 : vector<1x8x8x8xf32>
    %39 = arith.addf %33, %38 : vector<1x8x8x8xf32>
    %c0_43 = arith.constant 0 : index
    %c0_44 = arith.constant 0 : index
    %c1_45 = arith.constant 1 : index
    %c0_46 = arith.constant 0 : index
    %40 = vector.load %arg11[%c0_43, %c0_44, %c1_45, %c0_46] : memref<1x10x10x8xf32, #tpu.memory_space<vmem>>, vector<1x8x8x8xf32>
    %41 = vector.extract_strided_slice %27 {offsets = [1, 0], sizes = [1, 8], strides = [1, 1]} : vector<9x8xf32> to vector<1x8xf32>
    %42 = vector.shape_cast %41 : vector<1x8xf32> to vector<1x1x1x8xf32>
    %43 = vector.broadcast %42 : vector<1x1x1x8xf32> to vector<1x8x8x8xf32>
    %44 = arith.mulf %40, %43 : vector<1x8x8x8xf32>
    %45 = arith.addf %39, %44 : vector<1x8x8x8xf32>
    %c0_47 = arith.constant 0 : index
    %c0_48 = arith.constant 0 : index
    %c2 = arith.constant 2 : index
    %c0_49 = arith.constant 0 : index
    %46 = vector.load %arg11[%c0_47, %c0_48, %c2, %c0_49] : memref<1x10x10x8xf32, #tpu.memory_space<vmem>>, vector<1x8x8x8xf32>
    %47 = vector.extract_strided_slice %27 {offsets = [2, 0], sizes = [1, 8], strides = [1, 1]} : vector<9x8xf32> to vector<1x8xf32>
    %48 = vector.shape_cast %47 : vector<1x8xf32> to vector<1x1x1x8xf32>
    %49 = vector.broadcast %48 : vector<1x1x1x8xf32> to vector<1x8x8x8xf32>
    %50 = arith.mulf %46, %49 : vector<1x8x8x8xf32>
    %51 = arith.addf %45, %50 : vector<1x8x8x8xf32>
    %c0_50 = arith.constant 0 : index
    %c1_51 = arith.constant 1 : index
    %c0_52 = arith.constant 0 : index
    %c0_53 = arith.constant 0 : index
    %52 = vector.load %arg11[%c0_50, %c1_51, %c0_52, %c0_53] : memref<1x10x10x8xf32, #tpu.memory_space<vmem>>, vector<1x8x8x8xf32>
    %53 = vector.extract_strided_slice %27 {offsets = [3, 0], sizes = [1, 8], strides = [1, 1]} : vector<9x8xf32> to vector<1x8xf32>
    %54 = vector.shape_cast %53 : vector<1x8xf32> to vector<1x1x1x8xf32>
    %55 = vector.broadcast %54 : vector<1x1x1x8xf32> to vector<1x8x8x8xf32>
    %56 = arith.mulf %52, %55 : vector<1x8x8x8xf32>
    %57 = arith.addf %51, %56 : vector<1x8x8x8xf32>
    %c0_54 = arith.constant 0 : index
    %c1_55 = arith.constant 1 : index
    %c1_56 = arith.constant 1 : index
    %c0_57 = arith.constant 0 : index
    %58 = vector.load %arg11[%c0_54, %c1_55, %c1_56, %c0_57] : memref<1x10x10x8xf32, #tpu.memory_space<vmem>>, vector<1x8x8x8xf32>
    %59 = vector.extract_strided_slice %27 {offsets = [4, 0], sizes = [1, 8], strides = [1, 1]} : vector<9x8xf32> to vector<1x8xf32>
    %60 = vector.shape_cast %59 : vector<1x8xf32> to vector<1x1x1x8xf32>
    %61 = vector.broadcast %60 : vector<1x1x1x8xf32> to vector<1x8x8x8xf32>
    %62 = arith.mulf %58, %61 : vector<1x8x8x8xf32>
    %63 = arith.addf %57, %62 : vector<1x8x8x8xf32>
    %c0_58 = arith.constant 0 : index
    %c1_59 = arith.constant 1 : index
    %c2_60 = arith.constant 2 : index
    %c0_61 = arith.constant 0 : index
    %64 = vector.load %arg11[%c0_58, %c1_59, %c2_60, %c0_61] : memref<1x10x10x8xf32, #tpu.memory_space<vmem>>, vector<1x8x8x8xf32>
    %65 = vector.extract_strided_slice %27 {offsets = [5, 0], sizes = [1, 8], strides = [1, 1]} : vector<9x8xf32> to vector<1x8xf32>
    %66 = vector.shape_cast %65 : vector<1x8xf32> to vector<1x1x1x8xf32>
    %67 = vector.broadcast %66 : vector<1x1x1x8xf32> to vector<1x8x8x8xf32>
    %68 = arith.mulf %64, %67 : vector<1x8x8x8xf32>
    %69 = arith.addf %63, %68 : vector<1x8x8x8xf32>
    %c0_62 = arith.constant 0 : index
    %c2_63 = arith.constant 2 : index
    %c0_64 = arith.constant 0 : index
    %c0_65 = arith.constant 0 : index
    %70 = vector.load %arg11[%c0_62, %c2_63, %c0_64, %c0_65] : memref<1x10x10x8xf32, #tpu.memory_space<vmem>>, vector<1x8x8x8xf32>
    %71 = vector.extract_strided_slice %27 {offsets = [6, 0], sizes = [1, 8], strides = [1, 1]} : vector<9x8xf32> to vector<1x8xf32>
    %72 = vector.shape_cast %71 : vector<1x8xf32> to vector<1x1x1x8xf32>
    %73 = vector.broadcast %72 : vector<1x1x1x8xf32> to vector<1x8x8x8xf32>
    %74 = arith.mulf %70, %73 : vector<1x8x8x8xf32>
    %75 = arith.addf %69, %74 : vector<1x8x8x8xf32>
    %c0_66 = arith.constant 0 : index
    %c2_67 = arith.constant 2 : index
    %c1_68 = arith.constant 1 : index
    %c0_69 = arith.constant 0 : index
    %76 = vector.load %arg11[%c0_66, %c2_67, %c1_68, %c0_69] : memref<1x10x10x8xf32, #tpu.memory_space<vmem>>, vector<1x8x8x8xf32>
    %77 = vector.extract_strided_slice %27 {offsets = [7, 0], sizes = [1, 8], strides = [1, 1]} : vector<9x8xf32> to vector<1x8xf32>
    %78 = vector.shape_cast %77 : vector<1x8xf32> to vector<1x1x1x8xf32>
    %79 = vector.broadcast %78 : vector<1x1x1x8xf32> to vector<1x8x8x8xf32>
    %80 = arith.mulf %76, %79 : vector<1x8x8x8xf32>
    %81 = arith.addf %75, %80 : vector<1x8x8x8xf32>
    %c0_70 = arith.constant 0 : index
    %c2_71 = arith.constant 2 : index
    %c2_72 = arith.constant 2 : index
    %c0_73 = arith.constant 0 : index
    %82 = vector.load %arg11[%c0_70, %c2_71, %c2_72, %c0_73] : memref<1x10x10x8xf32, #tpu.memory_space<vmem>>, vector<1x8x8x8xf32>
    %83 = vector.extract_strided_slice %27 {offsets = [8, 0], sizes = [1, 8], strides = [1, 1]} : vector<9x8xf32> to vector<1x8xf32>
    %84 = vector.shape_cast %83 : vector<1x8xf32> to vector<1x1x1x8xf32>
    %85 = vector.broadcast %84 : vector<1x1x1x8xf32> to vector<1x8x8x8xf32>
    %86 = arith.mulf %82, %85 : vector<1x8x8x8xf32>
    %87 = arith.addf %81, %86 : vector<1x8x8x8xf32>
    %88 = vector.extract_strided_slice %1 {offsets = [0, 0, 0, 0], sizes = [1, 1, 8, 8], strides = [1, 1, 1, 1]} : vector<3x2x8x8xf32> to vector<1x1x8x8xf32>
    %89 = vector.shape_cast %88 : vector<1x1x8x8xf32> to vector<8x8xf32>
    %90 = vector.extract_strided_slice %2 {offsets = [0, 0, 0, 0], sizes = [1, 1, 1, 8], strides = [1, 1, 1, 1]} : vector<3x2x1x8xf32> to vector<1x1x1x8xf32>
    %91 = vector.shape_cast %90 : vector<1x1x1x8xf32> to vector<1x8xf32>
    %92 = vector.shape_cast %87 : vector<1x8x8x8xf32> to vector<64x8xf32>
    %cst_74 = arith.constant dense<0.000000e+00> : vector<64x8xf32>
    %93 = tpu.matmul %92, %89, %cst_74 {dimension_numbers = #tpu.dot_dimension_numbers<[1], [0], [0], [1], [0, 0, 1, 1], [], []>} : vector<64x8xf32>, vector<8x8xf32>, vector<64x8xf32> -> vector<64x8xf32>
    %94 = vector.broadcast %91 : vector<1x8xf32> to vector<64x8xf32>
    %95 = arith.addf %93, %94 : vector<64x8xf32>
    %96 = vector.shape_cast %95 : vector<64x8xf32> to vector<1x8x8x8xf32>
    %97 = vector.extract_strided_slice %0 {offsets = [0, 1, 0, 0], sizes = [1, 1, 9, 8], strides = [1, 1, 1, 1]} : vector<3x2x9x8xf32> to vector<1x1x9x8xf32>
    %98 = vector.shape_cast %97 : vector<1x1x9x8xf32> to vector<9x8xf32>
    %cst_75 = arith.constant 0.000000e+00 : f32
    %99 = vector.broadcast %cst_75 : f32 to vector<1x8x8x8xf32>
    %100 = arith.maximumf %96, %99 : vector<1x8x8x8xf32>
    %cst_76 = arith.constant 0.000000e+00 : f32
    %101 = vector.broadcast %cst_76 : f32 to vector<1x10x10x8xf32>
    %c0_77 = arith.constant 0 : index
    %c0_78 = arith.constant 0 : index
    %c0_79 = arith.constant 0 : index
    %c0_80 = arith.constant 0 : index
    %102 = vector.load %arg11[%c0_77, %c0_78, %c0_79, %c0_80] : memref<1x10x10x8xf32, #tpu.memory_space<vmem>>, vector<1x10x10x8xf32>
    tpu.vector_store %arg11[%c0_77, %c0_78, %c0_79, %c0_80], %101 {strides = array<i32>} : memref<1x10x10x8xf32, #tpu.memory_space<vmem>>, vector<1x10x10x8xf32>,
    %c0_81 = arith.constant 0 : index
    %c1_82 = arith.constant 1 : index
    %c1_83 = arith.constant 1 : index
    %c0_84 = arith.constant 0 : index
    %103 = vector.load %arg11[%c0_81, %c1_82, %c1_83, %c0_84] : memref<1x10x10x8xf32, #tpu.memory_space<vmem>>, vector<1x8x8x8xf32>
    tpu.vector_store %arg11[%c0_81, %c1_82, %c1_83, %c0_84], %100 {strides = array<i32>} : memref<1x10x10x8xf32, #tpu.memory_space<vmem>>, vector<1x8x8x8xf32>,
    %cst_85 = arith.constant 0.000000e+00 : f32
    %104 = vector.broadcast %cst_85 : f32 to vector<1x8x8x8xf32>
    %c0_86 = arith.constant 0 : index
    %c0_87 = arith.constant 0 : index
    %c0_88 = arith.constant 0 : index
    %c0_89 = arith.constant 0 : index
    %105 = vector.load %arg11[%c0_86, %c0_87, %c0_88, %c0_89] : memref<1x10x10x8xf32, #tpu.memory_space<vmem>>, vector<1x8x8x8xf32>
    %106 = vector.extract_strided_slice %98 {offsets = [0, 0], sizes = [1, 8], strides = [1, 1]} : vector<9x8xf32> to vector<1x8xf32>
    %107 = vector.shape_cast %106 : vector<1x8xf32> to vector<1x1x1x8xf32>
    %108 = vector.broadcast %107 : vector<1x1x1x8xf32> to vector<1x8x8x8xf32>
    %109 = arith.mulf %105, %108 : vector<1x8x8x8xf32>
    %110 = arith.addf %104, %109 : vector<1x8x8x8xf32>
    %c0_90 = arith.constant 0 : index
    %c0_91 = arith.constant 0 : index
    %c1_92 = arith.constant 1 : index
    %c0_93 = arith.constant 0 : index
    %111 = vector.load %arg11[%c0_90, %c0_91, %c1_92, %c0_93] : memref<1x10x10x8xf32, #tpu.memory_space<vmem>>, vector<1x8x8x8xf32>
    %112 = vector.extract_strided_slice %98 {offsets = [1, 0], sizes = [1, 8], strides = [1, 1]} : vector<9x8xf32> to vector<1x8xf32>
    %113 = vector.shape_cast %112 : vector<1x8xf32> to vector<1x1x1x8xf32>
    %114 = vector.broadcast %113 : vector<1x1x1x8xf32> to vector<1x8x8x8xf32>
    %115 = arith.mulf %111, %114 : vector<1x8x8x8xf32>
    %116 = arith.addf %110, %115 : vector<1x8x8x8xf32>
    %c0_94 = arith.constant 0 : index
    %c0_95 = arith.constant 0 : index
    %c2_96 = arith.constant 2 : index
    %c0_97 = arith.constant 0 : index
    %117 = vector.load %arg11[%c0_94, %c0_95, %c2_96, %c0_97] : memref<1x10x10x8xf32, #tpu.memory_space<vmem>>, vector<1x8x8x8xf32>
    %118 = vector.extract_strided_slice %98 {offsets = [2, 0], sizes = [1, 8], strides = [1, 1]} : vector<9x8xf32> to vector<1x8xf32>
    %119 = vector.shape_cast %118 : vector<1x8xf32> to vector<1x1x1x8xf32>
    %120 = vector.broadcast %119 : vector<1x1x1x8xf32> to vector<1x8x8x8xf32>
    %121 = arith.mulf %117, %120 : vector<1x8x8x8xf32>
    %122 = arith.addf %116, %121 : vector<1x8x8x8xf32>
    %c0_98 = arith.constant 0 : index
    %c1_99 = arith.constant 1 : index
    %c0_100 = arith.constant 0 : index
    %c0_101 = arith.constant 0 : index
    %123 = vector.load %arg11[%c0_98, %c1_99, %c0_100, %c0_101] : memref<1x10x10x8xf32, #tpu.memory_space<vmem>>, vector<1x8x8x8xf32>
    %124 = vector.extract_strided_slice %98 {offsets = [3, 0], sizes = [1, 8], strides = [1, 1]} : vector<9x8xf32> to vector<1x8xf32>
    %125 = vector.shape_cast %124 : vector<1x8xf32> to vector<1x1x1x8xf32>
    %126 = vector.broadcast %125 : vector<1x1x1x8xf32> to vector<1x8x8x8xf32>
    %127 = arith.mulf %123, %126 : vector<1x8x8x8xf32>
    %128 = arith.addf %122, %127 : vector<1x8x8x8xf32>
    %c0_102 = arith.constant 0 : index
    %c1_103 = arith.constant 1 : index
    %c1_104 = arith.constant 1 : index
    %c0_105 = arith.constant 0 : index
    %129 = vector.load %arg11[%c0_102, %c1_103, %c1_104, %c0_105] : memref<1x10x10x8xf32, #tpu.memory_space<vmem>>, vector<1x8x8x8xf32>
    %130 = vector.extract_strided_slice %98 {offsets = [4, 0], sizes = [1, 8], strides = [1, 1]} : vector<9x8xf32> to vector<1x8xf32>
    %131 = vector.shape_cast %130 : vector<1x8xf32> to vector<1x1x1x8xf32>
    %132 = vector.broadcast %131 : vector<1x1x1x8xf32> to vector<1x8x8x8xf32>
    %133 = arith.mulf %129, %132 : vector<1x8x8x8xf32>
    %134 = arith.addf %128, %133 : vector<1x8x8x8xf32>
    %c0_106 = arith.constant 0 : index
    %c1_107 = arith.constant 1 : index
    %c2_108 = arith.constant 2 : index
    %c0_109 = arith.constant 0 : index
    %135 = vector.load %arg11[%c0_106, %c1_107, %c2_108, %c0_109] : memref<1x10x10x8xf32, #tpu.memory_space<vmem>>, vector<1x8x8x8xf32>
    %136 = vector.extract_strided_slice %98 {offsets = [5, 0], sizes = [1, 8], strides = [1, 1]} : vector<9x8xf32> to vector<1x8xf32>
    %137 = vector.shape_cast %136 : vector<1x8xf32> to vector<1x1x1x8xf32>
    %138 = vector.broadcast %137 : vector<1x1x1x8xf32> to vector<1x8x8x8xf32>
    %139 = arith.mulf %135, %138 : vector<1x8x8x8xf32>
    %140 = arith.addf %134, %139 : vector<1x8x8x8xf32>
    %c0_110 = arith.constant 0 : index
    %c2_111 = arith.constant 2 : index
    %c0_112 = arith.constant 0 : index
    %c0_113 = arith.constant 0 : index
    %141 = vector.load %arg11[%c0_110, %c2_111, %c0_112, %c0_113] : memref<1x10x10x8xf32, #tpu.memory_space<vmem>>, vector<1x8x8x8xf32>
    %142 = vector.extract_strided_slice %98 {offsets = [6, 0], sizes = [1, 8], strides = [1, 1]} : vector<9x8xf32> to vector<1x8xf32>
    %143 = vector.shape_cast %142 : vector<1x8xf32> to vector<1x1x1x8xf32>
    %144 = vector.broadcast %143 : vector<1x1x1x8xf32> to vector<1x8x8x8xf32>
    %145 = arith.mulf %141, %144 : vector<1x8x8x8xf32>
    %146 = arith.addf %140, %145 : vector<1x8x8x8xf32>
    %c0_114 = arith.constant 0 : index
    %c2_115 = arith.constant 2 : index
    %c1_116 = arith.constant 1 : index
    %c0_117 = arith.constant 0 : index
    %147 = vector.load %arg11[%c0_114, %c2_115, %c1_116, %c0_117] : memref<1x10x10x8xf32, #tpu.memory_space<vmem>>, vector<1x8x8x8xf32>
    %148 = vector.extract_strided_slice %98 {offsets = [7, 0], sizes = [1, 8], strides = [1, 1]} : vector<9x8xf32> to vector<1x8xf32>
    %149 = vector.shape_cast %148 : vector<1x8xf32> to vector<1x1x1x8xf32>
    %150 = vector.broadcast %149 : vector<1x1x1x8xf32> to vector<1x8x8x8xf32>
    %151 = arith.mulf %147, %150 : vector<1x8x8x8xf32>
    %152 = arith.addf %146, %151 : vector<1x8x8x8xf32>
    %c0_118 = arith.constant 0 : index
    %c2_119 = arith.constant 2 : index
    %c2_120 = arith.constant 2 : index
    %c0_121 = arith.constant 0 : index
    %153 = vector.load %arg11[%c0_118, %c2_119, %c2_120, %c0_121] : memref<1x10x10x8xf32, #tpu.memory_space<vmem>>, vector<1x8x8x8xf32>
    %154 = vector.extract_strided_slice %98 {offsets = [8, 0], sizes = [1, 8], strides = [1, 1]} : vector<9x8xf32> to vector<1x8xf32>
    %155 = vector.shape_cast %154 : vector<1x8xf32> to vector<1x1x1x8xf32>
    %156 = vector.broadcast %155 : vector<1x1x1x8xf32> to vector<1x8x8x8xf32>
    %157 = arith.mulf %153, %156 : vector<1x8x8x8xf32>
    %158 = arith.addf %152, %157 : vector<1x8x8x8xf32>
    %159 = vector.extract_strided_slice %1 {offsets = [0, 1, 0, 0], sizes = [1, 1, 8, 8], strides = [1, 1, 1, 1]} : vector<3x2x8x8xf32> to vector<1x1x8x8xf32>
    %160 = vector.shape_cast %159 : vector<1x1x8x8xf32> to vector<8x8xf32>
    %161 = vector.extract_strided_slice %2 {offsets = [0, 1, 0, 0], sizes = [1, 1, 1, 8], strides = [1, 1, 1, 1]} : vector<3x2x1x8xf32> to vector<1x1x1x8xf32>
    %162 = vector.shape_cast %161 : vector<1x1x1x8xf32> to vector<1x8xf32>
    %163 = vector.shape_cast %158 : vector<1x8x8x8xf32> to vector<64x8xf32>
    %cst_122 = arith.constant dense<0.000000e+00> : vector<64x8xf32>
    %164 = tpu.matmul %163, %160, %cst_122 {dimension_numbers = #tpu.dot_dimension_numbers<[1], [0], [0], [1], [0, 0, 1, 1], [], []>} : vector<64x8xf32>, vector<8x8xf32>, vector<64x8xf32> -> vector<64x8xf32>
    %165 = vector.broadcast %162 : vector<1x8xf32> to vector<64x8xf32>
    %166 = arith.addf %164, %165 : vector<64x8xf32>
    %167 = vector.shape_cast %166 : vector<64x8xf32> to vector<1x8x8x8xf32>
    %168 = arith.addf %167, %25 : vector<1x8x8x8xf32>
    %169 = vector.extract_strided_slice %0 {offsets = [1, 0, 0, 0], sizes = [1, 1, 9, 8], strides = [1, 1, 1, 1]} : vector<3x2x9x8xf32> to vector<1x1x9x8xf32>
    %170 = vector.shape_cast %169 : vector<1x1x9x8xf32> to vector<9x8xf32>
    %cst_123 = arith.constant 0.000000e+00 : f32
    %171 = vector.broadcast %cst_123 : f32 to vector<1x8x8x8xf32>
    %172 = arith.maximumf %14, %171 : vector<1x8x8x8xf32>
    %cst_124 = arith.constant 0.000000e+00 : f32
    %173 = vector.broadcast %cst_124 : f32 to vector<1x10x10x8xf32>
    %c0_125 = arith.constant 0 : index
    %c0_126 = arith.constant 0 : index
    %c0_127 = arith.constant 0 : index
    %c0_128 = arith.constant 0 : index
    %174 = vector.load %arg11[%c0_125, %c0_126, %c0_127, %c0_128] : memref<1x10x10x8xf32, #tpu.memory_space<vmem>>, vector<1x10x10x8xf32>
    tpu.vector_store %arg11[%c0_125, %c0_126, %c0_127, %c0_128], %173 {strides = array<i32>} : memref<1x10x10x8xf32, #tpu.memory_space<vmem>>, vector<1x10x10x8xf32>,
    %c0_129 = arith.constant 0 : index
    %c1_130 = arith.constant 1 : index
    %c1_131 = arith.constant 1 : index
    %c0_132 = arith.constant 0 : index
    %175 = vector.load %arg11[%c0_129, %c1_130, %c1_131, %c0_132] : memref<1x10x10x8xf32, #tpu.memory_space<vmem>>, vector<1x8x8x8xf32>
    tpu.vector_store %arg11[%c0_129, %c1_130, %c1_131, %c0_132], %172 {strides = array<i32>} : memref<1x10x10x8xf32, #tpu.memory_space<vmem>>, vector<1x8x8x8xf32>,
    %cst_133 = arith.constant 0.000000e+00 : f32
    %176 = vector.broadcast %cst_133 : f32 to vector<1x8x8x8xf32>
    %c0_134 = arith.constant 0 : index
    %c0_135 = arith.constant 0 : index
    %c0_136 = arith.constant 0 : index
    %c0_137 = arith.constant 0 : index
    %177 = vector.load %arg11[%c0_134, %c0_135, %c0_136, %c0_137] : memref<1x10x10x8xf32, #tpu.memory_space<vmem>>, vector<1x8x8x8xf32>
    %178 = vector.extract_strided_slice %170 {offsets = [0, 0], sizes = [1, 8], strides = [1, 1]} : vector<9x8xf32> to vector<1x8xf32>
    %179 = vector.shape_cast %178 : vector<1x8xf32> to vector<1x1x1x8xf32>
    %180 = vector.broadcast %179 : vector<1x1x1x8xf32> to vector<1x8x8x8xf32>
    %181 = arith.mulf %177, %180 : vector<1x8x8x8xf32>
    %182 = arith.addf %176, %181 : vector<1x8x8x8xf32>
    %c0_138 = arith.constant 0 : index
    %c0_139 = arith.constant 0 : index
    %c1_140 = arith.constant 1 : index
    %c0_141 = arith.constant 0 : index
    %183 = vector.load %arg11[%c0_138, %c0_139, %c1_140, %c0_141] : memref<1x10x10x8xf32, #tpu.memory_space<vmem>>, vector<1x8x8x8xf32>
    %184 = vector.extract_strided_slice %170 {offsets = [1, 0], sizes = [1, 8], strides = [1, 1]} : vector<9x8xf32> to vector<1x8xf32>
    %185 = vector.shape_cast %184 : vector<1x8xf32> to vector<1x1x1x8xf32>
    %186 = vector.broadcast %185 : vector<1x1x1x8xf32> to vector<1x8x8x8xf32>
    %187 = arith.mulf %183, %186 : vector<1x8x8x8xf32>
    %188 = arith.addf %182, %187 : vector<1x8x8x8xf32>
    %c0_142 = arith.constant 0 : index
    %c0_143 = arith.constant 0 : index
    %c2_144 = arith.constant 2 : index
    %c0_145 = arith.constant 0 : index
    %189 = vector.load %arg11[%c0_142, %c0_143, %c2_144, %c0_145] : memref<1x10x10x8xf32, #tpu.memory_space<vmem>>, vector<1x8x8x8xf32>
    %190 = vector.extract_strided_slice %170 {offsets = [2, 0], sizes = [1, 8], strides = [1, 1]} : vector<9x8xf32> to vector<1x8xf32>
    %191 = vector.shape_cast %190 : vector<1x8xf32> to vector<1x1x1x8xf32>
    %192 = vector.broadcast %191 : vector<1x1x1x8xf32> to vector<1x8x8x8xf32>
    %193 = arith.mulf %189, %192 : vector<1x8x8x8xf32>
    %194 = arith.addf %188, %193 : vector<1x8x8x8xf32>
    %c0_146 = arith.constant 0 : index
    %c1_147 = arith.constant 1 : index
    %c0_148 = arith.constant 0 : index
    %c0_149 = arith.constant 0 : index
    %195 = vector.load %arg11[%c0_146, %c1_147, %c0_148, %c0_149] : memref<1x10x10x8xf32, #tpu.memory_space<vmem>>, vector<1x8x8x8xf32>
    %196 = vector.extract_strided_slice %170 {offsets = [3, 0], sizes = [1, 8], strides = [1, 1]} : vector<9x8xf32> to vector<1x8xf32>
    %197 = vector.shape_cast %196 : vector<1x8xf32> to vector<1x1x1x8xf32>
    %198 = vector.broadcast %197 : vector<1x1x1x8xf32> to vector<1x8x8x8xf32>
    %199 = arith.mulf %195, %198 : vector<1x8x8x8xf32>
    %200 = arith.addf %194, %199 : vector<1x8x8x8xf32>
    %c0_150 = arith.constant 0 : index
    %c1_151 = arith.constant 1 : index
    %c1_152 = arith.constant 1 : index
    %c0_153 = arith.constant 0 : index
    %201 = vector.load %arg11[%c0_150, %c1_151, %c1_152, %c0_153] : memref<1x10x10x8xf32, #tpu.memory_space<vmem>>, vector<1x8x8x8xf32>
    %202 = vector.extract_strided_slice %170 {offsets = [4, 0], sizes = [1, 8], strides = [1, 1]} : vector<9x8xf32> to vector<1x8xf32>
    %203 = vector.shape_cast %202 : vector<1x8xf32> to vector<1x1x1x8xf32>
    %204 = vector.broadcast %203 : vector<1x1x1x8xf32> to vector<1x8x8x8xf32>
    %205 = arith.mulf %201, %204 : vector<1x8x8x8xf32>
    %206 = arith.addf %200, %205 : vector<1x8x8x8xf32>
    %c0_154 = arith.constant 0 : index
    %c1_155 = arith.constant 1 : index
    %c2_156 = arith.constant 2 : index
    %c0_157 = arith.constant 0 : index
    %207 = vector.load %arg11[%c0_154, %c1_155, %c2_156, %c0_157] : memref<1x10x10x8xf32, #tpu.memory_space<vmem>>, vector<1x8x8x8xf32>
    %208 = vector.extract_strided_slice %170 {offsets = [5, 0], sizes = [1, 8], strides = [1, 1]} : vector<9x8xf32> to vector<1x8xf32>
    %209 = vector.shape_cast %208 : vector<1x8xf32> to vector<1x1x1x8xf32>
    %210 = vector.broadcast %209 : vector<1x1x1x8xf32> to vector<1x8x8x8xf32>
    %211 = arith.mulf %207, %210 : vector<1x8x8x8xf32>
    %212 = arith.addf %206, %211 : vector<1x8x8x8xf32>
    %c0_158 = arith.constant 0 : index
    %c2_159 = arith.constant 2 : index
    %c0_160 = arith.constant 0 : index
    %c0_161 = arith.constant 0 : index
    %213 = vector.load %arg11[%c0_158, %c2_159, %c0_160, %c0_161] : memref<1x10x10x8xf32, #tpu.memory_space<vmem>>, vector<1x8x8x8xf32>
    %214 = vector.extract_strided_slice %170 {offsets = [6, 0], sizes = [1, 8], strides = [1, 1]} : vector<9x8xf32> to vector<1x8xf32>
    %215 = vector.shape_cast %214 : vector<1x8xf32> to vector<1x1x1x8xf32>
    %216 = vector.broadcast %215 : vector<1x1x1x8xf32> to vector<1x8x8x8xf32>
    %217 = arith.mulf %213, %216 : vector<1x8x8x8xf32>
    %218 = arith.addf %212, %217 : vector<1x8x8x8xf32>
    %c0_162 = arith.constant 0 : index
    %c2_163 = arith.constant 2 : index
    %c1_164 = arith.constant 1 : index
    %c0_165 = arith.constant 0 : index
    %219 = vector.load %arg11[%c0_162, %c2_163, %c1_164, %c0_165] : memref<1x10x10x8xf32, #tpu.memory_space<vmem>>, vector<1x8x8x8xf32>
    %220 = vector.extract_strided_slice %170 {offsets = [7, 0], sizes = [1, 8], strides = [1, 1]} : vector<9x8xf32> to vector<1x8xf32>
    %221 = vector.shape_cast %220 : vector<1x8xf32> to vector<1x1x1x8xf32>
    %222 = vector.broadcast %221 : vector<1x1x1x8xf32> to vector<1x8x8x8xf32>
    %223 = arith.mulf %219, %222 : vector<1x8x8x8xf32>
    %224 = arith.addf %218, %223 : vector<1x8x8x8xf32>
    %c0_166 = arith.constant 0 : index
    %c2_167 = arith.constant 2 : index
    %c2_168 = arith.constant 2 : index
    %c0_169 = arith.constant 0 : index
    %225 = vector.load %arg11[%c0_166, %c2_167, %c2_168, %c0_169] : memref<1x10x10x8xf32, #tpu.memory_space<vmem>>, vector<1x8x8x8xf32>
    %226 = vector.extract_strided_slice %170 {offsets = [8, 0], sizes = [1, 8], strides = [1, 1]} : vector<9x8xf32> to vector<1x8xf32>
    %227 = vector.shape_cast %226 : vector<1x8xf32> to vector<1x1x1x8xf32>
    %228 = vector.broadcast %227 : vector<1x1x1x8xf32> to vector<1x8x8x8xf32>
    %229 = arith.mulf %225, %228 : vector<1x8x8x8xf32>
    %230 = arith.addf %224, %229 : vector<1x8x8x8xf32>
    %231 = vector.extract_strided_slice %1 {offsets = [1, 0, 0, 0], sizes = [1, 1, 8, 8], strides = [1, 1, 1, 1]} : vector<3x2x8x8xf32> to vector<1x1x8x8xf32>
    %232 = vector.shape_cast %231 : vector<1x1x8x8xf32> to vector<8x8xf32>
    %233 = vector.extract_strided_slice %2 {offsets = [1, 0, 0, 0], sizes = [1, 1, 1, 8], strides = [1, 1, 1, 1]} : vector<3x2x1x8xf32> to vector<1x1x1x8xf32>
    %234 = vector.shape_cast %233 : vector<1x1x1x8xf32> to vector<1x8xf32>
    %235 = vector.shape_cast %230 : vector<1x8x8x8xf32> to vector<64x8xf32>
    %cst_170 = arith.constant dense<0.000000e+00> : vector<64x8xf32>
    %236 = tpu.matmul %235, %232, %cst_170 {dimension_numbers = #tpu.dot_dimension_numbers<[1], [0], [0], [1], [0, 0, 1, 1], [], []>} : vector<64x8xf32>, vector<8x8xf32>, vector<64x8xf32> -> vector<64x8xf32>
    %237 = vector.broadcast %234 : vector<1x8xf32> to vector<64x8xf32>
    %238 = arith.addf %236, %237 : vector<64x8xf32>
    %239 = vector.shape_cast %238 : vector<64x8xf32> to vector<1x8x8x8xf32>
    %240 = vector.extract_strided_slice %0 {offsets = [1, 1, 0, 0], sizes = [1, 1, 9, 8], strides = [1, 1, 1, 1]} : vector<3x2x9x8xf32> to vector<1x1x9x8xf32>
    %241 = vector.shape_cast %240 : vector<1x1x9x8xf32> to vector<9x8xf32>
    %cst_171 = arith.constant 0.000000e+00 : f32
    %242 = vector.broadcast %cst_171 : f32 to vector<1x8x8x8xf32>
    %243 = arith.maximumf %239, %242 : vector<1x8x8x8xf32>
    %cst_172 = arith.constant 0.000000e+00 : f32
    %244 = vector.broadcast %cst_172 : f32 to vector<1x10x10x8xf32>
    %c0_173 = arith.constant 0 : index
    %c0_174 = arith.constant 0 : index
    %c0_175 = arith.constant 0 : index
    %c0_176 = arith.constant 0 : index
    %245 = vector.load %arg11[%c0_173, %c0_174, %c0_175, %c0_176] : memref<1x10x10x8xf32, #tpu.memory_space<vmem>>, vector<1x10x10x8xf32>
    tpu.vector_store %arg11[%c0_173, %c0_174, %c0_175, %c0_176], %244 {strides = array<i32>} : memref<1x10x10x8xf32, #tpu.memory_space<vmem>>, vector<1x10x10x8xf32>,
    %c0_177 = arith.constant 0 : index
    %c1_178 = arith.constant 1 : index
    %c1_179 = arith.constant 1 : index
    %c0_180 = arith.constant 0 : index
    %246 = vector.load %arg11[%c0_177, %c1_178, %c1_179, %c0_180] : memref<1x10x10x8xf32, #tpu.memory_space<vmem>>, vector<1x8x8x8xf32>
    tpu.vector_store %arg11[%c0_177, %c1_178, %c1_179, %c0_180], %243 {strides = array<i32>} : memref<1x10x10x8xf32, #tpu.memory_space<vmem>>, vector<1x8x8x8xf32>,
    %cst_181 = arith.constant 0.000000e+00 : f32
    %247 = vector.broadcast %cst_181 : f32 to vector<1x8x8x8xf32>
    %c0_182 = arith.constant 0 : index
    %c0_183 = arith.constant 0 : index
    %c0_184 = arith.constant 0 : index
    %c0_185 = arith.constant 0 : index
    %248 = vector.load %arg11[%c0_182, %c0_183, %c0_184, %c0_185] : memref<1x10x10x8xf32, #tpu.memory_space<vmem>>, vector<1x8x8x8xf32>
    %249 = vector.extract_strided_slice %241 {offsets = [0, 0], sizes = [1, 8], strides = [1, 1]} : vector<9x8xf32> to vector<1x8xf32>
    %250 = vector.shape_cast %249 : vector<1x8xf32> to vector<1x1x1x8xf32>
    %251 = vector.broadcast %250 : vector<1x1x1x8xf32> to vector<1x8x8x8xf32>
    %252 = arith.mulf %248, %251 : vector<1x8x8x8xf32>
    %253 = arith.addf %247, %252 : vector<1x8x8x8xf32>
    %c0_186 = arith.constant 0 : index
    %c0_187 = arith.constant 0 : index
    %c1_188 = arith.constant 1 : index
    %c0_189 = arith.constant 0 : index
    %254 = vector.load %arg11[%c0_186, %c0_187, %c1_188, %c0_189] : memref<1x10x10x8xf32, #tpu.memory_space<vmem>>, vector<1x8x8x8xf32>
    %255 = vector.extract_strided_slice %241 {offsets = [1, 0], sizes = [1, 8], strides = [1, 1]} : vector<9x8xf32> to vector<1x8xf32>
    %256 = vector.shape_cast %255 : vector<1x8xf32> to vector<1x1x1x8xf32>
    %257 = vector.broadcast %256 : vector<1x1x1x8xf32> to vector<1x8x8x8xf32>
    %258 = arith.mulf %254, %257 : vector<1x8x8x8xf32>
    %259 = arith.addf %253, %258 : vector<1x8x8x8xf32>
    %c0_190 = arith.constant 0 : index
    %c0_191 = arith.constant 0 : index
    %c2_192 = arith.constant 2 : index
    %c0_193 = arith.constant 0 : index
    %260 = vector.load %arg11[%c0_190, %c0_191, %c2_192, %c0_193] : memref<1x10x10x8xf32, #tpu.memory_space<vmem>>, vector<1x8x8x8xf32>
    %261 = vector.extract_strided_slice %241 {offsets = [2, 0], sizes = [1, 8], strides = [1, 1]} : vector<9x8xf32> to vector<1x8xf32>
    %262 = vector.shape_cast %261 : vector<1x8xf32> to vector<1x1x1x8xf32>
    %263 = vector.broadcast %262 : vector<1x1x1x8xf32> to vector<1x8x8x8xf32>
    %264 = arith.mulf %260, %263 : vector<1x8x8x8xf32>
    %265 = arith.addf %259, %264 : vector<1x8x8x8xf32>
    %c0_194 = arith.constant 0 : index
    %c1_195 = arith.constant 1 : index
    %c0_196 = arith.constant 0 : index
    %c0_197 = arith.constant 0 : index
    %266 = vector.load %arg11[%c0_194, %c1_195, %c0_196, %c0_197] : memref<1x10x10x8xf32, #tpu.memory_space<vmem>>, vector<1x8x8x8xf32>
    %267 = vector.extract_strided_slice %241 {offsets = [3, 0], sizes = [1, 8], strides = [1, 1]} : vector<9x8xf32> to vector<1x8xf32>
    %268 = vector.shape_cast %267 : vector<1x8xf32> to vector<1x1x1x8xf32>
    %269 = vector.broadcast %268 : vector<1x1x1x8xf32> to vector<1x8x8x8xf32>
    %270 = arith.mulf %266, %269 : vector<1x8x8x8xf32>
    %271 = arith.addf %265, %270 : vector<1x8x8x8xf32>
    %c0_198 = arith.constant 0 : index
    %c1_199 = arith.constant 1 : index
    %c1_200 = arith.constant 1 : index
    %c0_201 = arith.constant 0 : index
    %272 = vector.load %arg11[%c0_198, %c1_199, %c1_200, %c0_201] : memref<1x10x10x8xf32, #tpu.memory_space<vmem>>, vector<1x8x8x8xf32>
    %273 = vector.extract_strided_slice %241 {offsets = [4, 0], sizes = [1, 8], strides = [1, 1]} : vector<9x8xf32> to vector<1x8xf32>
    %274 = vector.shape_cast %273 : vector<1x8xf32> to vector<1x1x1x8xf32>
    %275 = vector.broadcast %274 : vector<1x1x1x8xf32> to vector<1x8x8x8xf32>
    %276 = arith.mulf %272, %275 : vector<1x8x8x8xf32>
    %277 = arith.addf %271, %276 : vector<1x8x8x8xf32>
    %c0_202 = arith.constant 0 : index
    %c1_203 = arith.constant 1 : index
    %c2_204 = arith.constant 2 : index
    %c0_205 = arith.constant 0 : index
    %278 = vector.load %arg11[%c0_202, %c1_203, %c2_204, %c0_205] : memref<1x10x10x8xf32, #tpu.memory_space<vmem>>, vector<1x8x8x8xf32>
    %279 = vector.extract_strided_slice %241 {offsets = [5, 0], sizes = [1, 8], strides = [1, 1]} : vector<9x8xf32> to vector<1x8xf32>
    %280 = vector.shape_cast %279 : vector<1x8xf32> to vector<1x1x1x8xf32>
    %281 = vector.broadcast %280 : vector<1x1x1x8xf32> to vector<1x8x8x8xf32>
    %282 = arith.mulf %278, %281 : vector<1x8x8x8xf32>
    %283 = arith.addf %277, %282 : vector<1x8x8x8xf32>
    %c0_206 = arith.constant 0 : index
    %c2_207 = arith.constant 2 : index
    %c0_208 = arith.constant 0 : index
    %c0_209 = arith.constant 0 : index
    %284 = vector.load %arg11[%c0_206, %c2_207, %c0_208, %c0_209] : memref<1x10x10x8xf32, #tpu.memory_space<vmem>>, vector<1x8x8x8xf32>
    %285 = vector.extract_strided_slice %241 {offsets = [6, 0], sizes = [1, 8], strides = [1, 1]} : vector<9x8xf32> to vector<1x8xf32>
    %286 = vector.shape_cast %285 : vector<1x8xf32> to vector<1x1x1x8xf32>
    %287 = vector.broadcast %286 : vector<1x1x1x8xf32> to vector<1x8x8x8xf32>
    %288 = arith.mulf %284, %287 : vector<1x8x8x8xf32>
    %289 = arith.addf %283, %288 : vector<1x8x8x8xf32>
    %c0_210 = arith.constant 0 : index
    %c2_211 = arith.constant 2 : index
    %c1_212 = arith.constant 1 : index
    %c0_213 = arith.constant 0 : index
    %290 = vector.load %arg11[%c0_210, %c2_211, %c1_212, %c0_213] : memref<1x10x10x8xf32, #tpu.memory_space<vmem>>, vector<1x8x8x8xf32>
    %291 = vector.extract_strided_slice %241 {offsets = [7, 0], sizes = [1, 8], strides = [1, 1]} : vector<9x8xf32> to vector<1x8xf32>
    %292 = vector.shape_cast %291 : vector<1x8xf32> to vector<1x1x1x8xf32>
    %293 = vector.broadcast %292 : vector<1x1x1x8xf32> to vector<1x8x8x8xf32>
    %294 = arith.mulf %290, %293 : vector<1x8x8x8xf32>
    %295 = arith.addf %289, %294 : vector<1x8x8x8xf32>
    %c0_214 = arith.constant 0 : index
    %c2_215 = arith.constant 2 : index
    %c2_216 = arith.constant 2 : index
    %c0_217 = arith.constant 0 : index
    %296 = vector.load %arg11[%c0_214, %c2_215, %c2_216, %c0_217] : memref<1x10x10x8xf32, #tpu.memory_space<vmem>>, vector<1x8x8x8xf32>
    %297 = vector.extract_strided_slice %241 {offsets = [8, 0], sizes = [1, 8], strides = [1, 1]} : vector<9x8xf32> to vector<1x8xf32>
    %298 = vector.shape_cast %297 : vector<1x8xf32> to vector<1x1x1x8xf32>
    %299 = vector.broadcast %298 : vector<1x1x1x8xf32> to vector<1x8x8x8xf32>
    %300 = arith.mulf %296, %299 : vector<1x8x8x8xf32>
    %301 = arith.addf %295, %300 : vector<1x8x8x8xf32>
    %302 = vector.extract_strided_slice %1 {offsets = [1, 1, 0, 0], sizes = [1, 1, 8, 8], strides = [1, 1, 1, 1]} : vector<3x2x8x8xf32> to vector<1x1x8x8xf32>
    %303 = vector.shape_cast %302 : vector<1x1x8x8xf32> to vector<8x8xf32>
    %304 = vector.extract_strided_slice %2 {offsets = [1, 1, 0, 0], sizes = [1, 1, 1, 8], strides = [1, 1, 1, 1]} : vector<3x2x1x8xf32> to vector<1x1x1x8xf32>
    %305 = vector.shape_cast %304 : vector<1x1x1x8xf32> to vector<1x8xf32>
    %306 = vector.shape_cast %301 : vector<1x8x8x8xf32> to vector<64x8xf32>
    %cst_218 = arith.constant dense<0.000000e+00> : vector<64x8xf32>
    %307 = tpu.matmul %306, %303, %cst_218 {dimension_numbers = #tpu.dot_dimension_numbers<[1], [0], [0], [1], [0, 0, 1, 1], [], []>} : vector<64x8xf32>, vector<8x8xf32>, vector<64x8xf32> -> vector<64x8xf32>
    %308 = vector.broadcast %305 : vector<1x8xf32> to vector<64x8xf32>
    %309 = arith.addf %307, %308 : vector<64x8xf32>
    %310 = vector.shape_cast %309 : vector<64x8xf32> to vector<1x8x8x8xf32>
    %311 = arith.addf %310, %25 : vector<1x8x8x8xf32>
    %cst_219 = arith.constant 0xFF800000 : f32
    %312 = vector.broadcast %cst_219 : f32 to vector<1x10x10x8xf32>
    %c0_220 = arith.constant 0 : index
    %c0_221 = arith.constant 0 : index
    %c0_222 = arith.constant 0 : index
    %c0_223 = arith.constant 0 : index
    %313 = vector.load %arg11[%c0_220, %c0_221, %c0_222, %c0_223] : memref<1x10x10x8xf32, #tpu.memory_space<vmem>>, vector<1x10x10x8xf32>
    tpu.vector_store %arg11[%c0_220, %c0_221, %c0_222, %c0_223], %312 {strides = array<i32>} : memref<1x10x10x8xf32, #tpu.memory_space<vmem>>, vector<1x10x10x8xf32>,
    %c0_224 = arith.constant 0 : index
    %c1_225 = arith.constant 1 : index
    %c1_226 = arith.constant 1 : index
    %c0_227 = arith.constant 0 : index
    %314 = vector.load %arg11[%c0_224, %c1_225, %c1_226, %c0_227] : memref<1x10x10x8xf32, #tpu.memory_space<vmem>>, vector<1x8x8x8xf32>
    tpu.vector_store %arg11[%c0_224, %c1_225, %c1_226, %c0_227], %25 {strides = array<i32>} : memref<1x10x10x8xf32, #tpu.memory_space<vmem>>, vector<1x8x8x8xf32>,
    %cst_228 = arith.constant 0xFF800000 : f32
    %315 = vector.broadcast %cst_228 : f32 to vector<1x8x8x8xf32>
    %c0_229 = arith.constant 0 : index
    %c0_230 = arith.constant 0 : index
    %c0_231 = arith.constant 0 : index
    %c0_232 = arith.constant 0 : index
    %316 = vector.load %arg11[%c0_229, %c0_230, %c0_231, %c0_232] : memref<1x10x10x8xf32, #tpu.memory_space<vmem>>, vector<1x8x8x8xf32>
    %317 = arith.maximumf %315, %316 : vector<1x8x8x8xf32>
    %c0_233 = arith.constant 0 : index
    %c0_234 = arith.constant 0 : index
    %c1_235 = arith.constant 1 : index
    %c0_236 = arith.constant 0 : index
    %318 = vector.load %arg11[%c0_233, %c0_234, %c1_235, %c0_236] : memref<1x10x10x8xf32, #tpu.memory_space<vmem>>, vector<1x8x8x8xf32>
    %319 = arith.maximumf %317, %318 : vector<1x8x8x8xf32>
    %c0_237 = arith.constant 0 : index
    %c0_238 = arith.constant 0 : index
    %c2_239 = arith.constant 2 : index
    %c0_240 = arith.constant 0 : index
    %320 = vector.load %arg11[%c0_237, %c0_238, %c2_239, %c0_240] : memref<1x10x10x8xf32, #tpu.memory_space<vmem>>, vector<1x8x8x8xf32>
    %321 = arith.maximumf %319, %320 : vector<1x8x8x8xf32>
    %c0_241 = arith.constant 0 : index
    %c1_242 = arith.constant 1 : index
    %c0_243 = arith.constant 0 : index
    %c0_244 = arith.constant 0 : index
    %322 = vector.load %arg11[%c0_241, %c1_242, %c0_243, %c0_244] : memref<1x10x10x8xf32, #tpu.memory_space<vmem>>, vector<1x8x8x8xf32>
    %323 = arith.maximumf %321, %322 : vector<1x8x8x8xf32>
    %c0_245 = arith.constant 0 : index
    %c1_246 = arith.constant 1 : index
    %c1_247 = arith.constant 1 : index
    %c0_248 = arith.constant 0 : index
    %324 = vector.load %arg11[%c0_245, %c1_246, %c1_247, %c0_248] : memref<1x10x10x8xf32, #tpu.memory_space<vmem>>, vector<1x8x8x8xf32>
    %325 = arith.maximumf %323, %324 : vector<1x8x8x8xf32>
    %c0_249 = arith.constant 0 : index
    %c1_250 = arith.constant 1 : index
    %c2_251 = arith.constant 2 : index
    %c0_252 = arith.constant 0 : index
    %326 = vector.load %arg11[%c0_249, %c1_250, %c2_251, %c0_252] : memref<1x10x10x8xf32, #tpu.memory_space<vmem>>, vector<1x8x8x8xf32>
    %327 = arith.maximumf %325, %326 : vector<1x8x8x8xf32>
    %c0_253 = arith.constant 0 : index
    %c2_254 = arith.constant 2 : index
    %c0_255 = arith.constant 0 : index
    %c0_256 = arith.constant 0 : index
    %328 = vector.load %arg11[%c0_253, %c2_254, %c0_255, %c0_256] : memref<1x10x10x8xf32, #tpu.memory_space<vmem>>, vector<1x8x8x8xf32>
    %329 = arith.maximumf %327, %328 : vector<1x8x8x8xf32>
    %c0_257 = arith.constant 0 : index
    %c2_258 = arith.constant 2 : index
    %c1_259 = arith.constant 1 : index
    %c0_260 = arith.constant 0 : index
    %330 = vector.load %arg11[%c0_257, %c2_258, %c1_259, %c0_260] : memref<1x10x10x8xf32, #tpu.memory_space<vmem>>, vector<1x8x8x8xf32>
    %331 = arith.maximumf %329, %330 : vector<1x8x8x8xf32>
    %c0_261 = arith.constant 0 : index
    %c2_262 = arith.constant 2 : index
    %c2_263 = arith.constant 2 : index
    %c0_264 = arith.constant 0 : index
    %332 = vector.load %arg11[%c0_261, %c2_262, %c2_263, %c0_264] : memref<1x10x10x8xf32, #tpu.memory_space<vmem>>, vector<1x8x8x8xf32>
    %333 = arith.maximumf %331, %332 : vector<1x8x8x8xf32>
    %334 = arith.addf %333, %14 : vector<1x8x8x8xf32>
    %cst_265 = arith.constant 0.000000e+00 : f32
    %335 = vector.broadcast %cst_265 : f32 to vector<1x10x10x8xf32>
    %c0_266 = arith.constant 0 : index
    %c0_267 = arith.constant 0 : index
    %c0_268 = arith.constant 0 : index
    %c0_269 = arith.constant 0 : index
    %336 = vector.load %arg11[%c0_266, %c0_267, %c0_268, %c0_269] : memref<1x10x10x8xf32, #tpu.memory_space<vmem>>, vector<1x10x10x8xf32>
    tpu.vector_store %arg11[%c0_266, %c0_267, %c0_268, %c0_269], %335 {strides = array<i32>} : memref<1x10x10x8xf32, #tpu.memory_space<vmem>>, vector<1x10x10x8xf32>,
    %c0_270 = arith.constant 0 : index
    %c1_271 = arith.constant 1 : index
    %c1_272 = arith.constant 1 : index
    %c0_273 = arith.constant 0 : index
    %337 = vector.load %arg11[%c0_270, %c1_271, %c1_272, %c0_273] : memref<1x10x10x8xf32, #tpu.memory_space<vmem>>, vector<1x8x8x8xf32>
    tpu.vector_store %arg11[%c0_270, %c1_271, %c1_272, %c0_273], %25 {strides = array<i32>} : memref<1x10x10x8xf32, #tpu.memory_space<vmem>>, vector<1x8x8x8xf32>,
    %cst_274 = arith.constant 0.000000e+00 : f32
    %338 = vector.broadcast %cst_274 : f32 to vector<1x8x8x8xf32>
    %c0_275 = arith.constant 0 : index
    %c0_276 = arith.constant 0 : index
    %c0_277 = arith.constant 0 : index
    %c0_278 = arith.constant 0 : index
    %339 = vector.load %arg11[%c0_275, %c0_276, %c0_277, %c0_278] : memref<1x10x10x8xf32, #tpu.memory_space<vmem>>, vector<1x8x8x8xf32>
    %340 = arith.addf %338, %339 : vector<1x8x8x8xf32>
    %c0_279 = arith.constant 0 : index
    %c0_280 = arith.constant 0 : index
    %c1_281 = arith.constant 1 : index
    %c0_282 = arith.constant 0 : index
    %341 = vector.load %arg11[%c0_279, %c0_280, %c1_281, %c0_282] : memref<1x10x10x8xf32, #tpu.memory_space<vmem>>, vector<1x8x8x8xf32>
    %342 = arith.addf %340, %341 : vector<1x8x8x8xf32>
    %c0_283 = arith.constant 0 : index
    %c0_284 = arith.constant 0 : index
    %c2_285 = arith.constant 2 : index
    %c0_286 = arith.constant 0 : index
    %343 = vector.load %arg11[%c0_283, %c0_284, %c2_285, %c0_286] : memref<1x10x10x8xf32, #tpu.memory_space<vmem>>, vector<1x8x8x8xf32>
    %344 = arith.addf %342, %343 : vector<1x8x8x8xf32>
    %c0_287 = arith.constant 0 : index
    %c1_288 = arith.constant 1 : index
    %c0_289 = arith.constant 0 : index
    %c0_290 = arith.constant 0 : index
    %345 = vector.load %arg11[%c0_287, %c1_288, %c0_289, %c0_290] : memref<1x10x10x8xf32, #tpu.memory_space<vmem>>, vector<1x8x8x8xf32>
    %346 = arith.addf %344, %345 : vector<1x8x8x8xf32>
    %c0_291 = arith.constant 0 : index
    %c1_292 = arith.constant 1 : index
    %c1_293 = arith.constant 1 : index
    %c0_294 = arith.constant 0 : index
    %347 = vector.load %arg11[%c0_291, %c1_292, %c1_293, %c0_294] : memref<1x10x10x8xf32, #tpu.memory_space<vmem>>, vector<1x8x8x8xf32>
    %348 = arith.addf %346, %347 : vector<1x8x8x8xf32>
    %c0_295 = arith.constant 0 : index
    %c1_296 = arith.constant 1 : index
    %c2_297 = arith.constant 2 : index
    %c0_298 = arith.constant 0 : index
    %349 = vector.load %arg11[%c0_295, %c1_296, %c2_297, %c0_298] : memref<1x10x10x8xf32, #tpu.memory_space<vmem>>, vector<1x8x8x8xf32>
    %350 = arith.addf %348, %349 : vector<1x8x8x8xf32>
    %c0_299 = arith.constant 0 : index
    %c2_300 = arith.constant 2 : index
    %c0_301 = arith.constant 0 : index
    %c0_302 = arith.constant 0 : index
    %351 = vector.load %arg11[%c0_299, %c2_300, %c0_301, %c0_302] : memref<1x10x10x8xf32, #tpu.memory_space<vmem>>, vector<1x8x8x8xf32>
    %352 = arith.addf %350, %351 : vector<1x8x8x8xf32>
    %c0_303 = arith.constant 0 : index
    %c2_304 = arith.constant 2 : index
    %c1_305 = arith.constant 1 : index
    %c0_306 = arith.constant 0 : index
    %353 = vector.load %arg11[%c0_303, %c2_304, %c1_305, %c0_306] : memref<1x10x10x8xf32, #tpu.memory_space<vmem>>, vector<1x8x8x8xf32>
    %354 = arith.addf %352, %353 : vector<1x8x8x8xf32>
    %c0_307 = arith.constant 0 : index
    %c2_308 = arith.constant 2 : index
    %c2_309 = arith.constant 2 : index
    %c0_310 = arith.constant 0 : index
    %355 = vector.load %arg11[%c0_307, %c2_308, %c2_309, %c0_310] : memref<1x10x10x8xf32, #tpu.memory_space<vmem>>, vector<1x8x8x8xf32>
    %356 = arith.addf %354, %355 : vector<1x8x8x8xf32>
    %c0_311 = arith.constant 0 : index
    %c0_312 = arith.constant 0 : index
    %c0_313 = arith.constant 0 : index
    %c0_314 = arith.constant 0 : index
    %357 = vector.load %arg9[%c0_311, %c0_312, %c0_313, %c0_314] : memref<1x8x8x1xf32, #tpu.memory_space<vmem>>, vector<1x8x8x1xf32>
    %358 = vector.broadcast %357 : vector<1x8x8x1xf32> to vector<1x8x8x8xf32>
    %359 = arith.mulf %356, %358 : vector<1x8x8x8xf32>
    %360 = vector.extract_strided_slice %0 {offsets = [2, 0, 0, 0], sizes = [1, 1, 9, 8], strides = [1, 1, 1, 1]} : vector<3x2x9x8xf32> to vector<1x1x9x8xf32>
    %361 = vector.shape_cast %360 : vector<1x1x9x8xf32> to vector<9x8xf32>
    %cst_315 = arith.constant 0.000000e+00 : f32
    %362 = vector.broadcast %cst_315 : f32 to vector<1x8x8x8xf32>
    %363 = arith.maximumf %168, %362 : vector<1x8x8x8xf32>
    %cst_316 = arith.constant 0.000000e+00 : f32
    %364 = vector.broadcast %cst_316 : f32 to vector<1x10x10x8xf32>
    %c0_317 = arith.constant 0 : index
    %c0_318 = arith.constant 0 : index
    %c0_319 = arith.constant 0 : index
    %c0_320 = arith.constant 0 : index
    %365 = vector.load %arg11[%c0_317, %c0_318, %c0_319, %c0_320] : memref<1x10x10x8xf32, #tpu.memory_space<vmem>>, vector<1x10x10x8xf32>
    tpu.vector_store %arg11[%c0_317, %c0_318, %c0_319, %c0_320], %364 {strides = array<i32>} : memref<1x10x10x8xf32, #tpu.memory_space<vmem>>, vector<1x10x10x8xf32>,
    %c0_321 = arith.constant 0 : index
    %c1_322 = arith.constant 1 : index
    %c1_323 = arith.constant 1 : index
    %c0_324 = arith.constant 0 : index
    %366 = vector.load %arg11[%c0_321, %c1_322, %c1_323, %c0_324] : memref<1x10x10x8xf32, #tpu.memory_space<vmem>>, vector<1x8x8x8xf32>
    tpu.vector_store %arg11[%c0_321, %c1_322, %c1_323, %c0_324], %363 {strides = array<i32>} : memref<1x10x10x8xf32, #tpu.memory_space<vmem>>, vector<1x8x8x8xf32>,
    %cst_325 = arith.constant 0.000000e+00 : f32
    %367 = vector.broadcast %cst_325 : f32 to vector<1x8x8x8xf32>
    %c0_326 = arith.constant 0 : index
    %c0_327 = arith.constant 0 : index
    %c0_328 = arith.constant 0 : index
    %c0_329 = arith.constant 0 : index
    %368 = vector.load %arg11[%c0_326, %c0_327, %c0_328, %c0_329] : memref<1x10x10x8xf32, #tpu.memory_space<vmem>>, vector<1x8x8x8xf32>
    %369 = vector.extract_strided_slice %361 {offsets = [0, 0], sizes = [1, 8], strides = [1, 1]} : vector<9x8xf32> to vector<1x8xf32>
    %370 = vector.shape_cast %369 : vector<1x8xf32> to vector<1x1x1x8xf32>
    %371 = vector.broadcast %370 : vector<1x1x1x8xf32> to vector<1x8x8x8xf32>
    %372 = arith.mulf %368, %371 : vector<1x8x8x8xf32>
    %373 = arith.addf %367, %372 : vector<1x8x8x8xf32>
    %c0_330 = arith.constant 0 : index
    %c0_331 = arith.constant 0 : index
    %c1_332 = arith.constant 1 : index
    %c0_333 = arith.constant 0 : index
    %374 = vector.load %arg11[%c0_330, %c0_331, %c1_332, %c0_333] : memref<1x10x10x8xf32, #tpu.memory_space<vmem>>, vector<1x8x8x8xf32>
    %375 = vector.extract_strided_slice %361 {offsets = [1, 0], sizes = [1, 8], strides = [1, 1]} : vector<9x8xf32> to vector<1x8xf32>
    %376 = vector.shape_cast %375 : vector<1x8xf32> to vector<1x1x1x8xf32>
    %377 = vector.broadcast %376 : vector<1x1x1x8xf32> to vector<1x8x8x8xf32>
    %378 = arith.mulf %374, %377 : vector<1x8x8x8xf32>
    %379 = arith.addf %373, %378 : vector<1x8x8x8xf32>
    %c0_334 = arith.constant 0 : index
    %c0_335 = arith.constant 0 : index
    %c2_336 = arith.constant 2 : index
    %c0_337 = arith.constant 0 : index
    %380 = vector.load %arg11[%c0_334, %c0_335, %c2_336, %c0_337] : memref<1x10x10x8xf32, #tpu.memory_space<vmem>>, vector<1x8x8x8xf32>
    %381 = vector.extract_strided_slice %361 {offsets = [2, 0], sizes = [1, 8], strides = [1, 1]} : vector<9x8xf32> to vector<1x8xf32>
    %382 = vector.shape_cast %381 : vector<1x8xf32> to vector<1x1x1x8xf32>
    %383 = vector.broadcast %382 : vector<1x1x1x8xf32> to vector<1x8x8x8xf32>
    %384 = arith.mulf %380, %383 : vector<1x8x8x8xf32>
    %385 = arith.addf %379, %384 : vector<1x8x8x8xf32>
    %c0_338 = arith.constant 0 : index
    %c1_339 = arith.constant 1 : index
    %c0_340 = arith.constant 0 : index
    %c0_341 = arith.constant 0 : index
    %386 = vector.load %arg11[%c0_338, %c1_339, %c0_340, %c0_341] : memref<1x10x10x8xf32, #tpu.memory_space<vmem>>, vector<1x8x8x8xf32>
    %387 = vector.extract_strided_slice %361 {offsets = [3, 0], sizes = [1, 8], strides = [1, 1]} : vector<9x8xf32> to vector<1x8xf32>
    %388 = vector.shape_cast %387 : vector<1x8xf32> to vector<1x1x1x8xf32>
    %389 = vector.broadcast %388 : vector<1x1x1x8xf32> to vector<1x8x8x8xf32>
    %390 = arith.mulf %386, %389 : vector<1x8x8x8xf32>
    %391 = arith.addf %385, %390 : vector<1x8x8x8xf32>
    %c0_342 = arith.constant 0 : index
    %c1_343 = arith.constant 1 : index
    %c1_344 = arith.constant 1 : index
    %c0_345 = arith.constant 0 : index
    %392 = vector.load %arg11[%c0_342, %c1_343, %c1_344, %c0_345] : memref<1x10x10x8xf32, #tpu.memory_space<vmem>>, vector<1x8x8x8xf32>
    %393 = vector.extract_strided_slice %361 {offsets = [4, 0], sizes = [1, 8], strides = [1, 1]} : vector<9x8xf32> to vector<1x8xf32>
    %394 = vector.shape_cast %393 : vector<1x8xf32> to vector<1x1x1x8xf32>
    %395 = vector.broadcast %394 : vector<1x1x1x8xf32> to vector<1x8x8x8xf32>
    %396 = arith.mulf %392, %395 : vector<1x8x8x8xf32>
    %397 = arith.addf %391, %396 : vector<1x8x8x8xf32>
    %c0_346 = arith.constant 0 : index
    %c1_347 = arith.constant 1 : index
    %c2_348 = arith.constant 2 : index
    %c0_349 = arith.constant 0 : index
    %398 = vector.load %arg11[%c0_346, %c1_347, %c2_348, %c0_349] : memref<1x10x10x8xf32, #tpu.memory_space<vmem>>, vector<1x8x8x8xf32>
    %399 = vector.extract_strided_slice %361 {offsets = [5, 0], sizes = [1, 8], strides = [1, 1]} : vector<9x8xf32> to vector<1x8xf32>
    %400 = vector.shape_cast %399 : vector<1x8xf32> to vector<1x1x1x8xf32>
    %401 = vector.broadcast %400 : vector<1x1x1x8xf32> to vector<1x8x8x8xf32>
    %402 = arith.mulf %398, %401 : vector<1x8x8x8xf32>
    %403 = arith.addf %397, %402 : vector<1x8x8x8xf32>
    %c0_350 = arith.constant 0 : index
    %c2_351 = arith.constant 2 : index
    %c0_352 = arith.constant 0 : index
    %c0_353 = arith.constant 0 : index
    %404 = vector.load %arg11[%c0_350, %c2_351, %c0_352, %c0_353] : memref<1x10x10x8xf32, #tpu.memory_space<vmem>>, vector<1x8x8x8xf32>
    %405 = vector.extract_strided_slice %361 {offsets = [6, 0], sizes = [1, 8], strides = [1, 1]} : vector<9x8xf32> to vector<1x8xf32>
    %406 = vector.shape_cast %405 : vector<1x8xf32> to vector<1x1x1x8xf32>
    %407 = vector.broadcast %406 : vector<1x1x1x8xf32> to vector<1x8x8x8xf32>
    %408 = arith.mulf %404, %407 : vector<1x8x8x8xf32>
    %409 = arith.addf %403, %408 : vector<1x8x8x8xf32>
    %c0_354 = arith.constant 0 : index
    %c2_355 = arith.constant 2 : index
    %c1_356 = arith.constant 1 : index
    %c0_357 = arith.constant 0 : index
    %410 = vector.load %arg11[%c0_354, %c2_355, %c1_356, %c0_357] : memref<1x10x10x8xf32, #tpu.memory_space<vmem>>, vector<1x8x8x8xf32>
    %411 = vector.extract_strided_slice %361 {offsets = [7, 0], sizes = [1, 8], strides = [1, 1]} : vector<9x8xf32> to vector<1x8xf32>
    %412 = vector.shape_cast %411 : vector<1x8xf32> to vector<1x1x1x8xf32>
    %413 = vector.broadcast %412 : vector<1x1x1x8xf32> to vector<1x8x8x8xf32>
    %414 = arith.mulf %410, %413 : vector<1x8x8x8xf32>
    %415 = arith.addf %409, %414 : vector<1x8x8x8xf32>
    %c0_358 = arith.constant 0 : index
    %c2_359 = arith.constant 2 : index
    %c2_360 = arith.constant 2 : index
    %c0_361 = arith.constant 0 : index
    %416 = vector.load %arg11[%c0_358, %c2_359, %c2_360, %c0_361] : memref<1x10x10x8xf32, #tpu.memory_space<vmem>>, vector<1x8x8x8xf32>
    %417 = vector.extract_strided_slice %361 {offsets = [8, 0], sizes = [1, 8], strides = [1, 1]} : vector<9x8xf32> to vector<1x8xf32>
    %418 = vector.shape_cast %417 : vector<1x8xf32> to vector<1x1x1x8xf32>
    %419 = vector.broadcast %418 : vector<1x1x1x8xf32> to vector<1x8x8x8xf32>
    %420 = arith.mulf %416, %419 : vector<1x8x8x8xf32>
    %421 = arith.addf %415, %420 : vector<1x8x8x8xf32>
    %422 = vector.extract_strided_slice %1 {offsets = [2, 0, 0, 0], sizes = [1, 1, 8, 8], strides = [1, 1, 1, 1]} : vector<3x2x8x8xf32> to vector<1x1x8x8xf32>
    %423 = vector.shape_cast %422 : vector<1x1x8x8xf32> to vector<8x8xf32>
    %424 = vector.extract_strided_slice %2 {offsets = [2, 0, 0, 0], sizes = [1, 1, 1, 8], strides = [1, 1, 1, 1]} : vector<3x2x1x8xf32> to vector<1x1x1x8xf32>
    %425 = vector.shape_cast %424 : vector<1x1x1x8xf32> to vector<1x8xf32>
    %426 = vector.shape_cast %421 : vector<1x8x8x8xf32> to vector<64x8xf32>
    %cst_362 = arith.constant dense<0.000000e+00> : vector<64x8xf32>
    %427 = tpu.matmul %426, %423, %cst_362 {dimension_numbers = #tpu.dot_dimension_numbers<[1], [0], [0], [1], [0, 0, 1, 1], [], []>} : vector<64x8xf32>, vector<8x8xf32>, vector<64x8xf32> -> vector<64x8xf32>
    %428 = vector.broadcast %425 : vector<1x8xf32> to vector<64x8xf32>
    %429 = arith.addf %427, %428 : vector<64x8xf32>
    %430 = vector.shape_cast %429 : vector<64x8xf32> to vector<1x8x8x8xf32>
    %431 = vector.extract_strided_slice %0 {offsets = [2, 1, 0, 0], sizes = [1, 1, 9, 8], strides = [1, 1, 1, 1]} : vector<3x2x9x8xf32> to vector<1x1x9x8xf32>
    %432 = vector.shape_cast %431 : vector<1x1x9x8xf32> to vector<9x8xf32>
    %cst_363 = arith.constant 0.000000e+00 : f32
    %433 = vector.broadcast %cst_363 : f32 to vector<1x8x8x8xf32>
    %434 = arith.maximumf %430, %433 : vector<1x8x8x8xf32>
    %cst_364 = arith.constant 0.000000e+00 : f32
    %435 = vector.broadcast %cst_364 : f32 to vector<1x10x10x8xf32>
    %c0_365 = arith.constant 0 : index
    %c0_366 = arith.constant 0 : index
    %c0_367 = arith.constant 0 : index
    %c0_368 = arith.constant 0 : index
    %436 = vector.load %arg11[%c0_365, %c0_366, %c0_367, %c0_368] : memref<1x10x10x8xf32, #tpu.memory_space<vmem>>, vector<1x10x10x8xf32>
    tpu.vector_store %arg11[%c0_365, %c0_366, %c0_367, %c0_368], %435 {strides = array<i32>} : memref<1x10x10x8xf32, #tpu.memory_space<vmem>>, vector<1x10x10x8xf32>,
    %c0_369 = arith.constant 0 : index
    %c1_370 = arith.constant 1 : index
    %c1_371 = arith.constant 1 : index
    %c0_372 = arith.constant 0 : index
    %437 = vector.load %arg11[%c0_369, %c1_370, %c1_371, %c0_372] : memref<1x10x10x8xf32, #tpu.memory_space<vmem>>, vector<1x8x8x8xf32>
    tpu.vector_store %arg11[%c0_369, %c1_370, %c1_371, %c0_372], %434 {strides = array<i32>} : memref<1x10x10x8xf32, #tpu.memory_space<vmem>>, vector<1x8x8x8xf32>,
    %cst_373 = arith.constant 0.000000e+00 : f32
    %438 = vector.broadcast %cst_373 : f32 to vector<1x8x8x8xf32>
    %c0_374 = arith.constant 0 : index
    %c0_375 = arith.constant 0 : index
    %c0_376 = arith.constant 0 : index
    %c0_377 = arith.constant 0 : index
    %439 = vector.load %arg11[%c0_374, %c0_375, %c0_376, %c0_377] : memref<1x10x10x8xf32, #tpu.memory_space<vmem>>, vector<1x8x8x8xf32>
    %440 = vector.extract_strided_slice %432 {offsets = [0, 0], sizes = [1, 8], strides = [1, 1]} : vector<9x8xf32> to vector<1x8xf32>
    %441 = vector.shape_cast %440 : vector<1x8xf32> to vector<1x1x1x8xf32>
    %442 = vector.broadcast %441 : vector<1x1x1x8xf32> to vector<1x8x8x8xf32>
    %443 = arith.mulf %439, %442 : vector<1x8x8x8xf32>
    %444 = arith.addf %438, %443 : vector<1x8x8x8xf32>
    %c0_378 = arith.constant 0 : index
    %c0_379 = arith.constant 0 : index
    %c1_380 = arith.constant 1 : index
    %c0_381 = arith.constant 0 : index
    %445 = vector.load %arg11[%c0_378, %c0_379, %c1_380, %c0_381] : memref<1x10x10x8xf32, #tpu.memory_space<vmem>>, vector<1x8x8x8xf32>
    %446 = vector.extract_strided_slice %432 {offsets = [1, 0], sizes = [1, 8], strides = [1, 1]} : vector<9x8xf32> to vector<1x8xf32>
    %447 = vector.shape_cast %446 : vector<1x8xf32> to vector<1x1x1x8xf32>
    %448 = vector.broadcast %447 : vector<1x1x1x8xf32> to vector<1x8x8x8xf32>
    %449 = arith.mulf %445, %448 : vector<1x8x8x8xf32>
    %450 = arith.addf %444, %449 : vector<1x8x8x8xf32>
    %c0_382 = arith.constant 0 : index
    %c0_383 = arith.constant 0 : index
    %c2_384 = arith.constant 2 : index
    %c0_385 = arith.constant 0 : index
    %451 = vector.load %arg11[%c0_382, %c0_383, %c2_384, %c0_385] : memref<1x10x10x8xf32, #tpu.memory_space<vmem>>, vector<1x8x8x8xf32>
    %452 = vector.extract_strided_slice %432 {offsets = [2, 0], sizes = [1, 8], strides = [1, 1]} : vector<9x8xf32> to vector<1x8xf32>
    %453 = vector.shape_cast %452 : vector<1x8xf32> to vector<1x1x1x8xf32>
    %454 = vector.broadcast %453 : vector<1x1x1x8xf32> to vector<1x8x8x8xf32>
    %455 = arith.mulf %451, %454 : vector<1x8x8x8xf32>
    %456 = arith.addf %450, %455 : vector<1x8x8x8xf32>
    %c0_386 = arith.constant 0 : index
    %c1_387 = arith.constant 1 : index
    %c0_388 = arith.constant 0 : index
    %c0_389 = arith.constant 0 : index
    %457 = vector.load %arg11[%c0_386, %c1_387, %c0_388, %c0_389] : memref<1x10x10x8xf32, #tpu.memory_space<vmem>>, vector<1x8x8x8xf32>
    %458 = vector.extract_strided_slice %432 {offsets = [3, 0], sizes = [1, 8], strides = [1, 1]} : vector<9x8xf32> to vector<1x8xf32>
    %459 = vector.shape_cast %458 : vector<1x8xf32> to vector<1x1x1x8xf32>
    %460 = vector.broadcast %459 : vector<1x1x1x8xf32> to vector<1x8x8x8xf32>
    %461 = arith.mulf %457, %460 : vector<1x8x8x8xf32>
    %462 = arith.addf %456, %461 : vector<1x8x8x8xf32>
    %c0_390 = arith.constant 0 : index
    %c1_391 = arith.constant 1 : index
    %c1_392 = arith.constant 1 : index
    %c0_393 = arith.constant 0 : index
    %463 = vector.load %arg11[%c0_390, %c1_391, %c1_392, %c0_393] : memref<1x10x10x8xf32, #tpu.memory_space<vmem>>, vector<1x8x8x8xf32>
    %464 = vector.extract_strided_slice %432 {offsets = [4, 0], sizes = [1, 8], strides = [1, 1]} : vector<9x8xf32> to vector<1x8xf32>
    %465 = vector.shape_cast %464 : vector<1x8xf32> to vector<1x1x1x8xf32>
    %466 = vector.broadcast %465 : vector<1x1x1x8xf32> to vector<1x8x8x8xf32>
    %467 = arith.mulf %463, %466 : vector<1x8x8x8xf32>
    %468 = arith.addf %462, %467 : vector<1x8x8x8xf32>
    %c0_394 = arith.constant 0 : index
    %c1_395 = arith.constant 1 : index
    %c2_396 = arith.constant 2 : index
    %c0_397 = arith.constant 0 : index
    %469 = vector.load %arg11[%c0_394, %c1_395, %c2_396, %c0_397] : memref<1x10x10x8xf32, #tpu.memory_space<vmem>>, vector<1x8x8x8xf32>
    %470 = vector.extract_strided_slice %432 {offsets = [5, 0], sizes = [1, 8], strides = [1, 1]} : vector<9x8xf32> to vector<1x8xf32>
    %471 = vector.shape_cast %470 : vector<1x8xf32> to vector<1x1x1x8xf32>
    %472 = vector.broadcast %471 : vector<1x1x1x8xf32> to vector<1x8x8x8xf32>
    %473 = arith.mulf %469, %472 : vector<1x8x8x8xf32>
    %474 = arith.addf %468, %473 : vector<1x8x8x8xf32>
    %c0_398 = arith.constant 0 : index
    %c2_399 = arith.constant 2 : index
    %c0_400 = arith.constant 0 : index
    %c0_401 = arith.constant 0 : index
    %475 = vector.load %arg11[%c0_398, %c2_399, %c0_400, %c0_401] : memref<1x10x10x8xf32, #tpu.memory_space<vmem>>, vector<1x8x8x8xf32>
    %476 = vector.extract_strided_slice %432 {offsets = [6, 0], sizes = [1, 8], strides = [1, 1]} : vector<9x8xf32> to vector<1x8xf32>
    %477 = vector.shape_cast %476 : vector<1x8xf32> to vector<1x1x1x8xf32>
    %478 = vector.broadcast %477 : vector<1x1x1x8xf32> to vector<1x8x8x8xf32>
    %479 = arith.mulf %475, %478 : vector<1x8x8x8xf32>
    %480 = arith.addf %474, %479 : vector<1x8x8x8xf32>
    %c0_402 = arith.constant 0 : index
    %c2_403 = arith.constant 2 : index
    %c1_404 = arith.constant 1 : index
    %c0_405 = arith.constant 0 : index
    %481 = vector.load %arg11[%c0_402, %c2_403, %c1_404, %c0_405] : memref<1x10x10x8xf32, #tpu.memory_space<vmem>>, vector<1x8x8x8xf32>
    %482 = vector.extract_strided_slice %432 {offsets = [7, 0], sizes = [1, 8], strides = [1, 1]} : vector<9x8xf32> to vector<1x8xf32>
    %483 = vector.shape_cast %482 : vector<1x8xf32> to vector<1x1x1x8xf32>
    %484 = vector.broadcast %483 : vector<1x1x1x8xf32> to vector<1x8x8x8xf32>
    %485 = arith.mulf %481, %484 : vector<1x8x8x8xf32>
    %486 = arith.addf %480, %485 : vector<1x8x8x8xf32>
    %c0_406 = arith.constant 0 : index
    %c2_407 = arith.constant 2 : index
    %c2_408 = arith.constant 2 : index
    %c0_409 = arith.constant 0 : index
    %487 = vector.load %arg11[%c0_406, %c2_407, %c2_408, %c0_409] : memref<1x10x10x8xf32, #tpu.memory_space<vmem>>, vector<1x8x8x8xf32>
    %488 = vector.extract_strided_slice %432 {offsets = [8, 0], sizes = [1, 8], strides = [1, 1]} : vector<9x8xf32> to vector<1x8xf32>
    %489 = vector.shape_cast %488 : vector<1x8xf32> to vector<1x1x1x8xf32>
    %490 = vector.broadcast %489 : vector<1x1x1x8xf32> to vector<1x8x8x8xf32>
    %491 = arith.mulf %487, %490 : vector<1x8x8x8xf32>
    %492 = arith.addf %486, %491 : vector<1x8x8x8xf32>
    %493 = vector.extract_strided_slice %1 {offsets = [2, 1, 0, 0], sizes = [1, 1, 8, 8], strides = [1, 1, 1, 1]} : vector<3x2x8x8xf32> to vector<1x1x8x8xf32>
    %494 = vector.shape_cast %493 : vector<1x1x8x8xf32> to vector<8x8xf32>
    %495 = vector.extract_strided_slice %2 {offsets = [2, 1, 0, 0], sizes = [1, 1, 1, 8], strides = [1, 1, 1, 1]} : vector<3x2x1x8xf32> to vector<1x1x1x8xf32>
    %496 = vector.shape_cast %495 : vector<1x1x1x8xf32> to vector<1x8xf32>
    %497 = vector.shape_cast %492 : vector<1x8x8x8xf32> to vector<64x8xf32>
    %cst_410 = arith.constant dense<0.000000e+00> : vector<64x8xf32>
    %498 = tpu.matmul %497, %494, %cst_410 {dimension_numbers = #tpu.dot_dimension_numbers<[1], [0], [0], [1], [0, 0, 1, 1], [], []>} : vector<64x8xf32>, vector<8x8xf32>, vector<64x8xf32> -> vector<64x8xf32>
    %499 = vector.broadcast %496 : vector<1x8xf32> to vector<64x8xf32>
    %500 = arith.addf %498, %499 : vector<64x8xf32>
    %501 = vector.shape_cast %500 : vector<64x8xf32> to vector<1x8x8x8xf32>
    %502 = arith.addf %359, %501 : vector<1x8x8x8xf32>
    %c0_411 = arith.constant 0 : index
    %c0_412 = arith.constant 0 : index
    %c0_413 = arith.constant 0 : index
    %c0_414 = arith.constant 0 : index
    %503 = vector.load %arg10[%c0_411, %c0_412, %c0_413, %c0_414] : memref<1x8x8x32xf32, #tpu.memory_space<vmem>>, vector<1x8x8x8xf32>
    tpu.vector_store %arg10[%c0_411, %c0_412, %c0_413, %c0_414], %168 {strides = array<i32>} : memref<1x8x8x32xf32, #tpu.memory_space<vmem>>, vector<1x8x8x8xf32>,
    %c0_415 = arith.constant 0 : index
    %c0_416 = arith.constant 0 : index
    %c0_417 = arith.constant 0 : index
    %c8 = arith.constant 8 : index
    %504 = vector.load %arg10[%c0_415, %c0_416, %c0_417, %c8] : memref<1x8x8x32xf32, #tpu.memory_space<vmem>>, vector<1x8x8x8xf32>
    tpu.vector_store %arg10[%c0_415, %c0_416, %c0_417, %c8], %311 {strides = array<i32>} : memref<1x8x8x32xf32, #tpu.memory_space<vmem>>, vector<1x8x8x8xf32>,
    %c0_418 = arith.constant 0 : index
    %c0_419 = arith.constant 0 : index
    %c0_420 = arith.constant 0 : index
    %c16 = arith.constant 16 : index
    %505 = vector.load %arg10[%c0_418, %c0_419, %c0_420, %c16] : memref<1x8x8x32xf32, #tpu.memory_space<vmem>>, vector<1x8x8x8xf32>
    tpu.vector_store %arg10[%c0_418, %c0_419, %c0_420, %c16], %334 {strides = array<i32>} : memref<1x8x8x32xf32, #tpu.memory_space<vmem>>, vector<1x8x8x8xf32>,
    %c0_421 = arith.constant 0 : index
    %c0_422 = arith.constant 0 : index
    %c0_423 = arith.constant 0 : index
    %c24 = arith.constant 24 : index
    %506 = vector.load %arg10[%c0_421, %c0_422, %c0_423, %c24] : memref<1x8x8x32xf32, #tpu.memory_space<vmem>>, vector<1x8x8x8xf32>
    tpu.vector_store %arg10[%c0_421, %c0_422, %c0_423, %c24], %502 {strides = array<i32>} : memref<1x8x8x32xf32, #tpu.memory_space<vmem>>, vector<1x8x8x8xf32>,
    return
  }
  func.func @transform_0(%arg0: i32) -> (i32, i32, i32, i32) {
    %c0_i32 = arith.constant 0 : i32
    %c0_i32_0 = arith.constant 0 : i32
    %c0_i32_1 = arith.constant 0 : i32
    %c0_i32_2 = arith.constant 0 : i32
    return %arg0, %c0_i32, %c0_i32_0, %c0_i32_1 : i32, i32, i32, i32
  }
  func.func @transform_1(%arg0: i32) -> (i32, i32, i32, i32) {
    %c0_i32 = arith.constant 0 : i32
    %c0_i32_0 = arith.constant 0 : i32
    %c0_i32_1 = arith.constant 0 : i32
    %c0_i32_2 = arith.constant 0 : i32
    return %arg0, %c0_i32, %c0_i32_0, %c0_i32_1 : i32, i32, i32, i32
  }
  func.func @transform_2(%arg0: i32) -> (i32, i32) {
    %c0_i32 = arith.constant 0 : i32
    %c0_i32_0 = arith.constant 0 : i32
    %c0_i32_1 = arith.constant 0 : i32
    return %c0_i32, %c0_i32_0 : i32, i32
  }
  func.func @transform_3(%arg0: i32) -> (i32, i32) {
    %c0_i32 = arith.constant 0 : i32
    %c0_i32_0 = arith.constant 0 : i32
    %c0_i32_1 = arith.constant 0 : i32
    return %c0_i32, %c0_i32_0 : i32, i32
  }
  func.func @transform_4(%arg0: i32) -> (i32, i32, i32) {
    %c0_i32 = arith.constant 0 : i32
    %c0_i32_0 = arith.constant 0 : i32
    %c0_i32_1 = arith.constant 0 : i32
    %c0_i32_2 = arith.constant 0 : i32
    return %c0_i32, %c0_i32_0, %c0_i32_1 : i32, i32, i32
  }
  func.func @transform_5(%arg0: i32) -> (i32, i32, i32, i32) {
    %c0_i32 = arith.constant 0 : i32
    %c0_i32_0 = arith.constant 0 : i32
    %c0_i32_1 = arith.constant 0 : i32
    %c0_i32_2 = arith.constant 0 : i32
    %c0_i32_3 = arith.constant 0 : i32
    return %c0_i32, %c0_i32_0, %c0_i32_1, %c0_i32_2 : i32, i32, i32, i32
  }
  func.func @transform_6(%arg0: i32) -> (i32, i32, i32, i32) {
    %c0_i32 = arith.constant 0 : i32
    %c0_i32_0 = arith.constant 0 : i32
    %c0_i32_1 = arith.constant 0 : i32
    %c0_i32_2 = arith.constant 0 : i32
    %c0_i32_3 = arith.constant 0 : i32
    return %c0_i32, %c0_i32_0, %c0_i32_1, %c0_i32_2 : i32, i32, i32, i32
  }
  func.func @transform_7(%arg0: i32) -> (i32, i32, i32, i32) {
    %c0_i32 = arith.constant 0 : i32
    %c0_i32_0 = arith.constant 0 : i32
    %c0_i32_1 = arith.constant 0 : i32
    %c0_i32_2 = arith.constant 0 : i32
    %c0_i32_3 = arith.constant 0 : i32
    return %c0_i32, %c0_i32_0, %c0_i32_1, %c0_i32_2 : i32, i32, i32, i32
  }
  func.func @transform_8(%arg0: i32) -> (i32, i32, i32, i32) {
    %c0_i32 = arith.constant 0 : i32
    %c0_i32_0 = arith.constant 0 : i32
    %c0_i32_1 = arith.constant 0 : i32
    %c0_i32_2 = arith.constant 0 : i32
    %c0_i32_3 = arith.constant 0 : i32
    return %c0_i32, %c0_i32_0, %c0_i32_1, %c0_i32_2 : i32, i32, i32, i32
  }
  func.func @transform_9(%arg0: i32) -> (i32, i32, i32, i32) {
    %c0_i32 = arith.constant 0 : i32
    %c0_i32_0 = arith.constant 0 : i32
    %c0_i32_1 = arith.constant 0 : i32
    %c0_i32_2 = arith.constant 0 : i32
    return %arg0, %c0_i32, %c0_i32_0, %c0_i32_1 : i32, i32, i32, i32
  }
}

</mosaic_0001>

<llo_original>
// kernel: cell_forward.1
$region0: #{cell_forward.1}
  #allocation0 [shape = 'u32[]', space=smem, size = 0x4, offset = 0x4, fixed_abs, tag = 'smem constant byte address 0x4 - core index']
  #allocation1 [shape = 'u32[144,128]{1,0:T(1,128)}', space=vmem, size = 0x12000, scoped, tag = 'internal scratch']
  #allocation2 [shape = 'f32[1,10,10,8]{3,2,1,0:T(8,128)}', space=vmem, size = 0x14000, scoped, tag = 'scratch operand']
  %s0 = inlined_call_operand.vmem [shape: f32[2,8,8,8], index: 0, kind: input, shape index: {}]
  %s1 = inlined_call_operand.vmem [shape: f32[2,8,8,8], index: 1, kind: input, shape index: {}]
  %s2 = inlined_call_operand.vmem [shape: f32[8,8], index: 2, kind: input, shape index: {}]
  %s3 = inlined_call_operand.vmem [shape: f32[8,8], index: 3, kind: input, shape index: {}]
  %s4 = inlined_call_operand.vmem [shape: f32[2,1,8], index: 4, kind: input, shape index: {}]
  %s5 = inlined_call_operand.vmem [shape: f32[3,2,9,8], index: 5, kind: input, shape index: {}]
  %s6 = inlined_call_operand.vmem [shape: f32[3,2,8,8], index: 6, kind: input, shape index: {}]
  %s7 = inlined_call_operand.vmem [shape: f32[3,2,1,8], index: 7, kind: input, shape index: {}]
  %s8 = inlined_call_operand.vmem [shape: f32[1,8,8,1], index: 8, kind: input, shape index: {}]
  %s9 = inlined_call_operand.hbm [shape: f32[2,8,8,32], index: 9, kind: output, shape index: {}]
  %s10 = sld [smem:[#allocation0]]
  $region69: #{cell_forward.1} parent=0
    _
  %s12 = ssub.s32 1, %s10
  %s13 = scalar_select 0, %s12, %s10
  $region1: #{cell_forward.1} parent=0
    #allocation3 [shape = 'u8[65536]{0}', space=vmem, size = 0x10000, scoped, tag = 'output window, operand 0']
    #allocation4 [shape = 's32[2]{0}', space=sflag, size = 0x8, scoped, tag = 'scoped memory for cell_forward.1']
    %14 = vsyncpa [#allocation4], 0
    %s15 = scalar_lea.sflag [#allocation4], 1
    %16 = vsyncpa %s15, 0
    loop: start=0, step=1, limit=4
    $region2: #{cell_forward.1} parent=1 // loop_pre_header
      _
    $region3: #{cell_forward.1} parent=1 // loop_header
      %s18 = sphi 0, %s22
      %p19 = scmp.ge.s32.totalorder %s18, 4
      %s28 = sphi 0, %s30
      %s31 = sphi 0, %s28
      %s32 = sphi 0, %s31
      %s48 = sphi 0, %s32
      %s54 = sphi 0, %s56
      %s57 = sphi 0, %s54
      %s58 = sphi 0, %s57
      %s74 = sphi 0, %s58
      %s78 = sphi 0, %s78
      %s80 = sphi 0, %s78
      %s81 = sphi 0, %s80
      %s95 = sphi 0, %s81
      %s99 = sphi 0, %s99
      %s101 = sphi 0, %s99
      %s102 = sphi 0, %s101
      %s116 = sphi 0, %s102
      %s120 = sphi 0, %s120
      %s122 = sphi 0, %s120
      %s123 = sphi 0, %s122
      %s137 = sphi 0, %s123
      %s141 = sphi 0, %s141
      %s143 = sphi 0, %s141
      %s144 = sphi 0, %s143
      %s158 = sphi 0, %s144
      %s162 = sphi 0, %s162
      %s164 = sphi 0, %s162
      %s165 = sphi 0, %s164
      %s179 = sphi 0, %s165
      %s183 = sphi 0, %s183
      %s185 = sphi 0, %s183
      %s186 = sphi 0, %s185
      %s200 = sphi 0, %s186
      %s204 = sphi 0, %s204
      %s206 = sphi 0, %s204
      %s207 = sphi 0, %s206
      %s221 = sphi 0, %s207
      %s227 = sphi 0, %s229
      %s230 = sphi 0, %s227
      %s231 = sphi 0, %s230
      %s247 = sphi 0, %s231
    $region4: #{cell_forward.1} parent=1 // loop_header_branch
      %21 = sbr.rel (%p19) target = $region8
    $region5: #{cell_forward.1} parent=1 // loop_body
      %s23 = ssub.s32 %s18, 1
      %s24 = ssub.s32 %s18, 2
      %s25 = sadd.s32 %s18, 1
      %s26 = ssub.s32 %s18, %s25
      %p27 = scmp.eq.s32.totalorder %s26, 0
      %s29 = sadd.s32 %s28, 1
      %s30 = scalar_select %p27, %s28, %s29
      %p33 = pneg %p27
      %p34 = scmp.eq.s32.totalorder %s18, 1
      %p35 = por %p33, %p34
      %p36 = scmp.ne.s32.totalorder %s28, %s31
      %p37 = scmp.eq.s32.totalorder %s18, 0
      %p38 = por %p36, %p37
      %p39 = scmp.ne.s32.totalorder %s28, %s31
      %p40 = scmp.eq.s32.totalorder %s23, 1
      %p41 = por %p39, %p40
      %p42 = scmp.ne.s32.totalorder %s31, %s32
      %p43 = scmp.eq.s32.totalorder %s23, 0
      %p44 = por %p42, %p43
      %p45 = scmp.ne.s32.totalorder %s31, %s32
      %p46 = scmp.eq.s32.totalorder %s24, 1
      %p47 = por %p45, %p46
      %p49 = scmp.ne.s32.totalorder %s32, %s48
      %p50 = scmp.eq.s32.totalorder %s24, 0
      %p51 = por %p49, %p50
      %s52 = ssub.s32 %s18, %s25
      %p53 = scmp.eq.s32.totalorder %s52, 0
      %s55 = sadd.s32 %s54, 1
      %s56 = scalar_select %p53, %s54, %s55
      %p59 = pneg %p53
      %p60 = scmp.eq.s32.totalorder %s18, 1
      %p61 = por %p59, %p60
      %p62 = scmp.ne.s32.totalorder %s54, %s57
      %p63 = scmp.eq.s32.totalorder %s18, 0
      %p64 = por %p62, %p63
      %p65 = scmp.ne.s32.totalorder %s54, %s57
      %p66 = scmp.eq.s32.totalorder %s23, 1
      %p67 = por %p65, %p66
      %p68 = scmp.ne.s32.totalorder %s57, %s58
      %p69 = scmp.eq.s32.totalorder %s23, 0
      %p70 = por %p68, %p69
      %p71 = scmp.ne.s32.totalorder %s57, %s58
      %p72 = scmp.eq.s32.totalorder %s24, 1
      %p73 = por %p71, %p72
      %p75 = scmp.ne.s32.totalorder %s58, %s74
      %p76 = scmp.eq.s32.totalorder %s24, 0
      %p77 = por %p75, %p76
      %s79 = sadd.s32 %s78, 1
      %p82 = scmp.eq.s32.totalorder %s18, 1
      %p83 = scmp.ne.s32.totalorder %s78, %s80
      %p84 = scmp.eq.s32.totalorder %s18, 0
      %p85 = por %p83, %p84
      %p86 = scmp.ne.s32.totalorder %s78, %s80
      %p87 = scmp.eq.s32.totalorder %s23, 1
      %p88 = por %p86, %p87
      %p89 = scmp.ne.s32.totalorder %s80, %s81
      %p90 = scmp.eq.s32.totalorder %s23, 0
      %p91 = por %p89, %p90
      %p92 = scmp.ne.s32.totalorder %s80, %s81
      %p93 = scmp.eq.s32.totalorder %s24, 1
      %p94 = por %p92, %p93
      %p96 = scmp.ne.s32.totalorder %s81, %s95
      %p97 = scmp.eq.s32.totalorder %s24, 0
      %p98 = por %p96, %p97
      %s100 = sadd.s32 %s99, 1
      %p103 = scmp.eq.s32.totalorder %s18, 1
      %p104 = scmp.ne.s32.totalorder %s99, %s101
      %p105 = scmp.eq.s32.totalorder %s18, 0
      %p106 = por %p104, %p105
      %p107 = scmp.ne.s32.totalorder %s99, %s101
      %p108 = scmp.eq.s32.totalorder %s23, 1
      %p109 = por %p107, %p108
      %p110 = scmp.ne.s32.totalorder %s101, %s102
      %p111 = scmp.eq.s32.totalorder %s23, 0
      %p112 = por %p110, %p111
      %p113 = scmp.ne.s32.totalorder %s101, %s102
      %p114 = scmp.eq.s32.totalorder %s24, 1
      %p115 = por %p113, %p114
      %p117 = scmp.ne.s32.totalorder %s102, %s116
      %p118 = scmp.eq.s32.totalorder %s24, 0
      %p119 = por %p117, %p118
      %s121 = sadd.s32 %s120, 1
      %p124 = scmp.eq.s32.totalorder %s18, 1
      %p125 = scmp.ne.s32.totalorder %s120, %s122
      %p126 = scmp.eq.s32.totalorder %s18, 0
      %p127 = por %p125, %p126
      %p128 = scmp.ne.s32.totalorder %s120, %s122
      %p129 = scmp.eq.s32.totalorder %s23, 1
      %p130 = por %p128, %p129
      %p131 = scmp.ne.s32.totalorder %s122, %s123
      %p132 = scmp.eq.s32.totalorder %s23, 0
      %p133 = por %p131, %p132
      %p134 = scmp.ne.s32.totalorder %s122, %s123
      %p135 = scmp.eq.s32.totalorder %s24, 1
      %p136 = por %p134, %p135
      %p138 = scmp.ne.s32.totalorder %s123, %s137
      %p139 = scmp.eq.s32.totalorder %s24, 0
      %p140 = por %p138, %p139
      %s142 = sadd.s32 %s141, 1
      %p145 = scmp.eq.s32.totalorder %s18, 1
      %p146 = scmp.ne.s32.totalorder %s141, %s143
      %p147 = scmp.eq.s32.totalorder %s18, 0
      %p148 = por %p146, %p147
      %p149 = scmp.ne.s32.totalorder %s141, %s143
      %p150 = scmp.eq.s32.totalorder %s23, 1
      %p151 = por %p149, %p150
      %p152 = scmp.ne.s32.totalorder %s143, %s144
      %p153 = scmp.eq.s32.totalorder %s23, 0
      %p154 = por %p152, %p153
      %p155 = scmp.ne.s32.totalorder %s143, %s144
      %p156 = scmp.eq.s32.totalorder %s24, 1
      %p157 = por %p155, %p156
      %p159 = scmp.ne.s32.totalorder %s144, %s158
      %p160 = scmp.eq.s32.totalorder %s24, 0
      %p161 = por %p159, %p160
      %s163 = sadd.s32 %s162, 1
      %p166 = scmp.eq.s32.totalorder %s18, 1
      %p167 = scmp.ne.s32.totalorder %s162, %s164
      %p168 = scmp.eq.s32.totalorder %s18, 0
      %p169 = por %p167, %p168
      %p170 = scmp.ne.s32.totalorder %s162, %s164
      %p171 = scmp.eq.s32.totalorder %s23, 1
      %p172 = por %p170, %p171
      %p173 = scmp.ne.s32.totalorder %s164, %s165
      %p174 = scmp.eq.s32.totalorder %s23, 0
      %p175 = por %p173, %p174
      %p176 = scmp.ne.s32.totalorder %s164, %s165
      %p177 = scmp.eq.s32.totalorder %s24, 1
      %p178 = por %p176, %p177
      %p180 = scmp.ne.s32.totalorder %s165, %s179
      %p181 = scmp.eq.s32.totalorder %s24, 0
      %p182 = por %p180, %p181
      %s184 = sadd.s32 %s183, 1
      %p187 = scmp.eq.s32.totalorder %s18, 1
      %p188 = scmp.ne.s32.totalorder %s183, %s185
      %p189 = scmp.eq.s32.totalorder %s18, 0
      %p190 = por %p188, %p189
      %p191 = scmp.ne.s32.totalorder %s183, %s185
      %p192 = scmp.eq.s32.totalorder %s23, 1
      %p193 = por %p191, %p192
      %p194 = scmp.ne.s32.totalorder %s185, %s186
      %p195 = scmp.eq.s32.totalorder %s23, 0
      %p196 = por %p194, %p195
      %p197 = scmp.ne.s32.totalorder %s185, %s186
      %p198 = scmp.eq.s32.totalorder %s24, 1
      %p199 = por %p197, %p198
      %p201 = scmp.ne.s32.totalorder %s186, %s200
      %p202 = scmp.eq.s32.totalorder %s24, 0
      %p203 = por %p201, %p202
      %s205 = sadd.s32 %s204, 1
      %p208 = scmp.eq.s32.totalorder %s18, 1
      %p209 = scmp.ne.s32.totalorder %s204, %s206
      %p210 = scmp.eq.s32.totalorder %s18, 0
      %p211 = por %p209, %p210
      %p212 = scmp.ne.s32.totalorder %s204, %s206
      %p213 = scmp.eq.s32.totalorder %s23, 1
      %p214 = por %p212, %p213
      %p215 = scmp.ne.s32.totalorder %s206, %s207
      %p216 = scmp.eq.s32.totalorder %s23, 0
      %p217 = por %p215, %p216
      %p218 = scmp.ne.s32.totalorder %s206, %s207
      %p219 = scmp.eq.s32.totalorder %s24, 1
      %p220 = por %p218, %p219
      %p222 = scmp.ne.s32.totalorder %s207, %s221
      %p223 = scmp.eq.s32.totalorder %s24, 0
      %p224 = por %p222, %p223
      %s225 = ssub.s32 %s18, %s25
      %p226 = scmp.eq.s32.totalorder %s225, 0
      %s228 = sadd.s32 %s227, 1
      %s229 = scalar_select %p226, %s227, %s228
      %p232 = pneg %p226
      %p233 = scmp.eq.s32.totalorder %s18, 1
      %p234 = por %p232, %p233
      %p235 = scmp.ne.s32.totalorder %s227, %s230
      %p236 = scmp.eq.s32.totalorder %s18, 0
      %p237 = por %p235, %p236
      %p238 = scmp.ne.s32.totalorder %s227, %s230
      %p239 = scmp.eq.s32.totalorder %s23, 1
      %p240 = por %p238, %p239
      %p241 = scmp.ne.s32.totalorder %s230, %s231
      %p242 = scmp.eq.s32.totalorder %s23, 0
      %p243 = por %p241, %p242
      %p244 = scmp.ne.s32.totalorder %s230, %s231
      %p245 = scmp.eq.s32.totalorder %s24, 1
      %p246 = por %p244, %p245
      %p248 = scmp.ne.s32.totalorder %s231, %s247
      %p249 = scmp.eq.s32.totalorder %s24, 0
      %p250 = por %p248, %p249
      %p251 = scmp.le.s32.totalorder 1, %s18
      %p252 = scmp.lt.s32.totalorder %s18, 3
      %p253 = pnand %p251, %p252
      %p254 = pneg %p253
      // Predicated region
      $region9: #{cell_forward.1} parent=5 // pred_check
        _
      $region10: #{cell_forward.1} parent=5 // pred_check_branch
        %256 = sbr.rel (%p253) target = $region12
      $region11: #{cell_forward.1} parent=5 // pred_region
        %s257 = ssub.s32 %s18, 1
        // Predicated region
        $region13: #{cell_forward.1} parent=11 // pred_check
          %p258 = pneg %p91
        $region14: #{cell_forward.1} parent=11 // pred_check_branch
          %260 = sbr.rel (%p258) target = $region16
        $region15: #{cell_forward.1} parent=11 // pred_region
          _
        $region16: #{cell_forward.1} parent=11 // pred_fallthru
          _
        // Predicated region
        $region17: #{cell_forward.1} parent=11 // pred_check
          %p261 = pneg %p112
        $region18: #{cell_forward.1} parent=11 // pred_check_branch
          %263 = sbr.rel (%p261) target = $region20
        $region19: #{cell_forward.1} parent=11 // pred_region
          _
        $region20: #{cell_forward.1} parent=11 // pred_fallthru
          _
        // Predicated region
        $region21: #{cell_forward.1} parent=11 // pred_check
          %p264 = pneg %p133
        $region22: #{cell_forward.1} parent=11 // pred_check_branch
          %266 = sbr.rel (%p264) target = $region24
        $region23: #{cell_forward.1} parent=11 // pred_region
          _
        $region24: #{cell_forward.1} parent=11 // pred_fallthru
          _
        // Predicated region
        $region25: #{cell_forward.1} parent=11 // pred_check
          %p267 = pneg %p154
        $region26: #{cell_forward.1} parent=11 // pred_check_branch
          %269 = sbr.rel (%p267) target = $region28
        $region27: #{cell_forward.1} parent=11 // pred_region
          _
        $region28: #{cell_forward.1} parent=11 // pred_fallthru
          _
        // Predicated region
        $region29: #{cell_forward.1} parent=11 // pred_check
          %p270 = pneg %p175
        $region30: #{cell_forward.1} parent=11 // pred_check_branch
          %272 = sbr.rel (%p270) target = $region32
        $region31: #{cell_forward.1} parent=11 // pred_region
          _
        $region32: #{cell_forward.1} parent=11 // pred_fallthru
          _
        // Predicated region
        $region33: #{cell_forward.1} parent=11 // pred_check
          %p273 = pneg %p196
        $region34: #{cell_forward.1} parent=11 // pred_check_branch
          %275 = sbr.rel (%p273) target = $region36
        $region35: #{cell_forward.1} parent=11 // pred_region
          _
        $region36: #{cell_forward.1} parent=11 // pred_fallthru
          _
        // Predicated region
        $region37: #{cell_forward.1} parent=11 // pred_check
          %p276 = pneg %p217
        $region38: #{cell_forward.1} parent=11 // pred_check_branch
          %278 = sbr.rel (%p276) target = $region40
        $region39: #{cell_forward.1} parent=11 // pred_region
          _
        $region40: #{cell_forward.1} parent=11 // pred_fallthru
          _
      $region12: #{cell_forward.1} parent=5 // pred_fallthru
        _
      %p279 = scmp.lt.s32.totalorder %s18, 2
      // Predicated region
      $region41: #{cell_forward.1} parent=5 // pred_check
        %p280 = pneg %p279
      $region42: #{cell_forward.1} parent=5 // pred_check_branch
        %282 = sbr.rel (%p280) target = $region44
      $region43: #{cell_forward.1} parent=5 // pred_region
        // Predicated region
        $region45: #{cell_forward.1} parent=43 // pred_check
          %p283 = pneg %p38
        $region46: #{cell_forward.1} parent=43 // pred_check_branch
          %285 = sbr.rel (%p283) target = $region48
        $region47: #{cell_forward.1} parent=43 // pred_region
          %p286 = scmp.lt.s32.totalorder %s18, 1
          %s287 = scalar_select %p286, %s18, 1
          %s288 = smul.addr %s287, 8
          %s289 = smul.addr %s288, 8
          %s290 = scalar_lea.vmem %s0, %s289
        $region48: #{cell_forward.1} parent=43 // pred_fallthru
          _
        // Predicated region
        $region49: #{cell_forward.1} parent=43 // pred_check
          %p291 = pneg %p64
        $region50: #{cell_forward.1} parent=43 // pred_check_branch
          %293 = sbr.rel (%p291) target = $region52
        $region51: #{cell_forward.1} parent=43 // pred_region
          %p294 = scmp.lt.s32.totalorder %s18, 1
          %s295 = scalar_select %p294, %s18, 1
          %s296 = smul.addr %s295, 8
          %s297 = smul.addr %s296, 8
          %s298 = scalar_lea.vmem %s1, %s297
        $region52: #{cell_forward.1} parent=43 // pred_fallthru
          _
      $region44: #{cell_forward.1} parent=5 // pred_fallthru
        _
      %p299 = scmp.le.s32.totalorder 1, %s18
      %p300 = scmp.lt.s32.totalorder %s18, 3
      %p301 = pnand %p299, %p300
      %p302 = pneg %p301
      // Predicated region
      $region53: #{cell_forward.1} parent=5 // pred_check
        _
      $region54: #{cell_forward.1} parent=5 // pred_check_branch
        %304 = sbr.rel (%p301) target = $region56
      $region55: #{cell_forward.1} parent=5 // pred_region
        %s305 = ssub.s32 %s18, 1
        %p306 = scmp.lt.s32.totalorder %s23, 1
        %s307 = scalar_select %p306, %s23, 1
        %s308 = smul.addr %s307, 8
        %s309 = smul.addr %s308, 8
        %s310 = scalar_lea.vmem %s0, %s309
        %p311 = pneg %p44
        %p312 = pneg %p41
        %p313 = scmp.lt.s32.totalorder %s23, 1
        %s314 = scalar_select %p313, %s23, 1
        %s315 = smul.addr %s314, 8
        %s316 = smul.addr %s315, 8
        %s317 = scalar_lea.vmem %s1, %s316
        %p318 = pneg %p70
        %p319 = pneg %p67
        %p320 = pneg %p91
        %p321 = pneg %p88
        %p322 = pneg %p112
        %p323 = pneg %p109
        %p324 = pneg %p133
        %p325 = pneg %p130
        %p326 = pneg %p154
        %p327 = pneg %p151
        %p328 = pneg %p175
        %p329 = pneg %p172
        %p330 = pneg %p196
        %p331 = pneg %p193
        %p332 = pneg %p217
        %p333 = pneg %p214
        %p334 = pneg %p243
        %p335 = pneg %p240
        %s336 = sand.u32 %s230, 1
        %s337 = scalar_lea.sflag [#allocation4], %s336
        %s338 = sand.u32 %s230, 1
        %s339 = smul.addr %s338, 64
        %s340 = scalar_lea.vmem [#allocation3], %s339
        %p341 = scmp.lt.s32.totalorder %s23, 1
        %s342 = scalar_select %p341, %s23, 1
        %s343 = smul.addr %s342, 8
        %s344 = smul.addr %s343, 8
        %s345 = scalar_lea.vmem %s0, %s344
        %p346 = scmp.lt.s32.totalorder %s23, 1
        %s347 = scalar_select %p346, %s23, 1
        %s348 = smul.addr %s347, 8
        %s349 = smul.addr %s348, 8
        %s350 = scalar_lea.vmem %s1, %s349
        %v351 = vld [vmem:[%s5] sm:$0xff]
        %v352 = vld [vmem:[%s5 + $0x8] sm:$0x1]
        %v353 = vld [vmem:[%s5 + $0x10] sm:$0xff]
        %v354 = vld [vmem:[%s5 + $0x18] sm:$0x1]
        %v355 = vld [vmem:[%s5 + $0x20] sm:$0xff]
        %v356 = vld [vmem:[%s5 + $0x28] sm:$0x1]
        %v357 = vld [vmem:[%s5 + $0x30] sm:$0xff]
        %v358 = vld [vmem:[%s5 + $0x38] sm:$0x1]
        %v359 = vld [vmem:[%s5 + $0x40] sm:$0xff]
        %v360 = vld [vmem:[%s5 + $0x48] sm:$0x1]
        %v361 = vld [vmem:[%s5 + $0x50] sm:$0xff]
        %v362 = vld [vmem:[%s5 + $0x58] sm:$0x1]
        %v363 = vld [vmem:[%s6] sm:$0xff]
        %v364 = vld [vmem:[%s6 + $0x8] sm:$0xff]
        %v365 = vld [vmem:[%s6 + $0x10] sm:$0xff]
        %v366 = vld [vmem:[%s6 + $0x18] sm:$0xff]
        %v367 = vld [vmem:[%s6 + $0x20] sm:$0xff]
        %v368 = vld [vmem:[%s6 + $0x28] sm:$0xff]
        %v369 = vld [vmem:[%s7] sm:$0x1]
        %v370 = vld [vmem:[%s7 + $0x1] sm:$0x1]
        %v371 = vld [vmem:[%s7 + $0x2] sm:$0x1]
        %v372 = vld [vmem:[%s7 + $0x3] sm:$0x1]
        %v373 = vld [vmem:[%s7 + $0x4] sm:$0x1]
        %v374 = vld [vmem:[%s7 + $0x5] sm:$0x1]
        %v375 = vld [vmem:[%s4] sm:$0x1]
        %v376 = vld [vmem:[%s4 + $0x1] sm:$0x1]
        %v377 = vld [vmem:[%s345] sm:$0xff]
        %v378 = vld [vmem:[%s345 + $0x8] sm:$0xff]
        %v379 = vld [vmem:[%s345 + $0x10] sm:$0xff]
        %v380 = vld [vmem:[%s345 + $0x18] sm:$0xff]
        %v381 = vld [vmem:[%s345 + $0x20] sm:$0xff]
        %v382 = vld [vmem:[%s345 + $0x28] sm:$0xff]
        %v383 = vld [vmem:[%s345 + $0x30] sm:$0xff]
        %v384 = vld [vmem:[%s345 + $0x38] sm:$0xff]
        %v385 = vld [vmem:[%s2] sm:$0xff]
        %v386 = vmax.f32 %v377, 0.0
        %v387 = vmax.f32 %v378, 0.0
        %v388 = vmax.f32 %v379, 0.0
        %v389 = vmax.f32 %v380, 0.0
        %v390 = vmax.f32 %v381, 0.0
        %v391 = vmax.f32 %v382, 0.0
        %v392 = vmax.f32 %v383, 0.0
        %v393 = vmax.f32 %v384, 0.0
        %v395 = vlaneseq
        %v396 = vshrl.u32 %v395, 7
        %v397 = vsub.s32 0, %v396
        %v398 = vrot.slane %v375, %v397
        %vm400 = vcmask 64512
        %v402 = vsel %vm400, %v386, 0
        %v405 = vsel %vm400, %v387, 0
        %v408 = vsel %vm400, %v388, 0
        %v411 = vsel %vm400, %v389, 0
        %v414 = vsel %vm400, %v390, 0
        %v417 = vsel %vm400, %v391, 0
        %v420 = vsel %vm400, %v392, 0
        %v423 = vsel %vm400, %v393, 0
        %425 = vmatprep.subr.mxu0 0.0
        %426 = vmatpush1.msra.mxu0 0.0
        %427 = vmatprep.subr.mxu0 0.0
        %428 = vmatpush1.msra.mxu0 0.0
        %429 = vmatprep.subr.mxu0 0.0
        %430 = vmatpush1.msra.mxu0 0.0
        %431 = vmatprep.subr.mxu0 0.0
        %432 = vmatpush1.msra.mxu0 0.0
        %433 = vmatprep.subr.mxu0 0.0
        %434 = vmatpush1.msra.mxu0 0.0
        %435 = vmatprep.subr.mxu0 0.0
        %436 = vmatpush1.msra.mxu0 0.0
        %437 = vmatprep.subr.mxu0 0.0
        %438 = vmatpush1.msra.mxu0 0.0
        %439 = vmatprep.subr.mxu0 0.0
        %440 = vmatpush1.msra.mxu0 0.0
        %441 = vmatprep.subr.mxu0 0.0
        %442 = vmatpush1.msra.mxu0 0.0
        %443 = vmatprep.subr.mxu0 0.0
        %444 = vmatpush1.msra.mxu0 0.0
        %445 = vmatprep.subr.mxu0 0.0
        %446 = vmatpush1.msra.mxu0 0.0
        %447 = vmatprep.subr.mxu0 0.0
        %448 = vmatpush1.msra.mxu0 0.0
        %449 = vmatprep.subr.mxu0 0.0
        %450 = vmatpush1.msra.mxu0 0.0
        %451 = vmatprep.subr.mxu0 0.0
        %452 = vmatpush1.msra.mxu0 0.0
        %453 = vmatprep.subr.mxu0 0.0
        %454 = vmatpush1.msra.mxu0 0.0
        %455 = vmatprep.subr.mxu0 0.0
        %456 = vmatpush1.msra.mxu0 %v385
        %457 = vmatprep.subr.mxu0 0.0
        %458 = vmatpush2.msra.mxu0 0.0
        %459 = vmatprep.subr.mxu0 0.0
        %460 = vmatpush2.msra.mxu0 0.0
        %461 = vmatprep.subr.mxu0 0.0
        %462 = vmatpush2.msra.mxu0 0.0
        %463 = vmatprep.subr.mxu0 0.0
        %464 = vmatpush2.msra.mxu0 0.0
        %465 = vmatprep.subr.mxu0 0.0
        %466 = vmatpush2.msra.mxu0 0.0
        %467 = vmatprep.subr.mxu0 0.0
        %468 = vmatpush2.msra.mxu0 0.0
        %469 = vmatprep.subr.mxu0 0.0
        %470 = vmatpush2.msra.mxu0 0.0
        %471 = vmatprep.subr.mxu0 0.0
        %472 = vmatpush2.msra.mxu0 0.0
        %473 = vmatprep.subr.mxu0 0.0
        %474 = vmatpush2.msra.mxu0 0.0
        %475 = vmatprep.subr.mxu0 0.0
        %476 = vmatpush2.msra.mxu0 0.0
        %477 = vmatprep.subr.mxu0 0.0
        %478 = vmatpush2.msra.mxu0 0.0
        %479 = vmatprep.subr.mxu0 0.0
        %480 = vmatpush2.msra.mxu0 0.0
        %481 = vmatprep.subr.mxu0 0.0
        %482 = vmatpush2.msra.mxu0 0.0
        %483 = vmatprep.subr.mxu0 0.0
        %484 = vmatpush2.msra.mxu0 0.0
        %485 = vmatprep.subr.mxu0 0.0
        %486 = vmatpush2.msra.mxu0 0.0
        %487 = vmatprep.subr.mxu0 0.0
        %488 = vmatpush2.msra.mxu0 0.0
        %489 = vmatprep.mubr.f32.mxu0 0.0
        %490 = vmatmul.mubr.f32.gmra.mxu0 %v402
        %v491 = vpop.f32.mrf.mxu0
        %v492 = vadd.f32 %v398, %v491
        %v493 = vpop.f32.mrf.mxu0
        %494 = vmatprep.mubr.f32.mxu0 0.0
        %495 = vmatmul.mubr.f32.gmra.mxu0 %v405
        %v496 = vpop.f32.mrf.mxu0
        %v497 = vadd.f32 %v398, %v496
        %v498 = vpop.f32.mrf.mxu0
        %499 = vmatprep.mubr.f32.mxu0 0.0
        %500 = vmatmul.mubr.f32.gmra.mxu0 %v408
        %v501 = vpop.f32.mrf.mxu0
        %v502 = vadd.f32 %v398, %v501
        %v503 = vpop.f32.mrf.mxu0
        %504 = vmatprep.mubr.f32.mxu0 0.0
        %505 = vmatmul.mubr.f32.gmra.mxu0 %v411
        %v506 = vpop.f32.mrf.mxu0
        %v507 = vadd.f32 %v398, %v506
        %v508 = vpop.f32.mrf.mxu0
        %509 = vmatprep.mubr.f32.mxu0 0.0
        %510 = vmatmul.mubr.f32.gmra.mxu0 %v414
        %v511 = vpop.f32.mrf.mxu0
        %v512 = vadd.f32 %v398, %v511
        %v513 = vpop.f32.mrf.mxu0
        %514 = vmatprep.mubr.f32.mxu0 0.0
        %515 = vmatmul.mubr.f32.gmra.mxu0 %v417
        %v516 = vpop.f32.mrf.mxu0
        %v517 = vadd.f32 %v398, %v516
        %v518 = vpop.f32.mrf.mxu0
        %519 = vmatprep.mubr.f32.mxu0 0.0
        %520 = vmatmul.mubr.f32.gmra.mxu0 %v420
        %v521 = vpop.f32.mrf.mxu0
        %v522 = vadd.f32 %v398, %v521
        %v523 = vpop.f32.mrf.mxu0
        %524 = vmatprep.mubr.f32.mxu0 0.0
        %525 = vmatmul.mubr.f32.gmra.mxu0 %v423
        %v526 = vpop.f32.mrf.mxu0
        %v527 = vadd.f32 %v398, %v526
        %v528 = vpop.f32.mrf.mxu0
        %529 = vdwg.mxu0
        %v530 = vld [vmem:[%s350] sm:$0xff]
        %v531 = vld [vmem:[%s350 + $0x8] sm:$0xff]
        %v532 = vld [vmem:[%s350 + $0x10] sm:$0xff]
        %v533 = vld [vmem:[%s350 + $0x18] sm:$0xff]
        %v534 = vld [vmem:[%s350 + $0x20] sm:$0xff]
        %v535 = vld [vmem:[%s350 + $0x28] sm:$0xff]
        %v536 = vld [vmem:[%s350 + $0x30] sm:$0xff]
        %v537 = vld [vmem:[%s350 + $0x38] sm:$0xff]
        %v538 = vld [vmem:[%s3] sm:$0xff]
        %v539 = vmax.f32 %v530, 0.0
        %v540 = vmax.f32 %v531, 0.0
        %v541 = vmax.f32 %v532, 0.0
        %v542 = vmax.f32 %v533, 0.0
        %v543 = vmax.f32 %v534, 0.0
        %v544 = vmax.f32 %v535, 0.0
        %v545 = vmax.f32 %v536, 0.0
        %v546 = vmax.f32 %v537, 0.0
        %v548 = vlaneseq
        %v549 = vshrl.u32 %v548, 7
        %v550 = vsub.s32 0, %v549
        %v551 = vrot.slane %v376, %v550
        %v554 = vsel %vm400, %v539, 0
        %v557 = vsel %vm400, %v540, 0
        %v560 = vsel %vm400, %v541, 0
        %v563 = vsel %vm400, %v542, 0
        %v566 = vsel %vm400, %v543, 0
        %v569 = vsel %vm400, %v544, 0
        %v572 = vsel %vm400, %v545, 0
        %v575 = vsel %vm400, %v546, 0
        %577 = vmatprep.subr.mxu0 0.0
        %578 = vmatpush1.msra.mxu0 0.0
        %579 = vmatprep.subr.mxu0 0.0
        %580 = vmatpush1.msra.mxu0 0.0
        %581 = vmatprep.subr.mxu0 0.0
        %582 = vmatpush1.msra.mxu0 0.0
        %583 = vmatprep.subr.mxu0 0.0
        %584 = vmatpush1.msra.mxu0 0.0
        %585 = vmatprep.subr.mxu0 0.0
        %586 = vmatpush1.msra.mxu0 0.0
        %587 = vmatprep.subr.mxu0 0.0
        %588 = vmatpush1.msra.mxu0 0.0
        %589 = vmatprep.subr.mxu0 0.0
        %590 = vmatpush1.msra.mxu0 0.0
        %591 = vmatprep.subr.mxu0 0.0
        %592 = vmatpush1.msra.mxu0 0.0
        %593 = vmatprep.subr.mxu0 0.0
        %594 = vmatpush1.msra.mxu0 0.0
        %595 = vmatprep.subr.mxu0 0.0
        %596 = vmatpush1.msra.mxu0 0.0
        %597 = vmatprep.subr.mxu0 0.0
        %598 = vmatpush1.msra.mxu0 0.0
        %599 = vmatprep.subr.mxu0 0.0
        %600 = vmatpush1.msra.mxu0 0.0
        %601 = vmatprep.subr.mxu0 0.0
        %602 = vmatpush1.msra.mxu0 0.0
        %603 = vmatprep.subr.mxu0 0.0
        %604 = vmatpush1.msra.mxu0 0.0
        %605 = vmatprep.subr.mxu0 0.0
        %606 = vmatpush1.msra.mxu0 0.0
        %607 = vmatprep.subr.mxu0 0.0
        %608 = vmatpush1.msra.mxu0 %v538
        %609 = vmatprep.subr.mxu0 0.0
        %610 = vmatpush2.msra.mxu0 0.0
        %611 = vmatprep.subr.mxu0 0.0
        %612 = vmatpush2.msra.mxu0 0.0
        %613 = vmatprep.subr.mxu0 0.0
        %614 = vmatpush2.msra.mxu0 0.0
        %615 = vmatprep.subr.mxu0 0.0
        %616 = vmatpush2.msra.mxu0 0.0
        %617 = vmatprep.subr.mxu0 0.0
        %618 = vmatpush2.msra.mxu0 0.0
        %619 = vmatprep.subr.mxu0 0.0
        %620 = vmatpush2.msra.mxu0 0.0
        %621 = vmatprep.subr.mxu0 0.0
        %622 = vmatpush2.msra.mxu0 0.0
        %623 = vmatprep.subr.mxu0 0.0
        %624 = vmatpush2.msra.mxu0 0.0
        %625 = vmatprep.subr.mxu0 0.0
        %626 = vmatpush2.msra.mxu0 0.0
        %627 = vmatprep.subr.mxu0 0.0
        %628 = vmatpush2.msra.mxu0 0.0
        %629 = vmatprep.subr.mxu0 0.0
        %630 = vmatpush2.msra.mxu0 0.0
        %631 = vmatprep.subr.mxu0 0.0
        %632 = vmatpush2.msra.mxu0 0.0
        %633 = vmatprep.subr.mxu0 0.0
        %634 = vmatpush2.msra.mxu0 0.0
        %635 = vmatprep.subr.mxu0 0.0
        %636 = vmatpush2.msra.mxu0 0.0
        %637 = vmatprep.subr.mxu0 0.0
        %638 = vmatpush2.msra.mxu0 0.0
        %639 = vmatprep.subr.mxu0 0.0
        %640 = vmatpush2.msra.mxu0 0.0
        %641 = vmatprep.mubr.f32.mxu0 0.0
        %642 = vmatmul.mubr.f32.gmra.mxu0 %v554
        %v643 = vpop.f32.mrf.mxu0
        %v644 = vadd.f32 %v551, %v643
        %v645 = vpop.f32.mrf.mxu0
        %646 = vmatprep.mubr.f32.mxu0 0.0
        %647 = vmatmul.mubr.f32.gmra.mxu0 %v557
        %v648 = vpop.f32.mrf.mxu0
        %v649 = vadd.f32 %v551, %v648
        %v650 = vpop.f32.mrf.mxu0
        %651 = vmatprep.mubr.f32.mxu0 0.0
        %652 = vmatmul.mubr.f32.gmra.mxu0 %v560
        %v653 = vpop.f32.mrf.mxu0
        %v654 = vadd.f32 %v551, %v653
        %v655 = vpop.f32.mrf.mxu0
        %656 = vmatprep.mubr.f32.mxu0 0.0
        %657 = vmatmul.mubr.f32.gmra.mxu0 %v563
        %v658 = vpop.f32.mrf.mxu0
        %v659 = vadd.f32 %v551, %v658
        %v660 = vpop.f32.mrf.mxu0
        %661 = vmatprep.mubr.f32.mxu0 0.0
        %662 = vmatmul.mubr.f32.gmra.mxu0 %v566
        %v663 = vpop.f32.mrf.mxu0
        %v664 = vadd.f32 %v551, %v663
        %v665 = vpop.f32.mrf.mxu0
        %666 = vmatprep.mubr.f32.mxu0 0.0
        %667 = vmatmul.mubr.f32.gmra.mxu0 %v569
        %v668 = vpop.f32.mrf.mxu0
        %v669 = vadd.f32 %v551, %v668
        %v670 = vpop.f32.mrf.mxu0
        %671 = vmatprep.mubr.f32.mxu0 0.0
        %672 = vmatmul.mubr.f32.gmra.mxu0 %v572
        %v673 = vpop.f32.mrf.mxu0
        %v674 = vadd.f32 %v551, %v673
        %v675 = vpop.f32.mrf.mxu0
        %676 = vmatprep.mubr.f32.mxu0 0.0
        %677 = vmatmul.mubr.f32.gmra.mxu0 %v575
        %v678 = vpop.f32.mrf.mxu0
        %v679 = vadd.f32 %v551, %v678
        %v680 = vpop.f32.mrf.mxu0
        %681 = vdwg.mxu0
        %v682 = vmax.f32 %v492, 0.0
        %v683 = vmax.f32 %v497, 0.0
        %v684 = vmax.f32 %v502, 0.0
        %v685 = vmax.f32 %v507, 0.0
        %v686 = vmax.f32 %v512, 0.0
        %v687 = vmax.f32 %v517, 0.0
        %v688 = vmax.f32 %v522, 0.0
        %v689 = vmax.f32 %v527, 0.0
        %690 = vst.msk [vmem:[#allocation2] sm:$0xff] %vm400, 0.0
        %vm691 = vcmask 58368
        %692 = vst.msk [vmem:[#allocation2 + $0x8] sm:$0x3] %vm691, 0.0
        %693 = vst.msk [vmem:[#allocation2 + $0x10] sm:$0xff] %vm400, 0.0
        %694 = vst.msk [vmem:[#allocation2 + $0x18] sm:$0x3] %vm691, 0.0
        %695 = vst.msk [vmem:[#allocation2 + $0x20] sm:$0xff] %vm400, 0.0
        %696 = vst.msk [vmem:[#allocation2 + $0x28] sm:$0x3] %vm691, 0.0
        %697 = vst.msk [vmem:[#allocation2 + $0x30] sm:$0xff] %vm400, 0.0
        %698 = vst.msk [vmem:[#allocation2 + $0x38] sm:$0x3] %vm691, 0.0
        %699 = vst.msk [vmem:[#allocation2 + $0x40] sm:$0xff] %vm400, 0.0
        %700 = vst.msk [vmem:[#allocation2 + $0x48] sm:$0x3] %vm691, 0.0
        %701 = vst.msk [vmem:[#allocation2 + $0x50] sm:$0xff] %vm400, 0.0
        %702 = vst.msk [vmem:[#allocation2 + $0x58] sm:$0x3] %vm691, 0.0
        %703 = vst.msk [vmem:[#allocation2 + $0x60] sm:$0xff] %vm400, 0.0
        %704 = vst.msk [vmem:[#allocation2 + $0x68] sm:$0x3] %vm691, 0.0
        %705 = vst.msk [vmem:[#allocation2 + $0x70] sm:$0xff] %vm400, 0.0
        %706 = vst.msk [vmem:[#allocation2 + $0x78] sm:$0x3] %vm691, 0.0
        %707 = vst.msk [vmem:[#allocation2 + $0x80] sm:$0xff] %vm400, 0.0
        %708 = vst.msk [vmem:[#allocation2 + $0x88] sm:$0x3] %vm691, 0.0
        %709 = vst.msk [vmem:[#allocation2 + $0x90] sm:$0xff] %vm400, 0.0
        %710 = vst.msk [vmem:[#allocation2 + $0x98] sm:$0x3] %vm691, 0.0
        %s711 = scalar_lea.vmem [#allocation2], 16
        %712 = vst.msk [vmem:[%s711 + $0x1] sm:$0xff] %vm400, %v682
        %713 = vst.msk [vmem:[%s711 + $0x11] sm:$0xff] %vm400, %v683
        %714 = vst.msk [vmem:[%s711 + $0x21] sm:$0xff] %vm400, %v684
        %715 = vst.msk [vmem:[%s711 + $0x31] sm:$0xff] %vm400, %v685
        %716 = vst.msk [vmem:[%s711 + $0x41] sm:$0xff] %vm400, %v686
        %717 = vst.msk [vmem:[%s711 + $0x51] sm:$0xff] %vm400, %v687
        %718 = vst.msk [vmem:[%s711 + $0x61] sm:$0xff] %vm400, %v688
        %719 = vst.msk [vmem:[%s711 + $0x71] sm:$0xff] %vm400, %v689
        %v720 = vld [vmem:[#allocation2] sm:$0xff]
        %v721 = vld [vmem:[#allocation2 + $0x10] sm:$0xff]
        %v722 = vld [vmem:[#allocation2 + $0x20] sm:$0xff]
        %v723 = vld [vmem:[#allocation2 + $0x30] sm:$0xff]
        %v724 = vld [vmem:[#allocation2 + $0x40] sm:$0xff]
        %v725 = vld [vmem:[#allocation2 + $0x50] sm:$0xff]
        %v726 = vld [vmem:[#allocation2 + $0x60] sm:$0xff]
        %v727 = vld [vmem:[#allocation2 + $0x70] sm:$0xff]
        %v728 = vlaneseq
        %v729 = vshrl.u32 %v728, 7
        %v730 = vsub.s32 0, %v729
        %v731 = vrot.slane %v351, %v730
        %v732 = vmul.f32 %v720, %v731
        %v733 = vmul.f32 %v721, %v731
        %v734 = vmul.f32 %v722, %v731
        %v735 = vmul.f32 %v723, %v731
        %v736 = vmul.f32 %v724, %v731
        %v737 = vmul.f32 %v725, %v731
        %v738 = vmul.f32 %v726, %v731
        %v739 = vmul.f32 %v727, %v731
        %v740 = vadd.f32 %v732, 0.0
        %v741 = vadd.f32 %v733, 0.0
        %v742 = vadd.f32 %v734, 0.0
        %v743 = vadd.f32 %v735, 0.0
        %v744 = vadd.f32 %v736, 0.0
        %v745 = vadd.f32 %v737, 0.0
        %v746 = vadd.f32 %v738, 0.0
        %v747 = vadd.f32 %v739, 0.0
        %v748 = vld [vmem:[#allocation2 + $0x1] sm:$0xff]
        %v749 = vld [vmem:[#allocation2 + $0x11] sm:$0xff]
        %v750 = vld [vmem:[#allocation2 + $0x21] sm:$0xff]
        %v751 = vld [vmem:[#allocation2 + $0x31] sm:$0xff]
        %v752 = vld [vmem:[#allocation2 + $0x41] sm:$0xff]
        %v753 = vld [vmem:[#allocation2 + $0x51] sm:$0xff]
        %v754 = vld [vmem:[#allocation2 + $0x61] sm:$0xff]
        %v755 = vld [vmem:[#allocation2 + $0x71] sm:$0xff]
        %v756 = vlaneseq
        %v757 = vshrl.u32 %v756, 7
        %v758 = vsub.s32 1, %v757
        %v759 = vrot.slane %v351, %v758
        %v760 = vmul.f32 %v748, %v759
        %v761 = vmul.f32 %v749, %v759
        %v762 = vmul.f32 %v750, %v759
        %v763 = vmul.f32 %v751, %v759
        %v764 = vmul.f32 %v752, %v759
        %v765 = vmul.f32 %v753, %v759
        %v766 = vmul.f32 %v754, %v759
        %v767 = vmul.f32 %v755, %v759
        %v768 = vadd.f32 %v740, %v760
        %v769 = vadd.f32 %v741, %v761
        %v770 = vadd.f32 %v742, %v762
        %v771 = vadd.f32 %v743, %v763
        %v772 = vadd.f32 %v744, %v764
        %v773 = vadd.f32 %v745, %v765
        %v774 = vadd.f32 %v746, %v766
        %v775 = vadd.f32 %v747, %v767
        %v776 = vld [vmem:[#allocation2 + $0x2] sm:$0xff]
        %v777 = vld [vmem:[#allocation2 + $0x12] sm:$0xff]
        %v778 = vld [vmem:[#allocation2 + $0x22] sm:$0xff]
        %v779 = vld [vmem:[#allocation2 + $0x32] sm:$0xff]
        %v780 = vld [vmem:[#allocation2 + $0x42] sm:$0xff]
        %v781 = vld [vmem:[#allocation2 + $0x52] sm:$0xff]
        %v782 = vld [vmem:[#allocation2 + $0x62] sm:$0xff]
        %v783 = vld [vmem:[#allocation2 + $0x72] sm:$0xff]
        %v784 = vlaneseq
        %v785 = vshrl.u32 %v784, 7
        %v786 = vsub.s32 2, %v785
        %v787 = vrot.slane %v351, %v786
        %v788 = vmul.f32 %v776, %v787
        %v789 = vmul.f32 %v777, %v787
        %v790 = vmul.f32 %v778, %v787
        %v791 = vmul.f32 %v779, %v787
        %v792 = vmul.f32 %v780, %v787
        %v793 = vmul.f32 %v781, %v787
        %v794 = vmul.f32 %v782, %v787
        %v795 = vmul.f32 %v783, %v787
        %v796 = vadd.f32 %v768, %v788
        %v797 = vadd.f32 %v769, %v789
        %v798 = vadd.f32 %v770, %v790
        %v799 = vadd.f32 %v771, %v791
        %v800 = vadd.f32 %v772, %v792
        %v801 = vadd.f32 %v773, %v793
        %v802 = vadd.f32 %v774, %v794
        %v803 = vadd.f32 %v775, %v795
        %v804 = vld [vmem:[%s711] sm:$0xff]
        %v805 = vld [vmem:[%s711 + $0x10] sm:$0xff]
        %v806 = vld [vmem:[%s711 + $0x20] sm:$0xff]
        %v807 = vld [vmem:[%s711 + $0x30] sm:$0xff]
        %v808 = vld [vmem:[%s711 + $0x40] sm:$0xff]
        %v809 = vld [vmem:[%s711 + $0x50] sm:$0xff]
        %v810 = vld [vmem:[%s711 + $0x60] sm:$0xff]
        %v811 = vld [vmem:[%s711 + $0x70] sm:$0xff]
        %v812 = vlaneseq
        %v813 = vshrl.u32 %v812, 7
        %v814 = vsub.s32 3, %v813
        %v815 = vrot.slane %v351, %v814
        %v816 = vmul.f32 %v804, %v815
        %v817 = vmul.f32 %v805, %v815
        %v818 = vmul.f32 %v806, %v815
        %v819 = vmul.f32 %v807, %v815
        %v820 = vmul.f32 %v808, %v815
        %v821 = vmul.f32 %v809, %v815
        %v822 = vmul.f32 %v810, %v815
        %v823 = vmul.f32 %v811, %v815
        %v824 = vadd.f32 %v796, %v816
        %v825 = vadd.f32 %v797, %v817
        %v826 = vadd.f32 %v798, %v818
        %v827 = vadd.f32 %v799, %v819
        %v828 = vadd.f32 %v800, %v820
        %v829 = vadd.f32 %v801, %v821
        %v830 = vadd.f32 %v802, %v822
        %v831 = vadd.f32 %v803, %v823
        %v832 = vld [vmem:[%s711 + $0x1] sm:$0xff]
        %v833 = vld [vmem:[%s711 + $0x11] sm:$0xff]
        %v834 = vld [vmem:[%s711 + $0x21] sm:$0xff]
        %v835 = vld [vmem:[%s711 + $0x31] sm:$0xff]
        %v836 = vld [vmem:[%s711 + $0x41] sm:$0xff]
        %v837 = vld [vmem:[%s711 + $0x51] sm:$0xff]
        %v838 = vld [vmem:[%s711 + $0x61] sm:$0xff]
        %v839 = vld [vmem:[%s711 + $0x71] sm:$0xff]
        %v840 = vlaneseq
        %v841 = vshrl.u32 %v840, 7
        %v842 = vsub.s32 4, %v841
        %v843 = vrot.slane %v351, %v842
        %v844 = vmul.f32 %v832, %v843
        %v845 = vmul.f32 %v833, %v843
        %v846 = vmul.f32 %v834, %v843
        %v847 = vmul.f32 %v835, %v843
        %v848 = vmul.f32 %v836, %v843
        %v849 = vmul.f32 %v837, %v843
        %v850 = vmul.f32 %v838, %v843
        %v851 = vmul.f32 %v839, %v843
        %v852 = vadd.f32 %v824, %v844
        %v853 = vadd.f32 %v825, %v845
        %v854 = vadd.f32 %v826, %v846
        %v855 = vadd.f32 %v827, %v847
        %v856 = vadd.f32 %v828, %v848
        %v857 = vadd.f32 %v829, %v849
        %v858 = vadd.f32 %v830, %v850
        %v859 = vadd.f32 %v831, %v851
        %v860 = vld [vmem:[%s711 + $0x2] sm:$0xff]
        %v861 = vld [vmem:[%s711 + $0x12] sm:$0xff]
        %v862 = vld [vmem:[%s711 + $0x22] sm:$0xff]
        %v863 = vld [vmem:[%s711 + $0x32] sm:$0xff]
        %v864 = vld [vmem:[%s711 + $0x42] sm:$0xff]
        %v865 = vld [vmem:[%s711 + $0x52] sm:$0xff]
        %v866 = vld [vmem:[%s711 + $0x62] sm:$0xff]
        %v867 = vld [vmem:[%s711 + $0x72] sm:$0xff]
        %v868 = vlaneseq
        %v869 = vshrl.u32 %v868, 7
        %v870 = vsub.s32 5, %v869
        %v871 = vrot.slane %v351, %v870
        %v872 = vmul.f32 %v860, %v871
        %v873 = vmul.f32 %v861, %v871
        %v874 = vmul.f32 %v862, %v871
        %v875 = vmul.f32 %v863, %v871
        %v876 = vmul.f32 %v864, %v871
        %v877 = vmul.f32 %v865, %v871
        %v878 = vmul.f32 %v866, %v871
        %v879 = vmul.f32 %v867, %v871
        %v880 = vadd.f32 %v852, %v872
        %v881 = vadd.f32 %v853, %v873
        %v882 = vadd.f32 %v854, %v874
        %v883 = vadd.f32 %v855, %v875
        %v884 = vadd.f32 %v856, %v876
        %v885 = vadd.f32 %v857, %v877
        %v886 = vadd.f32 %v858, %v878
        %v887 = vadd.f32 %v859, %v879
        %s888 = scalar_lea.vmem [#allocation2], 32
        %v889 = vld [vmem:[%s888] sm:$0xff]
        %v890 = vld [vmem:[%s888 + $0x10] sm:$0xff]
        %v891 = vld [vmem:[%s888 + $0x20] sm:$0xff]
        %v892 = vld [vmem:[%s888 + $0x30] sm:$0xff]
        %v893 = vld [vmem:[%s888 + $0x40] sm:$0xff]
        %v894 = vld [vmem:[%s888 + $0x50] sm:$0xff]
        %v895 = vld [vmem:[%s888 + $0x60] sm:$0xff]
        %v896 = vld [vmem:[%s888 + $0x70] sm:$0xff]
        %v897 = vlaneseq
        %v898 = vshrl.u32 %v897, 7
        %v899 = vsub.s32 6, %v898
        %v900 = vrot.slane %v351, %v899
        %v901 = vmul.f32 %v889, %v900
        %v902 = vmul.f32 %v890, %v900
        %v903 = vmul.f32 %v891, %v900
        %v904 = vmul.f32 %v892, %v900
        %v905 = vmul.f32 %v893, %v900
        %v906 = vmul.f32 %v894, %v900
        %v907 = vmul.f32 %v895, %v900
        %v908 = vmul.f32 %v896, %v900
        %v909 = vadd.f32 %v880, %v901
        %v910 = vadd.f32 %v881, %v902
        %v911 = vadd.f32 %v882, %v903
        %v912 = vadd.f32 %v883, %v904
        %v913 = vadd.f32 %v884, %v905
        %v914 = vadd.f32 %v885, %v906
        %v915 = vadd.f32 %v886, %v907
        %v916 = vadd.f32 %v887, %v908
        %v917 = vld [vmem:[%s888 + $0x1] sm:$0xff]
        %v918 = vld [vmem:[%s888 + $0x11] sm:$0xff]
        %v919 = vld [vmem:[%s888 + $0x21] sm:$0xff]
        %v920 = vld [vmem:[%s888 + $0x31] sm:$0xff]
        %v921 = vld [vmem:[%s888 + $0x41] sm:$0xff]
        %v922 = vld [vmem:[%s888 + $0x51] sm:$0xff]
        %v923 = vld [vmem:[%s888 + $0x61] sm:$0xff]
        %v924 = vld [vmem:[%s888 + $0x71] sm:$0xff]
        %v925 = vlaneseq
        %v926 = vshrl.u32 %v925, 7
        %v927 = vsub.s32 7, %v926
        %v928 = vrot.slane %v351, %v927
        %v929 = vmul.f32 %v917, %v928
        %v930 = vmul.f32 %v918, %v928
        %v931 = vmul.f32 %v919, %v928
        %v932 = vmul.f32 %v920, %v928
        %v933 = vmul.f32 %v921, %v928
        %v934 = vmul.f32 %v922, %v928
        %v935 = vmul.f32 %v923, %v928
        %v936 = vmul.f32 %v924, %v928
        %v937 = vadd.f32 %v909, %v929
        %v938 = vadd.f32 %v910, %v930
        %v939 = vadd.f32 %v911, %v931
        %v940 = vadd.f32 %v912, %v932
        %v941 = vadd.f32 %v913, %v933
        %v942 = vadd.f32 %v914, %v934
        %v943 = vadd.f32 %v915, %v935
        %v944 = vadd.f32 %v916, %v936
        %v945 = vld [vmem:[%s888 + $0x2] sm:$0xff]
        %v946 = vld [vmem:[%s888 + $0x12] sm:$0xff]
        %v947 = vld [vmem:[%s888 + $0x22] sm:$0xff]
        %v948 = vld [vmem:[%s888 + $0x32] sm:$0xff]
        %v949 = vld [vmem:[%s888 + $0x42] sm:$0xff]
        %v950 = vld [vmem:[%s888 + $0x52] sm:$0xff]
        %v951 = vld [vmem:[%s888 + $0x62] sm:$0xff]
        %v952 = vld [vmem:[%s888 + $0x72] sm:$0xff]
        %v953 = vlaneseq
        %v954 = vshrl.u32 %v953, 7
        %v955 = vsub.s32 0, %v954
        %v956 = vrot.slane %v352, %v955
        %v957 = vmul.f32 %v945, %v956
        %v958 = vmul.f32 %v946, %v956
        %v959 = vmul.f32 %v947, %v956
        %v960 = vmul.f32 %v948, %v956
        %v961 = vmul.f32 %v949, %v956
        %v962 = vmul.f32 %v950, %v956
        %v963 = vmul.f32 %v951, %v956
        %v964 = vmul.f32 %v952, %v956
        %v965 = vadd.f32 %v937, %v957
        %v966 = vadd.f32 %v938, %v958
        %v967 = vadd.f32 %v939, %v959
        %v968 = vadd.f32 %v940, %v960
        %v969 = vadd.f32 %v941, %v961
        %v970 = vadd.f32 %v942, %v962
        %v971 = vadd.f32 %v943, %v963
        %v972 = vadd.f32 %v944, %v964
        %v974 = vlaneseq
        %v975 = vshrl.u32 %v974, 7
        %v976 = vsub.s32 0, %v975
        %v977 = vrot.slane %v369, %v976
        %v980 = vsel %vm400, %v965, 0
        %v983 = vsel %vm400, %v966, 0
        %v986 = vsel %vm400, %v967, 0
        %v989 = vsel %vm400, %v968, 0
        %v992 = vsel %vm400, %v969, 0
        %v995 = vsel %vm400, %v970, 0
        %v998 = vsel %vm400, %v971, 0
        %v1001 = vsel %vm400, %v972, 0
        %1003 = vmatprep.subr.mxu0 0.0
        %1004 = vmatpush1.msra.mxu0 0.0
        %1005 = vmatprep.subr.mxu0 0.0
        %1006 = vmatpush1.msra.mxu0 0.0
        %1007 = vmatprep.subr.mxu0 0.0
        %1008 = vmatpush1.msra.mxu0 0.0
        %1009 = vmatprep.subr.mxu0 0.0
        %1010 = vmatpush1.msra.mxu0 0.0
        %1011 = vmatprep.subr.mxu0 0.0
        %1012 = vmatpush1.msra.mxu0 0.0
        %1013 = vmatprep.subr.mxu0 0.0
        %1014 = vmatpush1.msra.mxu0 0.0
        %1015 = vmatprep.subr.mxu0 0.0
        %1016 = vmatpush1.msra.mxu0 0.0
        %1017 = vmatprep.subr.mxu0 0.0
        %1018 = vmatpush1.msra.mxu0 0.0
        %1019 = vmatprep.subr.mxu0 0.0
        %1020 = vmatpush1.msra.mxu0 0.0
        %1021 = vmatprep.subr.mxu0 0.0
        %1022 = vmatpush1.msra.mxu0 0.0
        %1023 = vmatprep.subr.mxu0 0.0
        %1024 = vmatpush1.msra.mxu0 0.0
        %1025 = vmatprep.subr.mxu0 0.0
        %1026 = vmatpush1.msra.mxu0 0.0
        %1027 = vmatprep.subr.mxu0 0.0
        %1028 = vmatpush1.msra.mxu0 0.0
        %1029 = vmatprep.subr.mxu0 0.0
        %1030 = vmatpush1.msra.mxu0 0.0
        %1031 = vmatprep.subr.mxu0 0.0
        %1032 = vmatpush1.msra.mxu0 0.0
        %1033 = vmatprep.subr.mxu0 0.0
        %1034 = vmatpush1.msra.mxu0 %v363
        %1035 = vmatprep.subr.mxu0 0.0
        %1036 = vmatpush2.msra.mxu0 0.0
        %1037 = vmatprep.subr.mxu0 0.0
        %1038 = vmatpush2.msra.mxu0 0.0
        %1039 = vmatprep.subr.mxu0 0.0
        %1040 = vmatpush2.msra.mxu0 0.0
        %1041 = vmatprep.subr.mxu0 0.0
        %1042 = vmatpush2.msra.mxu0 0.0
        %1043 = vmatprep.subr.mxu0 0.0
        %1044 = vmatpush2.msra.mxu0 0.0
        %1045 = vmatprep.subr.mxu0 0.0
        %1046 = vmatpush2.msra.mxu0 0.0
        %1047 = vmatprep.subr.mxu0 0.0
        %1048 = vmatpush2.msra.mxu0 0.0
        %1049 = vmatprep.subr.mxu0 0.0
        %1050 = vmatpush2.msra.mxu0 0.0
        %1051 = vmatprep.subr.mxu0 0.0
        %1052 = vmatpush2.msra.mxu0 0.0
        %1053 = vmatprep.subr.mxu0 0.0
        %1054 = vmatpush2.msra.mxu0 0.0
        %1055 = vmatprep.subr.mxu0 0.0
        %1056 = vmatpush2.msra.mxu0 0.0
        %1057 = vmatprep.subr.mxu0 0.0
        %1058 = vmatpush2.msra.mxu0 0.0
        %1059 = vmatprep.subr.mxu0 0.0
        %1060 = vmatpush2.msra.mxu0 0.0
        %1061 = vmatprep.subr.mxu0 0.0
        %1062 = vmatpush2.msra.mxu0 0.0
        %1063 = vmatprep.subr.mxu0 0.0
        %1064 = vmatpush2.msra.mxu0 0.0
        %1065 = vmatprep.subr.mxu0 0.0
        %1066 = vmatpush2.msra.mxu0 0.0
        %1067 = vmatprep.mubr.f32.mxu0 0.0
        %1068 = vmatmul.mubr.f32.gmra.mxu0 %v980
        %v1069 = vpop.f32.mrf.mxu0
        %v1070 = vadd.f32 %v977, %v1069
        %v1071 = vpop.f32.mrf.mxu0
        %1072 = vmatprep.mubr.f32.mxu0 0.0
        %1073 = vmatmul.mubr.f32.gmra.mxu0 %v983
        %v1074 = vpop.f32.mrf.mxu0
        %v1075 = vadd.f32 %v977, %v1074
        %v1076 = vpop.f32.mrf.mxu0
        %1077 = vmatprep.mubr.f32.mxu0 0.0
        %1078 = vmatmul.mubr.f32.gmra.mxu0 %v986
        %v1079 = vpop.f32.mrf.mxu0
        %v1080 = vadd.f32 %v977, %v1079
        %v1081 = vpop.f32.mrf.mxu0
        %1082 = vmatprep.mubr.f32.mxu0 0.0
        %1083 = vmatmul.mubr.f32.gmra.mxu0 %v989
        %v1084 = vpop.f32.mrf.mxu0
        %v1085 = vadd.f32 %v977, %v1084
        %v1086 = vpop.f32.mrf.mxu0
        %1087 = vmatprep.mubr.f32.mxu0 0.0
        %1088 = vmatmul.mubr.f32.gmra.mxu0 %v992
        %v1089 = vpop.f32.mrf.mxu0
        %v1090 = vadd.f32 %v977, %v1089
        %v1091 = vpop.f32.mrf.mxu0
        %1092 = vmatprep.mubr.f32.mxu0 0.0
        %1093 = vmatmul.mubr.f32.gmra.mxu0 %v995
        %v1094 = vpop.f32.mrf.mxu0
        %v1095 = vadd.f32 %v977, %v1094
        %v1096 = vpop.f32.mrf.mxu0
        %1097 = vmatprep.mubr.f32.mxu0 0.0
        %1098 = vmatmul.mubr.f32.gmra.mxu0 %v998
        %v1099 = vpop.f32.mrf.mxu0
        %v1100 = vadd.f32 %v977, %v1099
        %v1101 = vpop.f32.mrf.mxu0
        %1102 = vmatprep.mubr.f32.mxu0 0.0
        %1103 = vmatmul.mubr.f32.gmra.mxu0 %v1001
        %v1104 = vpop.f32.mrf.mxu0
        %v1105 = vadd.f32 %v977, %v1104
        %v1106 = vpop.f32.mrf.mxu0
        %1107 = vdwg.mxu0
        %v1108 = vmax.f32 %v1070, 0.0
        %v1109 = vmax.f32 %v1075, 0.0
        %v1110 = vmax.f32 %v1080, 0.0
        %v1111 = vmax.f32 %v1085, 0.0
        %v1112 = vmax.f32 %v1090, 0.0
        %v1113 = vmax.f32 %v1095, 0.0
        %v1114 = vmax.f32 %v1100, 0.0
        %v1115 = vmax.f32 %v1105, 0.0
        %1116 = vst.msk [vmem:[#allocation2] sm:$0xff] %vm400, 0.0
        %1117 = vst.msk [vmem:[#allocation2 + $0x8] sm:$0x3] %vm691, 0.0
        %1118 = vst.msk [vmem:[#allocation2 + $0x10] sm:$0xff] %vm400, 0.0
        %1119 = vst.msk [vmem:[#allocation2 + $0x18] sm:$0x3] %vm691, 0.0
        %1120 = vst.msk [vmem:[#allocation2 + $0x20] sm:$0xff] %vm400, 0.0
        %1121 = vst.msk [vmem:[#allocation2 + $0x28] sm:$0x3] %vm691, 0.0
        %1122 = vst.msk [vmem:[#allocation2 + $0x30] sm:$0xff] %vm400, 0.0
        %1123 = vst.msk [vmem:[#allocation2 + $0x38] sm:$0x3] %vm691, 0.0
        %1124 = vst.msk [vmem:[#allocation2 + $0x40] sm:$0xff] %vm400, 0.0
        %1125 = vst.msk [vmem:[#allocation2 + $0x48] sm:$0x3] %vm691, 0.0
        %1126 = vst.msk [vmem:[#allocation2 + $0x50] sm:$0xff] %vm400, 0.0
        %1127 = vst.msk [vmem:[#allocation2 + $0x58] sm:$0x3] %vm691, 0.0
        %1128 = vst.msk [vmem:[#allocation2 + $0x60] sm:$0xff] %vm400, 0.0
        %1129 = vst.msk [vmem:[#allocation2 + $0x68] sm:$0x3] %vm691, 0.0
        %1130 = vst.msk [vmem:[#allocation2 + $0x70] sm:$0xff] %vm400, 0.0
        %1131 = vst.msk [vmem:[#allocation2 + $0x78] sm:$0x3] %vm691, 0.0
        %1132 = vst.msk [vmem:[#allocation2 + $0x80] sm:$0xff] %vm400, 0.0
        %1133 = vst.msk [vmem:[#allocation2 + $0x88] sm:$0x3] %vm691, 0.0
        %1134 = vst.msk [vmem:[#allocation2 + $0x90] sm:$0xff] %vm400, 0.0
        %1135 = vst.msk [vmem:[#allocation2 + $0x98] sm:$0x3] %vm691, 0.0
        %1136 = vst.msk [vmem:[%s711 + $0x1] sm:$0xff] %vm400, %v1108
        %1137 = vst.msk [vmem:[%s711 + $0x11] sm:$0xff] %vm400, %v1109
        %1138 = vst.msk [vmem:[%s711 + $0x21] sm:$0xff] %vm400, %v1110
        %1139 = vst.msk [vmem:[%s711 + $0x31] sm:$0xff] %vm400, %v1111
        %1140 = vst.msk [vmem:[%s711 + $0x41] sm:$0xff] %vm400, %v1112
        %1141 = vst.msk [vmem:[%s711 + $0x51] sm:$0xff] %vm400, %v1113
        %1142 = vst.msk [vmem:[%s711 + $0x61] sm:$0xff] %vm400, %v1114
        %1143 = vst.msk [vmem:[%s711 + $0x71] sm:$0xff] %vm400, %v1115
        %v1144 = vld [vmem:[#allocation2] sm:$0xff]
        %v1145 = vld [vmem:[#allocation2 + $0x10] sm:$0xff]
        %v1146 = vld [vmem:[#allocation2 + $0x20] sm:$0xff]
        %v1147 = vld [vmem:[#allocation2 + $0x30] sm:$0xff]
        %v1148 = vld [vmem:[#allocation2 + $0x40] sm:$0xff]
        %v1149 = vld [vmem:[#allocation2 + $0x50] sm:$0xff]
        %v1150 = vld [vmem:[#allocation2 + $0x60] sm:$0xff]
        %v1151 = vld [vmem:[#allocation2 + $0x70] sm:$0xff]
        %v1152 = vlaneseq
        %v1153 = vshrl.u32 %v1152, 7
        %v1154 = vsub.s32 0, %v1153
        %v1155 = vrot.slane %v353, %v1154
        %v1156 = vmul.f32 %v1144, %v1155
        %v1157 = vmul.f32 %v1145, %v1155
        %v1158 = vmul.f32 %v1146, %v1155
        %v1159 = vmul.f32 %v1147, %v1155
        %v1160 = vmul.f32 %v1148, %v1155
        %v1161 = vmul.f32 %v1149, %v1155
        %v1162 = vmul.f32 %v1150, %v1155
        %v1163 = vmul.f32 %v1151, %v1155
        %v1164 = vadd.f32 %v1156, 0.0
        %v1165 = vadd.f32 %v1157, 0.0
        %v1166 = vadd.f32 %v1158, 0.0
        %v1167 = vadd.f32 %v1159, 0.0
        %v1168 = vadd.f32 %v1160, 0.0
        %v1169 = vadd.f32 %v1161, 0.0
        %v1170 = vadd.f32 %v1162, 0.0
        %v1171 = vadd.f32 %v1163, 0.0
        %v1172 = vld [vmem:[#allocation2 + $0x1] sm:$0xff]
        %v1173 = vld [vmem:[#allocation2 + $0x11] sm:$0xff]
        %v1174 = vld [vmem:[#allocation2 + $0x21] sm:$0xff]
        %v1175 = vld [vmem:[#allocation2 + $0x31] sm:$0xff]
        %v1176 = vld [vmem:[#allocation2 + $0x41] sm:$0xff]
        %v1177 = vld [vmem:[#allocation2 + $0x51] sm:$0xff]
        %v1178 = vld [vmem:[#allocation2 + $0x61] sm:$0xff]
        %v1179 = vld [vmem:[#allocation2 + $0x71] sm:$0xff]
        %v1180 = vlaneseq
        %v1181 = vshrl.u32 %v1180, 7
        %v1182 = vsub.s32 1, %v1181
        %v1183 = vrot.slane %v353, %v1182
        %v1184 = vmul.f32 %v1172, %v1183
        %v1185 = vmul.f32 %v1173, %v1183
        %v1186 = vmul.f32 %v1174, %v1183
        %v1187 = vmul.f32 %v1175, %v1183
        %v1188 = vmul.f32 %v1176, %v1183
        %v1189 = vmul.f32 %v1177, %v1183
        %v1190 = vmul.f32 %v1178, %v1183
        %v1191 = vmul.f32 %v1179, %v1183
        %v1192 = vadd.f32 %v1164, %v1184
        %v1193 = vadd.f32 %v1165, %v1185
        %v1194 = vadd.f32 %v1166, %v1186
        %v1195 = vadd.f32 %v1167, %v1187
        %v1196 = vadd.f32 %v1168, %v1188
        %v1197 = vadd.f32 %v1169, %v1189
        %v1198 = vadd.f32 %v1170, %v1190
        %v1199 = vadd.f32 %v1171, %v1191
        %v1200 = vld [vmem:[#allocation2 + $0x2] sm:$0xff]
        %v1201 = vld [vmem:[#allocation2 + $0x12] sm:$0xff]
        %v1202 = vld [vmem:[#allocation2 + $0x22] sm:$0xff]
        %v1203 = vld [vmem:[#allocation2 + $0x32] sm:$0xff]
        %v1204 = vld [vmem:[#allocation2 + $0x42] sm:$0xff]
        %v1205 = vld [vmem:[#allocation2 + $0x52] sm:$0xff]
        %v1206 = vld [vmem:[#allocation2 + $0x62] sm:$0xff]
        %v1207 = vld [vmem:[#allocation2 + $0x72] sm:$0xff]
        %v1208 = vlaneseq
        %v1209 = vshrl.u32 %v1208, 7
        %v1210 = vsub.s32 2, %v1209
        %v1211 = vrot.slane %v353, %v1210
        %v1212 = vmul.f32 %v1200, %v1211
        %v1213 = vmul.f32 %v1201, %v1211
        %v1214 = vmul.f32 %v1202, %v1211
        %v1215 = vmul.f32 %v1203, %v1211
        %v1216 = vmul.f32 %v1204, %v1211
        %v1217 = vmul.f32 %v1205, %v1211
        %v1218 = vmul.f32 %v1206, %v1211
        %v1219 = vmul.f32 %v1207, %v1211
        %v1220 = vadd.f32 %v1192, %v1212
        %v1221 = vadd.f32 %v1193, %v1213
        %v1222 = vadd.f32 %v1194, %v1214
        %v1223 = vadd.f32 %v1195, %v1215
        %v1224 = vadd.f32 %v1196, %v1216
        %v1225 = vadd.f32 %v1197, %v1217
        %v1226 = vadd.f32 %v1198, %v1218
        %v1227 = vadd.f32 %v1199, %v1219
        %v1228 = vld [vmem:[%s711] sm:$0xff]
        %v1229 = vld [vmem:[%s711 + $0x10] sm:$0xff]
        %v1230 = vld [vmem:[%s711 + $0x20] sm:$0xff]
        %v1231 = vld [vmem:[%s711 + $0x30] sm:$0xff]
        %v1232 = vld [vmem:[%s711 + $0x40] sm:$0xff]
        %v1233 = vld [vmem:[%s711 + $0x50] sm:$0xff]
        %v1234 = vld [vmem:[%s711 + $0x60] sm:$0xff]
        %v1235 = vld [vmem:[%s711 + $0x70] sm:$0xff]
        %v1236 = vlaneseq
        %v1237 = vshrl.u32 %v1236, 7
        %v1238 = vsub.s32 3, %v1237
        %v1239 = vrot.slane %v353, %v1238
        %v1240 = vmul.f32 %v1228, %v1239
        %v1241 = vmul.f32 %v1229, %v1239
        %v1242 = vmul.f32 %v1230, %v1239
        %v1243 = vmul.f32 %v1231, %v1239
        %v1244 = vmul.f32 %v1232, %v1239
        %v1245 = vmul.f32 %v1233, %v1239
        %v1246 = vmul.f32 %v1234, %v1239
        %v1247 = vmul.f32 %v1235, %v1239
        %v1248 = vadd.f32 %v1220, %v1240
        %v1249 = vadd.f32 %v1221, %v1241
        %v1250 = vadd.f32 %v1222, %v1242
        %v1251 = vadd.f32 %v1223, %v1243
        %v1252 = vadd.f32 %v1224, %v1244
        %v1253 = vadd.f32 %v1225, %v1245
        %v1254 = vadd.f32 %v1226, %v1246
        %v1255 = vadd.f32 %v1227, %v1247
        %v1256 = vld [vmem:[%s711 + $0x1] sm:$0xff]
        %v1257 = vld [vmem:[%s711 + $0x11] sm:$0xff]
        %v1258 = vld [vmem:[%s711 + $0x21] sm:$0xff]
        %v1259 = vld [vmem:[%s711 + $0x31] sm:$0xff]
        %v1260 = vld [vmem:[%s711 + $0x41] sm:$0xff]
        %v1261 = vld [vmem:[%s711 + $0x51] sm:$0xff]
        %v1262 = vld [vmem:[%s711 + $0x61] sm:$0xff]
        %v1263 = vld [vmem:[%s711 + $0x71] sm:$0xff]
        %v1264 = vlaneseq
        %v1265 = vshrl.u32 %v1264, 7
        %v1266 = vsub.s32 4, %v1265
        %v1267 = vrot.slane %v353, %v1266
        %v1268 = vmul.f32 %v1256, %v1267
        %v1269 = vmul.f32 %v1257, %v1267
        %v1270 = vmul.f32 %v1258, %v1267
        %v1271 = vmul.f32 %v1259, %v1267
        %v1272 = vmul.f32 %v1260, %v1267
        %v1273 = vmul.f32 %v1261, %v1267
        %v1274 = vmul.f32 %v1262, %v1267
        %v1275 = vmul.f32 %v1263, %v1267
        %v1276 = vadd.f32 %v1248, %v1268
        %v1277 = vadd.f32 %v1249, %v1269
        %v1278 = vadd.f32 %v1250, %v1270
        %v1279 = vadd.f32 %v1251, %v1271
        %v1280 = vadd.f32 %v1252, %v1272
        %v1281 = vadd.f32 %v1253, %v1273
        %v1282 = vadd.f32 %v1254, %v1274
        %v1283 = vadd.f32 %v1255, %v1275
        %v1284 = vld [vmem:[%s711 + $0x2] sm:$0xff]
        %v1285 = vld [vmem:[%s711 + $0x12] sm:$0xff]
        %v1286 = vld [vmem:[%s711 + $0x22] sm:$0xff]
        %v1287 = vld [vmem:[%s711 + $0x32] sm:$0xff]
        %v1288 = vld [vmem:[%s711 + $0x42] sm:$0xff]
        %v1289 = vld [vmem:[%s711 + $0x52] sm:$0xff]
        %v1290 = vld [vmem:[%s711 + $0x62] sm:$0xff]
        %v1291 = vld [vmem:[%s711 + $0x72] sm:$0xff]
        %v1292 = vlaneseq
        %v1293 = vshrl.u32 %v1292, 7
        %v1294 = vsub.s32 5, %v1293
        %v1295 = vrot.slane %v353, %v1294
        %v1296 = vmul.f32 %v1284, %v1295
        %v1297 = vmul.f32 %v1285, %v1295
        %v1298 = vmul.f32 %v1286, %v1295
        %v1299 = vmul.f32 %v1287, %v1295
        %v1300 = vmul.f32 %v1288, %v1295
        %v1301 = vmul.f32 %v1289, %v1295
        %v1302 = vmul.f32 %v1290, %v1295
        %v1303 = vmul.f32 %v1291, %v1295
        %v1304 = vadd.f32 %v1276, %v1296
        %v1305 = vadd.f32 %v1277, %v1297
        %v1306 = vadd.f32 %v1278, %v1298
        %v1307 = vadd.f32 %v1279, %v1299
        %v1308 = vadd.f32 %v1280, %v1300
        %v1309 = vadd.f32 %v1281, %v1301
        %v1310 = vadd.f32 %v1282, %v1302
        %v1311 = vadd.f32 %v1283, %v1303
        %v1312 = vld [vmem:[%s888] sm:$0xff]
        %v1313 = vld [vmem:[%s888 + $0x10] sm:$0xff]
        %v1314 = vld [vmem:[%s888 + $0x20] sm:$0xff]
        %v1315 = vld [vmem:[%s888 + $0x30] sm:$0xff]
        %v1316 = vld [vmem:[%s888 + $0x40] sm:$0xff]
        %v1317 = vld [vmem:[%s888 + $0x50] sm:$0xff]
        %v1318 = vld [vmem:[%s888 + $0x60] sm:$0xff]
        %v1319 = vld [vmem:[%s888 + $0x70] sm:$0xff]
        %v1320 = vlaneseq
        %v1321 = vshrl.u32 %v1320, 7
        %v1322 = vsub.s32 6, %v1321
        %v1323 = vrot.slane %v353, %v1322
        %v1324 = vmul.f32 %v1312, %v1323
        %v1325 = vmul.f32 %v1313, %v1323
        %v1326 = vmul.f32 %v1314, %v1323
        %v1327 = vmul.f32 %v1315, %v1323
        %v1328 = vmul.f32 %v1316, %v1323
        %v1329 = vmul.f32 %v1317, %v1323
        %v1330 = vmul.f32 %v1318, %v1323
        %v1331 = vmul.f32 %v1319, %v1323
        %v1332 = vadd.f32 %v1304, %v1324
        %v1333 = vadd.f32 %v1305, %v1325
        %v1334 = vadd.f32 %v1306, %v1326
        %v1335 = vadd.f32 %v1307, %v1327
        %v1336 = vadd.f32 %v1308, %v1328
        %v1337 = vadd.f32 %v1309, %v1329
        %v1338 = vadd.f32 %v1310, %v1330
        %v1339 = vadd.f32 %v1311, %v1331
        %v1340 = vld [vmem:[%s888 + $0x1] sm:$0xff]
        %v1341 = vld [vmem:[%s888 + $0x11] sm:$0xff]
        %v1342 = vld [vmem:[%s888 + $0x21] sm:$0xff]
        %v1343 = vld [vmem:[%s888 + $0x31] sm:$0xff]
        %v1344 = vld [vmem:[%s888 + $0x41] sm:$0xff]
        %v1345 = vld [vmem:[%s888 + $0x51] sm:$0xff]
        %v1346 = vld [vmem:[%s888 + $0x61] sm:$0xff]
        %v1347 = vld [vmem:[%s888 + $0x71] sm:$0xff]
        %v1348 = vlaneseq
        %v1349 = vshrl.u32 %v1348, 7
        %v1350 = vsub.s32 7, %v1349
        %v1351 = vrot.slane %v353, %v1350
        %v1352 = vmul.f32 %v1340, %v1351
        %v1353 = vmul.f32 %v1341, %v1351
        %v1354 = vmul.f32 %v1342, %v1351
        %v1355 = vmul.f32 %v1343, %v1351
        %v1356 = vmul.f32 %v1344, %v1351
        %v1357 = vmul.f32 %v1345, %v1351
        %v1358 = vmul.f32 %v1346, %v1351
        %v1359 = vmul.f32 %v1347, %v1351
        %v1360 = vadd.f32 %v1332, %v1352
        %v1361 = vadd.f32 %v1333, %v1353
        %v1362 = vadd.f32 %v1334, %v1354
        %v1363 = vadd.f32 %v1335, %v1355
        %v1364 = vadd.f32 %v1336, %v1356
        %v1365 = vadd.f32 %v1337, %v1357
        %v1366 = vadd.f32 %v1338, %v1358
        %v1367 = vadd.f32 %v1339, %v1359
        %v1368 = vld [vmem:[%s888 + $0x2] sm:$0xff]
        %v1369 = vld [vmem:[%s888 + $0x12] sm:$0xff]
        %v1370 = vld [vmem:[%s888 + $0x22] sm:$0xff]
        %v1371 = vld [vmem:[%s888 + $0x32] sm:$0xff]
        %v1372 = vld [vmem:[%s888 + $0x42] sm:$0xff]
        %v1373 = vld [vmem:[%s888 + $0x52] sm:$0xff]
        %v1374 = vld [vmem:[%s888 + $0x62] sm:$0xff]
        %v1375 = vld [vmem:[%s888 + $0x72] sm:$0xff]
        %v1376 = vlaneseq
        %v1377 = vshrl.u32 %v1376, 7
        %v1378 = vsub.s32 0, %v1377
        %v1379 = vrot.slane %v354, %v1378
        %v1380 = vmul.f32 %v1368, %v1379
        %v1381 = vmul.f32 %v1369, %v1379
        %v1382 = vmul.f32 %v1370, %v1379
        %v1383 = vmul.f32 %v1371, %v1379
        %v1384 = vmul.f32 %v1372, %v1379
        %v1385 = vmul.f32 %v1373, %v1379
        %v1386 = vmul.f32 %v1374, %v1379
        %v1387 = vmul.f32 %v1375, %v1379
        %v1388 = vadd.f32 %v1360, %v1380
        %v1389 = vadd.f32 %v1361, %v1381
        %v1390 = vadd.f32 %v1362, %v1382
        %v1391 = vadd.f32 %v1363, %v1383
        %v1392 = vadd.f32 %v1364, %v1384
        %v1393 = vadd.f32 %v1365, %v1385
        %v1394 = vadd.f32 %v1366, %v1386
        %v1395 = vadd.f32 %v1367, %v1387
        %v1397 = vlaneseq
        %v1398 = vshrl.u32 %v1397, 7
        %v1399 = vsub.s32 0, %v1398
        %v1400 = vrot.slane %v370, %v1399
        %v1403 = vsel %vm400, %v1388, 0
        %v1406 = vsel %vm400, %v1389, 0
        %v1409 = vsel %vm400, %v1390, 0
        %v1412 = vsel %vm400, %v1391, 0
        %v1415 = vsel %vm400, %v1392, 0
        %v1418 = vsel %vm400, %v1393, 0
        %v1421 = vsel %vm400, %v1394, 0
        %v1424 = vsel %vm400, %v1395, 0
        %1426 = vmatprep.subr.mxu0 0.0
        %1427 = vmatpush1.msra.mxu0 0.0
        %1428 = vmatprep.subr.mxu0 0.0
        %1429 = vmatpush1.msra.mxu0 0.0
        %1430 = vmatprep.subr.mxu0 0.0
        %1431 = vmatpush1.msra.mxu0 0.0
        %1432 = vmatprep.subr.mxu0 0.0
        %1433 = vmatpush1.msra.mxu0 0.0
        %1434 = vmatprep.subr.mxu0 0.0
        %1435 = vmatpush1.msra.mxu0 0.0
        %1436 = vmatprep.subr.mxu0 0.0
        %1437 = vmatpush1.msra.mxu0 0.0
        %1438 = vmatprep.subr.mxu0 0.0
        %1439 = vmatpush1.msra.mxu0 0.0
        %1440 = vmatprep.subr.mxu0 0.0
        %1441 = vmatpush1.msra.mxu0 0.0
        %1442 = vmatprep.subr.mxu0 0.0
        %1443 = vmatpush1.msra.mxu0 0.0
        %1444 = vmatprep.subr.mxu0 0.0
        %1445 = vmatpush1.msra.mxu0 0.0
        %1446 = vmatprep.subr.mxu0 0.0
        %1447 = vmatpush1.msra.mxu0 0.0
        %1448 = vmatprep.subr.mxu0 0.0
        %1449 = vmatpush1.msra.mxu0 0.0
        %1450 = vmatprep.subr.mxu0 0.0
        %1451 = vmatpush1.msra.mxu0 0.0
        %1452 = vmatprep.subr.mxu0 0.0
        %1453 = vmatpush1.msra.mxu0 0.0
        %1454 = vmatprep.subr.mxu0 0.0
        %1455 = vmatpush1.msra.mxu0 0.0
        %1456 = vmatprep.subr.mxu0 0.0
        %1457 = vmatpush1.msra.mxu0 %v364
        %1458 = vmatprep.subr.mxu0 0.0
        %1459 = vmatpush2.msra.mxu0 0.0
        %1460 = vmatprep.subr.mxu0 0.0
        %1461 = vmatpush2.msra.mxu0 0.0
        %1462 = vmatprep.subr.mxu0 0.0
        %1463 = vmatpush2.msra.mxu0 0.0
        %1464 = vmatprep.subr.mxu0 0.0
        %1465 = vmatpush2.msra.mxu0 0.0
        %1466 = vmatprep.subr.mxu0 0.0
        %1467 = vmatpush2.msra.mxu0 0.0
        %1468 = vmatprep.subr.mxu0 0.0
        %1469 = vmatpush2.msra.mxu0 0.0
        %1470 = vmatprep.subr.mxu0 0.0
        %1471 = vmatpush2.msra.mxu0 0.0
        %1472 = vmatprep.subr.mxu0 0.0
        %1473 = vmatpush2.msra.mxu0 0.0
        %1474 = vmatprep.subr.mxu0 0.0
        %1475 = vmatpush2.msra.mxu0 0.0
        %1476 = vmatprep.subr.mxu0 0.0
        %1477 = vmatpush2.msra.mxu0 0.0
        %1478 = vmatprep.subr.mxu0 0.0
        %1479 = vmatpush2.msra.mxu0 0.0
        %1480 = vmatprep.subr.mxu0 0.0
        %1481 = vmatpush2.msra.mxu0 0.0
        %1482 = vmatprep.subr.mxu0 0.0
        %1483 = vmatpush2.msra.mxu0 0.0
        %1484 = vmatprep.subr.mxu0 0.0
        %1485 = vmatpush2.msra.mxu0 0.0
        %1486 = vmatprep.subr.mxu0 0.0
        %1487 = vmatpush2.msra.mxu0 0.0
        %1488 = vmatprep.subr.mxu0 0.0
        %1489 = vmatpush2.msra.mxu0 0.0
        %1490 = vmatprep.mubr.f32.mxu0 0.0
        %1491 = vmatmul.mubr.f32.gmra.mxu0 %v1403
        %v1492 = vpop.f32.mrf.mxu0
        %v1493 = vadd.f32 %v1400, %v1492
        %v1494 = vpop.f32.mrf.mxu0
        %1495 = vmatprep.mubr.f32.mxu0 0.0
        %1496 = vmatmul.mubr.f32.gmra.mxu0 %v1406
        %v1497 = vpop.f32.mrf.mxu0
        %v1498 = vadd.f32 %v1400, %v1497
        %v1499 = vpop.f32.mrf.mxu0
        %1500 = vmatprep.mubr.f32.mxu0 0.0
        %1501 = vmatmul.mubr.f32.gmra.mxu0 %v1409
        %v1502 = vpop.f32.mrf.mxu0
        %v1503 = vadd.f32 %v1400, %v1502
        %v1504 = vpop.f32.mrf.mxu0
        %1505 = vmatprep.mubr.f32.mxu0 0.0
        %1506 = vmatmul.mubr.f32.gmra.mxu0 %v1412
        %v1507 = vpop.f32.mrf.mxu0
        %v1508 = vadd.f32 %v1400, %v1507
        %v1509 = vpop.f32.mrf.mxu0
        %1510 = vmatprep.mubr.f32.mxu0 0.0
        %1511 = vmatmul.mubr.f32.gmra.mxu0 %v1415
        %v1512 = vpop.f32.mrf.mxu0
        %v1513 = vadd.f32 %v1400, %v1512
        %v1514 = vpop.f32.mrf.mxu0
        %1515 = vmatprep.mubr.f32.mxu0 0.0
        %1516 = vmatmul.mubr.f32.gmra.mxu0 %v1418
        %v1517 = vpop.f32.mrf.mxu0
        %v1518 = vadd.f32 %v1400, %v1517
        %v1519 = vpop.f32.mrf.mxu0
        %1520 = vmatprep.mubr.f32.mxu0 0.0
        %1521 = vmatmul.mubr.f32.gmra.mxu0 %v1421
        %v1522 = vpop.f32.mrf.mxu0
        %v1523 = vadd.f32 %v1400, %v1522
        %v1524 = vpop.f32.mrf.mxu0
        %1525 = vmatprep.mubr.f32.mxu0 0.0
        %1526 = vmatmul.mubr.f32.gmra.mxu0 %v1424
        %v1527 = vpop.f32.mrf.mxu0
        %v1528 = vadd.f32 %v1400, %v1527
        %v1529 = vpop.f32.mrf.mxu0
        %1530 = vdwg.mxu0
        %v1531 = vadd.f32 %v1493, %v644
        %v1532 = vadd.f32 %v1498, %v649
        %v1533 = vadd.f32 %v1503, %v654
        %v1534 = vadd.f32 %v1508, %v659
        %v1535 = vadd.f32 %v1513, %v664
        %v1536 = vadd.f32 %v1518, %v669
        %v1537 = vadd.f32 %v1523, %v674
        %v1538 = vadd.f32 %v1528, %v679
        %1539 = vst.msk [vmem:[#allocation2] sm:$0xff] %vm400, 0.0
        %1540 = vst.msk [vmem:[#allocation2 + $0x8] sm:$0x3] %vm691, 0.0
        %1541 = vst.msk [vmem:[#allocation2 + $0x10] sm:$0xff] %vm400, 0.0
        %1542 = vst.msk [vmem:[#allocation2 + $0x18] sm:$0x3] %vm691, 0.0
        %1543 = vst.msk [vmem:[#allocation2 + $0x20] sm:$0xff] %vm400, 0.0
        %1544 = vst.msk [vmem:[#allocation2 + $0x28] sm:$0x3] %vm691, 0.0
        %1545 = vst.msk [vmem:[#allocation2 + $0x30] sm:$0xff] %vm400, 0.0
        %1546 = vst.msk [vmem:[#allocation2 + $0x38] sm:$0x3] %vm691, 0.0
        %1547 = vst.msk [vmem:[#allocation2 + $0x40] sm:$0xff] %vm400, 0.0
        %1548 = vst.msk [vmem:[#allocation2 + $0x48] sm:$0x3] %vm691, 0.0
        %1549 = vst.msk [vmem:[#allocation2 + $0x50] sm:$0xff] %vm400, 0.0
        %1550 = vst.msk [vmem:[#allocation2 + $0x58] sm:$0x3] %vm691, 0.0
        %1551 = vst.msk [vmem:[#allocation2 + $0x60] sm:$0xff] %vm400, 0.0
        %1552 = vst.msk [vmem:[#allocation2 + $0x68] sm:$0x3] %vm691, 0.0
        %1553 = vst.msk [vmem:[#allocation2 + $0x70] sm:$0xff] %vm400, 0.0
        %1554 = vst.msk [vmem:[#allocation2 + $0x78] sm:$0x3] %vm691, 0.0
        %1555 = vst.msk [vmem:[#allocation2 + $0x80] sm:$0xff] %vm400, 0.0
        %1556 = vst.msk [vmem:[#allocation2 + $0x88] sm:$0x3] %vm691, 0.0
        %1557 = vst.msk [vmem:[#allocation2 + $0x90] sm:$0xff] %vm400, 0.0
        %1558 = vst.msk [vmem:[#allocation2 + $0x98] sm:$0x3] %vm691, 0.0
        %1559 = vst.msk [vmem:[%s711 + $0x1] sm:$0xff] %vm400, %v682
        %1560 = vst.msk [vmem:[%s711 + $0x11] sm:$0xff] %vm400, %v683
        %1561 = vst.msk [vmem:[%s711 + $0x21] sm:$0xff] %vm400, %v684
        %1562 = vst.msk [vmem:[%s711 + $0x31] sm:$0xff] %vm400, %v685
        %1563 = vst.msk [vmem:[%s711 + $0x41] sm:$0xff] %vm400, %v686
        %1564 = vst.msk [vmem:[%s711 + $0x51] sm:$0xff] %vm400, %v687
        %1565 = vst.msk [vmem:[%s711 + $0x61] sm:$0xff] %vm400, %v688
        %1566 = vst.msk [vmem:[%s711 + $0x71] sm:$0xff] %vm400, %v689
        %v1567 = vld [vmem:[#allocation2] sm:$0xff]
        %v1568 = vld [vmem:[#allocation2 + $0x10] sm:$0xff]
        %v1569 = vld [vmem:[#allocation2 + $0x20] sm:$0xff]
        %v1570 = vld [vmem:[#allocation2 + $0x30] sm:$0xff]
        %v1571 = vld [vmem:[#allocation2 + $0x40] sm:$0xff]
        %v1572 = vld [vmem:[#allocation2 + $0x50] sm:$0xff]
        %v1573 = vld [vmem:[#allocation2 + $0x60] sm:$0xff]
        %v1574 = vld [vmem:[#allocation2 + $0x70] sm:$0xff]
        %v1575 = vlaneseq
        %v1576 = vshrl.u32 %v1575, 7
        %v1577 = vsub.s32 0, %v1576
        %v1578 = vrot.slane %v355, %v1577
        %v1579 = vmul.f32 %v1567, %v1578
        %v1580 = vmul.f32 %v1568, %v1578
        %v1581 = vmul.f32 %v1569, %v1578
        %v1582 = vmul.f32 %v1570, %v1578
        %v1583 = vmul.f32 %v1571, %v1578
        %v1584 = vmul.f32 %v1572, %v1578
        %v1585 = vmul.f32 %v1573, %v1578
        %v1586 = vmul.f32 %v1574, %v1578
        %v1587 = vadd.f32 %v1579, 0.0
        %v1588 = vadd.f32 %v1580, 0.0
        %v1589 = vadd.f32 %v1581, 0.0
        %v1590 = vadd.f32 %v1582, 0.0
        %v1591 = vadd.f32 %v1583, 0.0
        %v1592 = vadd.f32 %v1584, 0.0
        %v1593 = vadd.f32 %v1585, 0.0
        %v1594 = vadd.f32 %v1586, 0.0
        %v1595 = vld [vmem:[#allocation2 + $0x1] sm:$0xff]
        %v1596 = vld [vmem:[#allocation2 + $0x11] sm:$0xff]
        %v1597 = vld [vmem:[#allocation2 + $0x21] sm:$0xff]
        %v1598 = vld [vmem:[#allocation2 + $0x31] sm:$0xff]
        %v1599 = vld [vmem:[#allocation2 + $0x41] sm:$0xff]
        %v1600 = vld [vmem:[#allocation2 + $0x51] sm:$0xff]
        %v1601 = vld [vmem:[#allocation2 + $0x61] sm:$0xff]
        %v1602 = vld [vmem:[#allocation2 + $0x71] sm:$0xff]
        %v1603 = vlaneseq
        %v1604 = vshrl.u32 %v1603, 7
        %v1605 = vsub.s32 1, %v1604
        %v1606 = vrot.slane %v355, %v1605
        %v1607 = vmul.f32 %v1595, %v1606
        %v1608 = vmul.f32 %v1596, %v1606
        %v1609 = vmul.f32 %v1597, %v1606
        %v1610 = vmul.f32 %v1598, %v1606
        %v1611 = vmul.f32 %v1599, %v1606
        %v1612 = vmul.f32 %v1600, %v1606
        %v1613 = vmul.f32 %v1601, %v1606
        %v1614 = vmul.f32 %v1602, %v1606
        %v1615 = vadd.f32 %v1587, %v1607
        %v1616 = vadd.f32 %v1588, %v1608
        %v1617 = vadd.f32 %v1589, %v1609
        %v1618 = vadd.f32 %v1590, %v1610
        %v1619 = vadd.f32 %v1591, %v1611
        %v1620 = vadd.f32 %v1592, %v1612
        %v1621 = vadd.f32 %v1593, %v1613
        %v1622 = vadd.f32 %v1594, %v1614
        %v1623 = vld [vmem:[#allocation2 + $0x2] sm:$0xff]
        %v1624 = vld [vmem:[#allocation2 + $0x12] sm:$0xff]
        %v1625 = vld [vmem:[#allocation2 + $0x22] sm:$0xff]
        %v1626 = vld [vmem:[#allocation2 + $0x32] sm:$0xff]
        %v1627 = vld [vmem:[#allocation2 + $0x42] sm:$0xff]
        %v1628 = vld [vmem:[#allocation2 + $0x52] sm:$0xff]
        %v1629 = vld [vmem:[#allocation2 + $0x62] sm:$0xff]
        %v1630 = vld [vmem:[#allocation2 + $0x72] sm:$0xff]
        %v1631 = vlaneseq
        %v1632 = vshrl.u32 %v1631, 7
        %v1633 = vsub.s32 2, %v1632
        %v1634 = vrot.slane %v355, %v1633
        %v1635 = vmul.f32 %v1623, %v1634
        %v1636 = vmul.f32 %v1624, %v1634
        %v1637 = vmul.f32 %v1625, %v1634
        %v1638 = vmul.f32 %v1626, %v1634
        %v1639 = vmul.f32 %v1627, %v1634
        %v1640 = vmul.f32 %v1628, %v1634
        %v1641 = vmul.f32 %v1629, %v1634
        %v1642 = vmul.f32 %v1630, %v1634
        %v1643 = vadd.f32 %v1615, %v1635
        %v1644 = vadd.f32 %v1616, %v1636
        %v1645 = vadd.f32 %v1617, %v1637
        %v1646 = vadd.f32 %v1618, %v1638
        %v1647 = vadd.f32 %v1619, %v1639
        %v1648 = vadd.f32 %v1620, %v1640
        %v1649 = vadd.f32 %v1621, %v1641
        %v1650 = vadd.f32 %v1622, %v1642
        %v1651 = vld [vmem:[%s711] sm:$0xff]
        %v1652 = vld [vmem:[%s711 + $0x10] sm:$0xff]
        %v1653 = vld [vmem:[%s711 + $0x20] sm:$0xff]
        %v1654 = vld [vmem:[%s711 + $0x30] sm:$0xff]
        %v1655 = vld [vmem:[%s711 + $0x40] sm:$0xff]
        %v1656 = vld [vmem:[%s711 + $0x50] sm:$0xff]
        %v1657 = vld [vmem:[%s711 + $0x60] sm:$0xff]
        %v1658 = vld [vmem:[%s711 + $0x70] sm:$0xff]
        %v1659 = vlaneseq
        %v1660 = vshrl.u32 %v1659, 7
        %v1661 = vsub.s32 3, %v1660
        %v1662 = vrot.slane %v355, %v1661
        %v1663 = vmul.f32 %v1651, %v1662
        %v1664 = vmul.f32 %v1652, %v1662
        %v1665 = vmul.f32 %v1653, %v1662
        %v1666 = vmul.f32 %v1654, %v1662
        %v1667 = vmul.f32 %v1655, %v1662
        %v1668 = vmul.f32 %v1656, %v1662
        %v1669 = vmul.f32 %v1657, %v1662
        %v1670 = vmul.f32 %v1658, %v1662
        %v1671 = vadd.f32 %v1643, %v1663
        %v1672 = vadd.f32 %v1644, %v1664
        %v1673 = vadd.f32 %v1645, %v1665
        %v1674 = vadd.f32 %v1646, %v1666
        %v1675 = vadd.f32 %v1647, %v1667
        %v1676 = vadd.f32 %v1648, %v1668
        %v1677 = vadd.f32 %v1649, %v1669
        %v1678 = vadd.f32 %v1650, %v1670
        %v1679 = vld [vmem:[%s711 + $0x1] sm:$0xff]
        %v1680 = vld [vmem:[%s711 + $0x11] sm:$0xff]
        %v1681 = vld [vmem:[%s711 + $0x21] sm:$0xff]
        %v1682 = vld [vmem:[%s711 + $0x31] sm:$0xff]
        %v1683 = vld [vmem:[%s711 + $0x41] sm:$0xff]
        %v1684 = vld [vmem:[%s711 + $0x51] sm:$0xff]
        %v1685 = vld [vmem:[%s711 + $0x61] sm:$0xff]
        %v1686 = vld [vmem:[%s711 + $0x71] sm:$0xff]
        %v1687 = vlaneseq
        %v1688 = vshrl.u32 %v1687, 7
        %v1689 = vsub.s32 4, %v1688
        %v1690 = vrot.slane %v355, %v1689
        %v1691 = vmul.f32 %v1679, %v1690
        %v1692 = vmul.f32 %v1680, %v1690
        %v1693 = vmul.f32 %v1681, %v1690
        %v1694 = vmul.f32 %v1682, %v1690
        %v1695 = vmul.f32 %v1683, %v1690
        %v1696 = vmul.f32 %v1684, %v1690
        %v1697 = vmul.f32 %v1685, %v1690
        %v1698 = vmul.f32 %v1686, %v1690
        %v1699 = vadd.f32 %v1671, %v1691
        %v1700 = vadd.f32 %v1672, %v1692
        %v1701 = vadd.f32 %v1673, %v1693
        %v1702 = vadd.f32 %v1674, %v1694
        %v1703 = vadd.f32 %v1675, %v1695
        %v1704 = vadd.f32 %v1676, %v1696
        %v1705 = vadd.f32 %v1677, %v1697
        %v1706 = vadd.f32 %v1678, %v1698
        %v1707 = vld [vmem:[%s711 + $0x2] sm:$0xff]
        %v1708 = vld [vmem:[%s711 + $0x12] sm:$0xff]
        %v1709 = vld [vmem:[%s711 + $0x22] sm:$0xff]
        %v1710 = vld [vmem:[%s711 + $0x32] sm:$0xff]
        %v1711 = vld [vmem:[%s711 + $0x42] sm:$0xff]
        %v1712 = vld [vmem:[%s711 + $0x52] sm:$0xff]
        %v1713 = vld [vmem:[%s711 + $0x62] sm:$0xff]
        %v1714 = vld [vmem:[%s711 + $0x72] sm:$0xff]
        %v1715 = vlaneseq
        %v1716 = vshrl.u32 %v1715, 7
        %v1717 = vsub.s32 5, %v1716
        %v1718 = vrot.slane %v355, %v1717
        %v1719 = vmul.f32 %v1707, %v1718
        %v1720 = vmul.f32 %v1708, %v1718
        %v1721 = vmul.f32 %v1709, %v1718
        %v1722 = vmul.f32 %v1710, %v1718
        %v1723 = vmul.f32 %v1711, %v1718
        %v1724 = vmul.f32 %v1712, %v1718
        %v1725 = vmul.f32 %v1713, %v1718
        %v1726 = vmul.f32 %v1714, %v1718
        %v1727 = vadd.f32 %v1699, %v1719
        %v1728 = vadd.f32 %v1700, %v1720
        %v1729 = vadd.f32 %v1701, %v1721
        %v1730 = vadd.f32 %v1702, %v1722
        %v1731 = vadd.f32 %v1703, %v1723
        %v1732 = vadd.f32 %v1704, %v1724
        %v1733 = vadd.f32 %v1705, %v1725
        %v1734 = vadd.f32 %v1706, %v1726
        %v1735 = vld [vmem:[%s888] sm:$0xff]
        %v1736 = vld [vmem:[%s888 + $0x10] sm:$0xff]
        %v1737 = vld [vmem:[%s888 + $0x20] sm:$0xff]
        %v1738 = vld [vmem:[%s888 + $0x30] sm:$0xff]
        %v1739 = vld [vmem:[%s888 + $0x40] sm:$0xff]
        %v1740 = vld [vmem:[%s888 + $0x50] sm:$0xff]
        %v1741 = vld [vmem:[%s888 + $0x60] sm:$0xff]
        %v1742 = vld [vmem:[%s888 + $0x70] sm:$0xff]
        %v1743 = vlaneseq
        %v1744 = vshrl.u32 %v1743, 7
        %v1745 = vsub.s32 6, %v1744
        %v1746 = vrot.slane %v355, %v1745
        %v1747 = vmul.f32 %v1735, %v1746
        %v1748 = vmul.f32 %v1736, %v1746
        %v1749 = vmul.f32 %v1737, %v1746
        %v1750 = vmul.f32 %v1738, %v1746
        %v1751 = vmul.f32 %v1739, %v1746
        %v1752 = vmul.f32 %v1740, %v1746
        %v1753 = vmul.f32 %v1741, %v1746
        %v1754 = vmul.f32 %v1742, %v1746
        %v1755 = vadd.f32 %v1727, %v1747
        %v1756 = vadd.f32 %v1728, %v1748
        %v1757 = vadd.f32 %v1729, %v1749
        %v1758 = vadd.f32 %v1730, %v1750
        %v1759 = vadd.f32 %v1731, %v1751
        %v1760 = vadd.f32 %v1732, %v1752
        %v1761 = vadd.f32 %v1733, %v1753
        %v1762 = vadd.f32 %v1734, %v1754
        %v1763 = vld [vmem:[%s888 + $0x1] sm:$0xff]
        %v1764 = vld [vmem:[%s888 + $0x11] sm:$0xff]
        %v1765 = vld [vmem:[%s888 + $0x21] sm:$0xff]
        %v1766 = vld [vmem:[%s888 + $0x31] sm:$0xff]
        %v1767 = vld [vmem:[%s888 + $0x41] sm:$0xff]
        %v1768 = vld [vmem:[%s888 + $0x51] sm:$0xff]
        %v1769 = vld [vmem:[%s888 + $0x61] sm:$0xff]
        %v1770 = vld [vmem:[%s888 + $0x71] sm:$0xff]
        %v1771 = vlaneseq
        %v1772 = vshrl.u32 %v1771, 7
        %v1773 = vsub.s32 7, %v1772
        %v1774 = vrot.slane %v355, %v1773
        %v1775 = vmul.f32 %v1763, %v1774
        %v1776 = vmul.f32 %v1764, %v1774
        %v1777 = vmul.f32 %v1765, %v1774
        %v1778 = vmul.f32 %v1766, %v1774
        %v1779 = vmul.f32 %v1767, %v1774
        %v1780 = vmul.f32 %v1768, %v1774
        %v1781 = vmul.f32 %v1769, %v1774
        %v1782 = vmul.f32 %v1770, %v1774
        %v1783 = vadd.f32 %v1755, %v1775
        %v1784 = vadd.f32 %v1756, %v1776
        %v1785 = vadd.f32 %v1757, %v1777
        %v1786 = vadd.f32 %v1758, %v1778
        %v1787 = vadd.f32 %v1759, %v1779
        %v1788 = vadd.f32 %v1760, %v1780
        %v1789 = vadd.f32 %v1761, %v1781
        %v1790 = vadd.f32 %v1762, %v1782
        %v1791 = vld [vmem:[%s888 + $0x2] sm:$0xff]
        %v1792 = vld [vmem:[%s888 + $0x12] sm:$0xff]
        %v1793 = vld [vmem:[%s888 + $0x22] sm:$0xff]
        %v1794 = vld [vmem:[%s888 + $0x32] sm:$0xff]
        %v1795 = vld [vmem:[%s888 + $0x42] sm:$0xff]
        %v1796 = vld [vmem:[%s888 + $0x52] sm:$0xff]
        %v1797 = vld [vmem:[%s888 + $0x62] sm:$0xff]
        %v1798 = vld [vmem:[%s888 + $0x72] sm:$0xff]
        %v1799 = vlaneseq
        %v1800 = vshrl.u32 %v1799, 7
        %v1801 = vsub.s32 0, %v1800
        %v1802 = vrot.slane %v356, %v1801
        %v1803 = vmul.f32 %v1791, %v1802
        %v1804 = vmul.f32 %v1792, %v1802
        %v1805 = vmul.f32 %v1793, %v1802
        %v1806 = vmul.f32 %v1794, %v1802
        %v1807 = vmul.f32 %v1795, %v1802
        %v1808 = vmul.f32 %v1796, %v1802
        %v1809 = vmul.f32 %v1797, %v1802
        %v1810 = vmul.f32 %v1798, %v1802
        %v1811 = vadd.f32 %v1783, %v1803
        %v1812 = vadd.f32 %v1784, %v1804
        %v1813 = vadd.f32 %v1785, %v1805
        %v1814 = vadd.f32 %v1786, %v1806
        %v1815 = vadd.f32 %v1787, %v1807
        %v1816 = vadd.f32 %v1788, %v1808
        %v1817 = vadd.f32 %v1789, %v1809
        %v1818 = vadd.f32 %v1790, %v1810
        %v1820 = vlaneseq
        %v1821 = vshrl.u32 %v1820, 7
        %v1822 = vsub.s32 0, %v1821
        %v1823 = vrot.slane %v371, %v1822
        %v1826 = vsel %vm400, %v1811, 0
        %v1829 = vsel %vm400, %v1812, 0
        %v1832 = vsel %vm400, %v1813, 0
        %v1835 = vsel %vm400, %v1814, 0
        %v1838 = vsel %vm400, %v1815, 0
        %v1841 = vsel %vm400, %v1816, 0
        %v1844 = vsel %vm400, %v1817, 0
        %v1847 = vsel %vm400, %v1818, 0
        %1849 = vmatprep.subr.mxu0 0.0
        %1850 = vmatpush1.msra.mxu0 0.0
        %1851 = vmatprep.subr.mxu0 0.0
        %1852 = vmatpush1.msra.mxu0 0.0
        %1853 = vmatprep.subr.mxu0 0.0
        %1854 = vmatpush1.msra.mxu0 0.0
        %1855 = vmatprep.subr.mxu0 0.0
        %1856 = vmatpush1.msra.mxu0 0.0
        %1857 = vmatprep.subr.mxu0 0.0
        %1858 = vmatpush1.msra.mxu0 0.0
        %1859 = vmatprep.subr.mxu0 0.0
        %1860 = vmatpush1.msra.mxu0 0.0
        %1861 = vmatprep.subr.mxu0 0.0
        %1862 = vmatpush1.msra.mxu0 0.0
        %1863 = vmatprep.subr.mxu0 0.0
        %1864 = vmatpush1.msra.mxu0 0.0
        %1865 = vmatprep.subr.mxu0 0.0
        %1866 = vmatpush1.msra.mxu0 0.0
        %1867 = vmatprep.subr.mxu0 0.0
        %1868 = vmatpush1.msra.mxu0 0.0
        %1869 = vmatprep.subr.mxu0 0.0
        %1870 = vmatpush1.msra.mxu0 0.0
        %1871 = vmatprep.subr.mxu0 0.0
        %1872 = vmatpush1.msra.mxu0 0.0
        %1873 = vmatprep.subr.mxu0 0.0
        %1874 = vmatpush1.msra.mxu0 0.0
        %1875 = vmatprep.subr.mxu0 0.0
        %1876 = vmatpush1.msra.mxu0 0.0
        %1877 = vmatprep.subr.mxu0 0.0
        %1878 = vmatpush1.msra.mxu0 0.0
        %1879 = vmatprep.subr.mxu0 0.0
        %1880 = vmatpush1.msra.mxu0 %v365
        %1881 = vmatprep.subr.mxu0 0.0
        %1882 = vmatpush2.msra.mxu0 0.0
        %1883 = vmatprep.subr.mxu0 0.0
        %1884 = vmatpush2.msra.mxu0 0.0
        %1885 = vmatprep.subr.mxu0 0.0
        %1886 = vmatpush2.msra.mxu0 0.0
        %1887 = vmatprep.subr.mxu0 0.0
        %1888 = vmatpush2.msra.mxu0 0.0
        %1889 = vmatprep.subr.mxu0 0.0
        %1890 = vmatpush2.msra.mxu0 0.0
        %1891 = vmatprep.subr.mxu0 0.0
        %1892 = vmatpush2.msra.mxu0 0.0
        %1893 = vmatprep.subr.mxu0 0.0
        %1894 = vmatpush2.msra.mxu0 0.0
        %1895 = vmatprep.subr.mxu0 0.0
        %1896 = vmatpush2.msra.mxu0 0.0
        %1897 = vmatprep.subr.mxu0 0.0
        %1898 = vmatpush2.msra.mxu0 0.0
        %1899 = vmatprep.subr.mxu0 0.0
        %1900 = vmatpush2.msra.mxu0 0.0
        %1901 = vmatprep.subr.mxu0 0.0
        %1902 = vmatpush2.msra.mxu0 0.0
        %1903 = vmatprep.subr.mxu0 0.0
        %1904 = vmatpush2.msra.mxu0 0.0
        %1905 = vmatprep.subr.mxu0 0.0
        %1906 = vmatpush2.msra.mxu0 0.0
        %1907 = vmatprep.subr.mxu0 0.0
        %1908 = vmatpush2.msra.mxu0 0.0
        %1909 = vmatprep.subr.mxu0 0.0
        %1910 = vmatpush2.msra.mxu0 0.0
        %1911 = vmatprep.subr.mxu0 0.0
        %1912 = vmatpush2.msra.mxu0 0.0
        %1913 = vmatprep.mubr.f32.mxu0 0.0
        %1914 = vmatmul.mubr.f32.gmra.mxu0 %v1826
        %v1915 = vpop.f32.mrf.mxu0
        %v1916 = vadd.f32 %v1823, %v1915
        %v1917 = vpop.f32.mrf.mxu0
        %1918 = vmatprep.mubr.f32.mxu0 0.0
        %1919 = vmatmul.mubr.f32.gmra.mxu0 %v1829
        %v1920 = vpop.f32.mrf.mxu0
        %v1921 = vadd.f32 %v1823, %v1920
        %v1922 = vpop.f32.mrf.mxu0
        %1923 = vmatprep.mubr.f32.mxu0 0.0
        %1924 = vmatmul.mubr.f32.gmra.mxu0 %v1832
        %v1925 = vpop.f32.mrf.mxu0
        %v1926 = vadd.f32 %v1823, %v1925
        %v1927 = vpop.f32.mrf.mxu0
        %1928 = vmatprep.mubr.f32.mxu0 0.0
        %1929 = vmatmul.mubr.f32.gmra.mxu0 %v1835
        %v1930 = vpop.f32.mrf.mxu0
        %v1931 = vadd.f32 %v1823, %v1930
        %v1932 = vpop.f32.mrf.mxu0
        %1933 = vmatprep.mubr.f32.mxu0 0.0
        %1934 = vmatmul.mubr.f32.gmra.mxu0 %v1838
        %v1935 = vpop.f32.mrf.mxu0
        %v1936 = vadd.f32 %v1823, %v1935
        %v1937 = vpop.f32.mrf.mxu0
        %1938 = vmatprep.mubr.f32.mxu0 0.0
        %1939 = vmatmul.mubr.f32.gmra.mxu0 %v1841
        %v1940 = vpop.f32.mrf.mxu0
        %v1941 = vadd.f32 %v1823, %v1940
        %v1942 = vpop.f32.mrf.mxu0
        %1943 = vmatprep.mubr.f32.mxu0 0.0
        %1944 = vmatmul.mubr.f32.gmra.mxu0 %v1844
        %v1945 = vpop.f32.mrf.mxu0
        %v1946 = vadd.f32 %v1823, %v1945
        %v1947 = vpop.f32.mrf.mxu0
        %1948 = vmatprep.mubr.f32.mxu0 0.0
        %1949 = vmatmul.mubr.f32.gmra.mxu0 %v1847
        %v1950 = vpop.f32.mrf.mxu0
        %v1951 = vadd.f32 %v1823, %v1950
        %v1952 = vpop.f32.mrf.mxu0
        %1953 = vdwg.mxu0
        %v1954 = vmax.f32 %v1916, 0.0
        %v1955 = vmax.f32 %v1921, 0.0
        %v1956 = vmax.f32 %v1926, 0.0
        %v1957 = vmax.f32 %v1931, 0.0
        %v1958 = vmax.f32 %v1936, 0.0
        %v1959 = vmax.f32 %v1941, 0.0
        %v1960 = vmax.f32 %v1946, 0.0
        %v1961 = vmax.f32 %v1951, 0.0
        %1962 = vst.msk [vmem:[#allocation2] sm:$0xff] %vm400, 0.0
        %1963 = vst.msk [vmem:[#allocation2 + $0x8] sm:$0x3] %vm691, 0.0
        %1964 = vst.msk [vmem:[#allocation2 + $0x10] sm:$0xff] %vm400, 0.0
        %1965 = vst.msk [vmem:[#allocation2 + $0x18] sm:$0x3] %vm691, 0.0
        %1966 = vst.msk [vmem:[#allocation2 + $0x20] sm:$0xff] %vm400, 0.0
        %1967 = vst.msk [vmem:[#allocation2 + $0x28] sm:$0x3] %vm691, 0.0
        %1968 = vst.msk [vmem:[#allocation2 + $0x30] sm:$0xff] %vm400, 0.0
        %1969 = vst.msk [vmem:[#allocation2 + $0x38] sm:$0x3] %vm691, 0.0
        %1970 = vst.msk [vmem:[#allocation2 + $0x40] sm:$0xff] %vm400, 0.0
        %1971 = vst.msk [vmem:[#allocation2 + $0x48] sm:$0x3] %vm691, 0.0
        %1972 = vst.msk [vmem:[#allocation2 + $0x50] sm:$0xff] %vm400, 0.0
        %1973 = vst.msk [vmem:[#allocation2 + $0x58] sm:$0x3] %vm691, 0.0
        %1974 = vst.msk [vmem:[#allocation2 + $0x60] sm:$0xff] %vm400, 0.0
        %1975 = vst.msk [vmem:[#allocation2 + $0x68] sm:$0x3] %vm691, 0.0
        %1976 = vst.msk [vmem:[#allocation2 + $0x70] sm:$0xff] %vm400, 0.0
        %1977 = vst.msk [vmem:[#allocation2 + $0x78] sm:$0x3] %vm691, 0.0
        %1978 = vst.msk [vmem:[#allocation2 + $0x80] sm:$0xff] %vm400, 0.0
        %1979 = vst.msk [vmem:[#allocation2 + $0x88] sm:$0x3] %vm691, 0.0
        %1980 = vst.msk [vmem:[#allocation2 + $0x90] sm:$0xff] %vm400, 0.0
        %1981 = vst.msk [vmem:[#allocation2 + $0x98] sm:$0x3] %vm691, 0.0
        %1982 = vst.msk [vmem:[%s711 + $0x1] sm:$0xff] %vm400, %v1954
        %1983 = vst.msk [vmem:[%s711 + $0x11] sm:$0xff] %vm400, %v1955
        %1984 = vst.msk [vmem:[%s711 + $0x21] sm:$0xff] %vm400, %v1956
        %1985 = vst.msk [vmem:[%s711 + $0x31] sm:$0xff] %vm400, %v1957
        %1986 = vst.msk [vmem:[%s711 + $0x41] sm:$0xff] %vm400, %v1958
        %1987 = vst.msk [vmem:[%s711 + $0x51] sm:$0xff] %vm400, %v1959
        %1988 = vst.msk [vmem:[%s711 + $0x61] sm:$0xff] %vm400, %v1960
        %1989 = vst.msk [vmem:[%s711 + $0x71] sm:$0xff] %vm400, %v1961
        %v1990 = vld [vmem:[#allocation2] sm:$0xff]
        %v1991 = vld [vmem:[#allocation2 + $0x10] sm:$0xff]
        %v1992 = vld [vmem:[#allocation2 + $0x20] sm:$0xff]
        %v1993 = vld [vmem:[#allocation2 + $0x30] sm:$0xff]
        %v1994 = vld [vmem:[#allocation2 + $0x40] sm:$0xff]
        %v1995 = vld [vmem:[#allocation2 + $0x50] sm:$0xff]
        %v1996 = vld [vmem:[#allocation2 + $0x60] sm:$0xff]
        %v1997 = vld [vmem:[#allocation2 + $0x70] sm:$0xff]
        %v1998 = vlaneseq
        %v1999 = vshrl.u32 %v1998, 7
        %v2000 = vsub.s32 0, %v1999
        %v2001 = vrot.slane %v357, %v2000
        %v2002 = vmul.f32 %v1990, %v2001
        %v2003 = vmul.f32 %v1991, %v2001
        %v2004 = vmul.f32 %v1992, %v2001
        %v2005 = vmul.f32 %v1993, %v2001
        %v2006 = vmul.f32 %v1994, %v2001
        %v2007 = vmul.f32 %v1995, %v2001
        %v2008 = vmul.f32 %v1996, %v2001
        %v2009 = vmul.f32 %v1997, %v2001
        %v2010 = vadd.f32 %v2002, 0.0
        %v2011 = vadd.f32 %v2003, 0.0
        %v2012 = vadd.f32 %v2004, 0.0
        %v2013 = vadd.f32 %v2005, 0.0
        %v2014 = vadd.f32 %v2006, 0.0
        %v2015 = vadd.f32 %v2007, 0.0
        %v2016 = vadd.f32 %v2008, 0.0
        %v2017 = vadd.f32 %v2009, 0.0
        %v2018 = vld [vmem:[#allocation2 + $0x1] sm:$0xff]
        %v2019 = vld [vmem:[#allocation2 + $0x11] sm:$0xff]
        %v2020 = vld [vmem:[#allocation2 + $0x21] sm:$0xff]
        %v2021 = vld [vmem:[#allocation2 + $0x31] sm:$0xff]
        %v2022 = vld [vmem:[#allocation2 + $0x41] sm:$0xff]
        %v2023 = vld [vmem:[#allocation2 + $0x51] sm:$0xff]
        %v2024 = vld [vmem:[#allocation2 + $0x61] sm:$0xff]
        %v2025 = vld [vmem:[#allocation2 + $0x71] sm:$0xff]
        %v2026 = vlaneseq
        %v2027 = vshrl.u32 %v2026, 7
        %v2028 = vsub.s32 1, %v2027
        %v2029 = vrot.slane %v357, %v2028
        %v2030 = vmul.f32 %v2018, %v2029
        %v2031 = vmul.f32 %v2019, %v2029
        %v2032 = vmul.f32 %v2020, %v2029
        %v2033 = vmul.f32 %v2021, %v2029
        %v2034 = vmul.f32 %v2022, %v2029
        %v2035 = vmul.f32 %v2023, %v2029
        %v2036 = vmul.f32 %v2024, %v2029
        %v2037 = vmul.f32 %v2025, %v2029
        %v2038 = vadd.f32 %v2010, %v2030
        %v2039 = vadd.f32 %v2011, %v2031
        %v2040 = vadd.f32 %v2012, %v2032
        %v2041 = vadd.f32 %v2013, %v2033
        %v2042 = vadd.f32 %v2014, %v2034
        %v2043 = vadd.f32 %v2015, %v2035
        %v2044 = vadd.f32 %v2016, %v2036
        %v2045 = vadd.f32 %v2017, %v2037
        %v2046 = vld [vmem:[#allocation2 + $0x2] sm:$0xff]
        %v2047 = vld [vmem:[#allocation2 + $0x12] sm:$0xff]
        %v2048 = vld [vmem:[#allocation2 + $0x22] sm:$0xff]
        %v2049 = vld [vmem:[#allocation2 + $0x32] sm:$0xff]
        %v2050 = vld [vmem:[#allocation2 + $0x42] sm:$0xff]
        %v2051 = vld [vmem:[#allocation2 + $0x52] sm:$0xff]
        %v2052 = vld [vmem:[#allocation2 + $0x62] sm:$0xff]
        %v2053 = vld [vmem:[#allocation2 + $0x72] sm:$0xff]
        %v2054 = vlaneseq
        %v2055 = vshrl.u32 %v2054, 7
        %v2056 = vsub.s32 2, %v2055
        %v2057 = vrot.slane %v357, %v2056
        %v2058 = vmul.f32 %v2046, %v2057
        %v2059 = vmul.f32 %v2047, %v2057
        %v2060 = vmul.f32 %v2048, %v2057
        %v2061 = vmul.f32 %v2049, %v2057
        %v2062 = vmul.f32 %v2050, %v2057
        %v2063 = vmul.f32 %v2051, %v2057
        %v2064 = vmul.f32 %v2052, %v2057
        %v2065 = vmul.f32 %v2053, %v2057
        %v2066 = vadd.f32 %v2038, %v2058
        %v2067 = vadd.f32 %v2039, %v2059
        %v2068 = vadd.f32 %v2040, %v2060
        %v2069 = vadd.f32 %v2041, %v2061
        %v2070 = vadd.f32 %v2042, %v2062
        %v2071 = vadd.f32 %v2043, %v2063
        %v2072 = vadd.f32 %v2044, %v2064
        %v2073 = vadd.f32 %v2045, %v2065
        %v2074 = vld [vmem:[%s711] sm:$0xff]
        %v2075 = vld [vmem:[%s711 + $0x10] sm:$0xff]
        %v2076 = vld [vmem:[%s711 + $0x20] sm:$0xff]
        %v2077 = vld [vmem:[%s711 + $0x30] sm:$0xff]
        %v2078 = vld [vmem:[%s711 + $0x40] sm:$0xff]
        %v2079 = vld [vmem:[%s711 + $0x50] sm:$0xff]
        %v2080 = vld [vmem:[%s711 + $0x60] sm:$0xff]
        %v2081 = vld [vmem:[%s711 + $0x70] sm:$0xff]
        %v2082 = vlaneseq
        %v2083 = vshrl.u32 %v2082, 7
        %v2084 = vsub.s32 3, %v2083
        %v2085 = vrot.slane %v357, %v2084
        %v2086 = vmul.f32 %v2074, %v2085
        %v2087 = vmul.f32 %v2075, %v2085
        %v2088 = vmul.f32 %v2076, %v2085
        %v2089 = vmul.f32 %v2077, %v2085
        %v2090 = vmul.f32 %v2078, %v2085
        %v2091 = vmul.f32 %v2079, %v2085
        %v2092 = vmul.f32 %v2080, %v2085
        %v2093 = vmul.f32 %v2081, %v2085
        %v2094 = vadd.f32 %v2066, %v2086
        %v2095 = vadd.f32 %v2067, %v2087
        %v2096 = vadd.f32 %v2068, %v2088
        %v2097 = vadd.f32 %v2069, %v2089
        %v2098 = vadd.f32 %v2070, %v2090
        %v2099 = vadd.f32 %v2071, %v2091
        %v2100 = vadd.f32 %v2072, %v2092
        %v2101 = vadd.f32 %v2073, %v2093
        %v2102 = vld [vmem:[%s711 + $0x1] sm:$0xff]
        %v2103 = vld [vmem:[%s711 + $0x11] sm:$0xff]
        %v2104 = vld [vmem:[%s711 + $0x21] sm:$0xff]
        %v2105 = vld [vmem:[%s711 + $0x31] sm:$0xff]
        %v2106 = vld [vmem:[%s711 + $0x41] sm:$0xff]
        %v2107 = vld [vmem:[%s711 + $0x51] sm:$0xff]
        %v2108 = vld [vmem:[%s711 + $0x61] sm:$0xff]
        %v2109 = vld [vmem:[%s711 + $0x71] sm:$0xff]
        %v2110 = vlaneseq
        %v2111 = vshrl.u32 %v2110, 7
        %v2112 = vsub.s32 4, %v2111
        %v2113 = vrot.slane %v357, %v2112
        %v2114 = vmul.f32 %v2102, %v2113
        %v2115 = vmul.f32 %v2103, %v2113
        %v2116 = vmul.f32 %v2104, %v2113
        %v2117 = vmul.f32 %v2105, %v2113
        %v2118 = vmul.f32 %v2106, %v2113
        %v2119 = vmul.f32 %v2107, %v2113
        %v2120 = vmul.f32 %v2108, %v2113
        %v2121 = vmul.f32 %v2109, %v2113
        %v2122 = vadd.f32 %v2094, %v2114
        %v2123 = vadd.f32 %v2095, %v2115
        %v2124 = vadd.f32 %v2096, %v2116
        %v2125 = vadd.f32 %v2097, %v2117
        %v2126 = vadd.f32 %v2098, %v2118
        %v2127 = vadd.f32 %v2099, %v2119
        %v2128 = vadd.f32 %v2100, %v2120
        %v2129 = vadd.f32 %v2101, %v2121
        %v2130 = vld [vmem:[%s711 + $0x2] sm:$0xff]
        %v2131 = vld [vmem:[%s711 + $0x12] sm:$0xff]
        %v2132 = vld [vmem:[%s711 + $0x22] sm:$0xff]
        %v2133 = vld [vmem:[%s711 + $0x32] sm:$0xff]
        %v2134 = vld [vmem:[%s711 + $0x42] sm:$0xff]
        %v2135 = vld [vmem:[%s711 + $0x52] sm:$0xff]
        %v2136 = vld [vmem:[%s711 + $0x62] sm:$0xff]
        %v2137 = vld [vmem:[%s711 + $0x72] sm:$0xff]
        %v2138 = vlaneseq
        %v2139 = vshrl.u32 %v2138, 7
        %v2140 = vsub.s32 5, %v2139
        %v2141 = vrot.slane %v357, %v2140
        %v2142 = vmul.f32 %v2130, %v2141
        %v2143 = vmul.f32 %v2131, %v2141
        %v2144 = vmul.f32 %v2132, %v2141
        %v2145 = vmul.f32 %v2133, %v2141
        %v2146 = vmul.f32 %v2134, %v2141
        %v2147 = vmul.f32 %v2135, %v2141
        %v2148 = vmul.f32 %v2136, %v2141
        %v2149 = vmul.f32 %v2137, %v2141
        %v2150 = vadd.f32 %v2122, %v2142
        %v2151 = vadd.f32 %v2123, %v2143
        %v2152 = vadd.f32 %v2124, %v2144
        %v2153 = vadd.f32 %v2125, %v2145
        %v2154 = vadd.f32 %v2126, %v2146
        %v2155 = vadd.f32 %v2127, %v2147
        %v2156 = vadd.f32 %v2128, %v2148
        %v2157 = vadd.f32 %v2129, %v2149
        %v2158 = vld [vmem:[%s888] sm:$0xff]
        %v2159 = vld [vmem:[%s888 + $0x10] sm:$0xff]
        %v2160 = vld [vmem:[%s888 + $0x20] sm:$0xff]
        %v2161 = vld [vmem:[%s888 + $0x30] sm:$0xff]
        %v2162 = vld [vmem:[%s888 + $0x40] sm:$0xff]
        %v2163 = vld [vmem:[%s888 + $0x50] sm:$0xff]
        %v2164 = vld [vmem:[%s888 + $0x60] sm:$0xff]
        %v2165 = vld [vmem:[%s888 + $0x70] sm:$0xff]
        %v2166 = vlaneseq
        %v2167 = vshrl.u32 %v2166, 7
        %v2168 = vsub.s32 6, %v2167
        %v2169 = vrot.slane %v357, %v2168
        %v2170 = vmul.f32 %v2158, %v2169
        %v2171 = vmul.f32 %v2159, %v2169
        %v2172 = vmul.f32 %v2160, %v2169
        %v2173 = vmul.f32 %v2161, %v2169
        %v2174 = vmul.f32 %v2162, %v2169
        %v2175 = vmul.f32 %v2163, %v2169
        %v2176 = vmul.f32 %v2164, %v2169
        %v2177 = vmul.f32 %v2165, %v2169
        %v2178 = vadd.f32 %v2150, %v2170
        %v2179 = vadd.f32 %v2151, %v2171
        %v2180 = vadd.f32 %v2152, %v2172
        %v2181 = vadd.f32 %v2153, %v2173
        %v2182 = vadd.f32 %v2154, %v2174
        %v2183 = vadd.f32 %v2155, %v2175
        %v2184 = vadd.f32 %v2156, %v2176
        %v2185 = vadd.f32 %v2157, %v2177
        %v2186 = vld [vmem:[%s888 + $0x1] sm:$0xff]
        %v2187 = vld [vmem:[%s888 + $0x11] sm:$0xff]
        %v2188 = vld [vmem:[%s888 + $0x21] sm:$0xff]
        %v2189 = vld [vmem:[%s888 + $0x31] sm:$0xff]
        %v2190 = vld [vmem:[%s888 + $0x41] sm:$0xff]
        %v2191 = vld [vmem:[%s888 + $0x51] sm:$0xff]
        %v2192 = vld [vmem:[%s888 + $0x61] sm:$0xff]
        %v2193 = vld [vmem:[%s888 + $0x71] sm:$0xff]
        %v2194 = vlaneseq
        %v2195 = vshrl.u32 %v2194, 7
        %v2196 = vsub.s32 7, %v2195
        %v2197 = vrot.slane %v357, %v2196
        %v2198 = vmul.f32 %v2186, %v2197
        %v2199 = vmul.f32 %v2187, %v2197
        %v2200 = vmul.f32 %v2188, %v2197
        %v2201 = vmul.f32 %v2189, %v2197
        %v2202 = vmul.f32 %v2190, %v2197
        %v2203 = vmul.f32 %v2191, %v2197
        %v2204 = vmul.f32 %v2192, %v2197
        %v2205 = vmul.f32 %v2193, %v2197
        %v2206 = vadd.f32 %v2178, %v2198
        %v2207 = vadd.f32 %v2179, %v2199
        %v2208 = vadd.f32 %v2180, %v2200
        %v2209 = vadd.f32 %v2181, %v2201
        %v2210 = vadd.f32 %v2182, %v2202
        %v2211 = vadd.f32 %v2183, %v2203
        %v2212 = vadd.f32 %v2184, %v2204
        %v2213 = vadd.f32 %v2185, %v2205
        %v2214 = vld [vmem:[%s888 + $0x2] sm:$0xff]
        %v2215 = vld [vmem:[%s888 + $0x12] sm:$0xff]
        %v2216 = vld [vmem:[%s888 + $0x22] sm:$0xff]
        %v2217 = vld [vmem:[%s888 + $0x32] sm:$0xff]
        %v2218 = vld [vmem:[%s888 + $0x42] sm:$0xff]
        %v2219 = vld [vmem:[%s888 + $0x52] sm:$0xff]
        %v2220 = vld [vmem:[%s888 + $0x62] sm:$0xff]
        %v2221 = vld [vmem:[%s888 + $0x72] sm:$0xff]
        %v2222 = vlaneseq
        %v2223 = vshrl.u32 %v2222, 7
        %v2224 = vsub.s32 0, %v2223
        %v2225 = vrot.slane %v358, %v2224
        %v2226 = vmul.f32 %v2214, %v2225
        %v2227 = vmul.f32 %v2215, %v2225
        %v2228 = vmul.f32 %v2216, %v2225
        %v2229 = vmul.f32 %v2217, %v2225
        %v2230 = vmul.f32 %v2218, %v2225
        %v2231 = vmul.f32 %v2219, %v2225
        %v2232 = vmul.f32 %v2220, %v2225
        %v2233 = vmul.f32 %v2221, %v2225
        %v2234 = vadd.f32 %v2206, %v2226
        %v2235 = vadd.f32 %v2207, %v2227
        %v2236 = vadd.f32 %v2208, %v2228
        %v2237 = vadd.f32 %v2209, %v2229
        %v2238 = vadd.f32 %v2210, %v2230
        %v2239 = vadd.f32 %v2211, %v2231
        %v2240 = vadd.f32 %v2212, %v2232
        %v2241 = vadd.f32 %v2213, %v2233
        %v2243 = vlaneseq
        %v2244 = vshrl.u32 %v2243, 7
        %v2245 = vsub.s32 0, %v2244
        %v2246 = vrot.slane %v372, %v2245
        %v2249 = vsel %vm400, %v2234, 0
        %v2252 = vsel %vm400, %v2235, 0
        %v2255 = vsel %vm400, %v2236, 0
        %v2258 = vsel %vm400, %v2237, 0
        %v2261 = vsel %vm400, %v2238, 0
        %v2264 = vsel %vm400, %v2239, 0
        %v2267 = vsel %vm400, %v2240, 0
        %v2270 = vsel %vm400, %v2241, 0
        %2272 = vmatprep.subr.mxu0 0.0
        %2273 = vmatpush1.msra.mxu0 0.0
        %2274 = vmatprep.subr.mxu0 0.0
        %2275 = vmatpush1.msra.mxu0 0.0
        %2276 = vmatprep.subr.mxu0 0.0
        %2277 = vmatpush1.msra.mxu0 0.0
        %2278 = vmatprep.subr.mxu0 0.0
        %2279 = vmatpush1.msra.mxu0 0.0
        %2280 = vmatprep.subr.mxu0 0.0
        %2281 = vmatpush1.msra.mxu0 0.0
        %2282 = vmatprep.subr.mxu0 0.0
        %2283 = vmatpush1.msra.mxu0 0.0
        %2284 = vmatprep.subr.mxu0 0.0
        %2285 = vmatpush1.msra.mxu0 0.0
        %2286 = vmatprep.subr.mxu0 0.0
        %2287 = vmatpush1.msra.mxu0 0.0
        %2288 = vmatprep.subr.mxu0 0.0
        %2289 = vmatpush1.msra.mxu0 0.0
        %2290 = vmatprep.subr.mxu0 0.0
        %2291 = vmatpush1.msra.mxu0 0.0
        %2292 = vmatprep.subr.mxu0 0.0
        %2293 = vmatpush1.msra.mxu0 0.0
        %2294 = vmatprep.subr.mxu0 0.0
        %2295 = vmatpush1.msra.mxu0 0.0
        %2296 = vmatprep.subr.mxu0 0.0
        %2297 = vmatpush1.msra.mxu0 0.0
        %2298 = vmatprep.subr.mxu0 0.0
        %2299 = vmatpush1.msra.mxu0 0.0
        %2300 = vmatprep.subr.mxu0 0.0
        %2301 = vmatpush1.msra.mxu0 0.0
        %2302 = vmatprep.subr.mxu0 0.0
        %2303 = vmatpush1.msra.mxu0 %v366
        %2304 = vmatprep.subr.mxu0 0.0
        %2305 = vmatpush2.msra.mxu0 0.0
        %2306 = vmatprep.subr.mxu0 0.0
        %2307 = vmatpush2.msra.mxu0 0.0
        %2308 = vmatprep.subr.mxu0 0.0
        %2309 = vmatpush2.msra.mxu0 0.0
        %2310 = vmatprep.subr.mxu0 0.0
        %2311 = vmatpush2.msra.mxu0 0.0
        %2312 = vmatprep.subr.mxu0 0.0
        %2313 = vmatpush2.msra.mxu0 0.0
        %2314 = vmatprep.subr.mxu0 0.0
        %2315 = vmatpush2.msra.mxu0 0.0
        %2316 = vmatprep.subr.mxu0 0.0
        %2317 = vmatpush2.msra.mxu0 0.0
        %2318 = vmatprep.subr.mxu0 0.0
        %2319 = vmatpush2.msra.mxu0 0.0
        %2320 = vmatprep.subr.mxu0 0.0
        %2321 = vmatpush2.msra.mxu0 0.0
        %2322 = vmatprep.subr.mxu0 0.0
        %2323 = vmatpush2.msra.mxu0 0.0
        %2324 = vmatprep.subr.mxu0 0.0
        %2325 = vmatpush2.msra.mxu0 0.0
        %2326 = vmatprep.subr.mxu0 0.0
        %2327 = vmatpush2.msra.mxu0 0.0
        %2328 = vmatprep.subr.mxu0 0.0
        %2329 = vmatpush2.msra.mxu0 0.0
        %2330 = vmatprep.subr.mxu0 0.0
        %2331 = vmatpush2.msra.mxu0 0.0
        %2332 = vmatprep.subr.mxu0 0.0
        %2333 = vmatpush2.msra.mxu0 0.0
        %2334 = vmatprep.subr.mxu0 0.0
        %2335 = vmatpush2.msra.mxu0 0.0
        %2336 = vmatprep.mubr.f32.mxu0 0.0
        %2337 = vmatmul.mubr.f32.gmra.mxu0 %v2249
        %v2338 = vpop.f32.mrf.mxu0
        %v2339 = vadd.f32 %v2246, %v2338
        %v2340 = vpop.f32.mrf.mxu0
        %2341 = vmatprep.mubr.f32.mxu0 0.0
        %2342 = vmatmul.mubr.f32.gmra.mxu0 %v2252
        %v2343 = vpop.f32.mrf.mxu0
        %v2344 = vadd.f32 %v2246, %v2343
        %v2345 = vpop.f32.mrf.mxu0
        %2346 = vmatprep.mubr.f32.mxu0 0.0
        %2347 = vmatmul.mubr.f32.gmra.mxu0 %v2255
        %v2348 = vpop.f32.mrf.mxu0
        %v2349 = vadd.f32 %v2246, %v2348
        %v2350 = vpop.f32.mrf.mxu0
        %2351 = vmatprep.mubr.f32.mxu0 0.0
        %2352 = vmatmul.mubr.f32.gmra.mxu0 %v2258
        %v2353 = vpop.f32.mrf.mxu0
        %v2354 = vadd.f32 %v2246, %v2353
        %v2355 = vpop.f32.mrf.mxu0
        %2356 = vmatprep.mubr.f32.mxu0 0.0
        %2357 = vmatmul.mubr.f32.gmra.mxu0 %v2261
        %v2358 = vpop.f32.mrf.mxu0
        %v2359 = vadd.f32 %v2246, %v2358
        %v2360 = vpop.f32.mrf.mxu0
        %2361 = vmatprep.mubr.f32.mxu0 0.0
        %2362 = vmatmul.mubr.f32.gmra.mxu0 %v2264
        %v2363 = vpop.f32.mrf.mxu0
        %v2364 = vadd.f32 %v2246, %v2363
        %v2365 = vpop.f32.mrf.mxu0
        %2366 = vmatprep.mubr.f32.mxu0 0.0
        %2367 = vmatmul.mubr.f32.gmra.mxu0 %v2267
        %v2368 = vpop.f32.mrf.mxu0
        %v2369 = vadd.f32 %v2246, %v2368
        %v2370 = vpop.f32.mrf.mxu0
        %2371 = vmatprep.mubr.f32.mxu0 0.0
        %2372 = vmatmul.mubr.f32.gmra.mxu0 %v2270
        %v2373 = vpop.f32.mrf.mxu0
        %v2374 = vadd.f32 %v2246, %v2373
        %v2375 = vpop.f32.mrf.mxu0
        %2376 = vdwg.mxu0
        %v2377 = vadd.f32 %v2339, %v644
        %v2378 = vadd.f32 %v2344, %v649
        %v2379 = vadd.f32 %v2349, %v654
        %v2380 = vadd.f32 %v2354, %v659
        %v2381 = vadd.f32 %v2359, %v664
        %v2382 = vadd.f32 %v2364, %v669
        %v2383 = vadd.f32 %v2369, %v674
        %v2384 = vadd.f32 %v2374, %v679
        %2385 = vst.msk [vmem:[#allocation2] sm:$0xff] %vm400, -inf
        %2386 = vst.msk [vmem:[#allocation2 + $0x8] sm:$0x3] %vm691, -inf
        %2387 = vst.msk [vmem:[#allocation2 + $0x10] sm:$0xff] %vm400, -inf
        %2388 = vst.msk [vmem:[#allocation2 + $0x18] sm:$0x3] %vm691, -inf
        %2389 = vst.msk [vmem:[#allocation2 + $0x20] sm:$0xff] %vm400, -inf
        %2390 = vst.msk [vmem:[#allocation2 + $0x28] sm:$0x3] %vm691, -inf
        %2391 = vst.msk [vmem:[#allocation2 + $0x30] sm:$0xff] %vm400, -inf
        %2392 = vst.msk [vmem:[#allocation2 + $0x38] sm:$0x3] %vm691, -inf
        %2393 = vst.msk [vmem:[#allocation2 + $0x40] sm:$0xff] %vm400, -inf
        %2394 = vst.msk [vmem:[#allocation2 + $0x48] sm:$0x3] %vm691, -inf
        %2395 = vst.msk [vmem:[#allocation2 + $0x50] sm:$0xff] %vm400, -inf
        %2396 = vst.msk [vmem:[#allocation2 + $0x58] sm:$0x3] %vm691, -inf
        %2397 = vst.msk [vmem:[#allocation2 + $0x60] sm:$0xff] %vm400, -inf
        %2398 = vst.msk [vmem:[#allocation2 + $0x68] sm:$0x3] %vm691, -inf
        %2399 = vst.msk [vmem:[#allocation2 + $0x70] sm:$0xff] %vm400, -inf
        %2400 = vst.msk [vmem:[#allocation2 + $0x78] sm:$0x3] %vm691, -inf
        %2401 = vst.msk [vmem:[#allocation2 + $0x80] sm:$0xff] %vm400, -inf
        %2402 = vst.msk [vmem:[#allocation2 + $0x88] sm:$0x3] %vm691, -inf
        %2403 = vst.msk [vmem:[#allocation2 + $0x90] sm:$0xff] %vm400, -inf
        %2404 = vst.msk [vmem:[#allocation2 + $0x98] sm:$0x3] %vm691, -inf
        %2405 = vst.msk [vmem:[%s711 + $0x1] sm:$0xff] %vm400, %v644
        %2406 = vst.msk [vmem:[%s711 + $0x11] sm:$0xff] %vm400, %v649
        %2407 = vst.msk [vmem:[%s711 + $0x21] sm:$0xff] %vm400, %v654
        %2408 = vst.msk [vmem:[%s711 + $0x31] sm:$0xff] %vm400, %v659
        %2409 = vst.msk [vmem:[%s711 + $0x41] sm:$0xff] %vm400, %v664
        %2410 = vst.msk [vmem:[%s711 + $0x51] sm:$0xff] %vm400, %v669
        %2411 = vst.msk [vmem:[%s711 + $0x61] sm:$0xff] %vm400, %v674
        %2412 = vst.msk [vmem:[%s711 + $0x71] sm:$0xff] %vm400, %v679
        %v2413 = vld [vmem:[#allocation2] sm:$0xff]
        %v2414 = vld [vmem:[#allocation2 + $0x10] sm:$0xff]
        %v2415 = vld [vmem:[#allocation2 + $0x20] sm:$0xff]
        %v2416 = vld [vmem:[#allocation2 + $0x30] sm:$0xff]
        %v2417 = vld [vmem:[#allocation2 + $0x40] sm:$0xff]
        %v2418 = vld [vmem:[#allocation2 + $0x50] sm:$0xff]
        %v2419 = vld [vmem:[#allocation2 + $0x60] sm:$0xff]
        %v2420 = vld [vmem:[#allocation2 + $0x70] sm:$0xff]
        %v2421 = vld [vmem:[#allocation2 + $0x1] sm:$0xff]
        %v2422 = vld [vmem:[#allocation2 + $0x11] sm:$0xff]
        %v2423 = vld [vmem:[#allocation2 + $0x21] sm:$0xff]
        %v2424 = vld [vmem:[#allocation2 + $0x31] sm:$0xff]
        %v2425 = vld [vmem:[#allocation2 + $0x41] sm:$0xff]
        %v2426 = vld [vmem:[#allocation2 + $0x51] sm:$0xff]
        %v2427 = vld [vmem:[#allocation2 + $0x61] sm:$0xff]
        %v2428 = vld [vmem:[#allocation2 + $0x71] sm:$0xff]
        %v2429 = vmax.f32 %v2413, %v2421
        %v2430 = vmax.f32 %v2414, %v2422
        %v2431 = vmax.f32 %v2415, %v2423
        %v2432 = vmax.f32 %v2416, %v2424
        %v2433 = vmax.f32 %v2417, %v2425
        %v2434 = vmax.f32 %v2418, %v2426
        %v2435 = vmax.f32 %v2419, %v2427
        %v2436 = vmax.f32 %v2420, %v2428
        %v2437 = vld [vmem:[#allocation2 + $0x2] sm:$0xff]
        %v2438 = vld [vmem:[#allocation2 + $0x12] sm:$0xff]
        %v2439 = vld [vmem:[#allocation2 + $0x22] sm:$0xff]
        %v2440 = vld [vmem:[#allocation2 + $0x32] sm:$0xff]
        %v2441 = vld [vmem:[#allocation2 + $0x42] sm:$0xff]
        %v2442 = vld [vmem:[#allocation2 + $0x52] sm:$0xff]
        %v2443 = vld [vmem:[#allocation2 + $0x62] sm:$0xff]
        %v2444 = vld [vmem:[#allocation2 + $0x72] sm:$0xff]
        %v2445 = vmax.f32 %v2429, %v2437
        %v2446 = vmax.f32 %v2430, %v2438
        %v2447 = vmax.f32 %v2431, %v2439
        %v2448 = vmax.f32 %v2432, %v2440
        %v2449 = vmax.f32 %v2433, %v2441
        %v2450 = vmax.f32 %v2434, %v2442
        %v2451 = vmax.f32 %v2435, %v2443
        %v2452 = vmax.f32 %v2436, %v2444
        %v2453 = vld [vmem:[%s711] sm:$0xff]
        %v2454 = vld [vmem:[%s711 + $0x10] sm:$0xff]
        %v2455 = vld [vmem:[%s711 + $0x20] sm:$0xff]
        %v2456 = vld [vmem:[%s711 + $0x30] sm:$0xff]
        %v2457 = vld [vmem:[%s711 + $0x40] sm:$0xff]
        %v2458 = vld [vmem:[%s711 + $0x50] sm:$0xff]
        %v2459 = vld [vmem:[%s711 + $0x60] sm:$0xff]
        %v2460 = vld [vmem:[%s711 + $0x70] sm:$0xff]
        %v2461 = vmax.f32 %v2445, %v2453
        %v2462 = vmax.f32 %v2446, %v2454
        %v2463 = vmax.f32 %v2447, %v2455
        %v2464 = vmax.f32 %v2448, %v2456
        %v2465 = vmax.f32 %v2449, %v2457
        %v2466 = vmax.f32 %v2450, %v2458
        %v2467 = vmax.f32 %v2451, %v2459
        %v2468 = vmax.f32 %v2452, %v2460
        %v2469 = vld [vmem:[%s711 + $0x1] sm:$0xff]
        %v2470 = vld [vmem:[%s711 + $0x11] sm:$0xff]
        %v2471 = vld [vmem:[%s711 + $0x21] sm:$0xff]
        %v2472 = vld [vmem:[%s711 + $0x31] sm:$0xff]
        %v2473 = vld [vmem:[%s711 + $0x41] sm:$0xff]
        %v2474 = vld [vmem:[%s711 + $0x51] sm:$0xff]
        %v2475 = vld [vmem:[%s711 + $0x61] sm:$0xff]
        %v2476 = vld [vmem:[%s711 + $0x71] sm:$0xff]
        %v2477 = vmax.f32 %v2461, %v2469
        %v2478 = vmax.f32 %v2462, %v2470
        %v2479 = vmax.f32 %v2463, %v2471
        %v2480 = vmax.f32 %v2464, %v2472
        %v2481 = vmax.f32 %v2465, %v2473
        %v2482 = vmax.f32 %v2466, %v2474
        %v2483 = vmax.f32 %v2467, %v2475
        %v2484 = vmax.f32 %v2468, %v2476
        %v2485 = vld [vmem:[%s711 + $0x2] sm:$0xff]
        %v2486 = vld [vmem:[%s711 + $0x12] sm:$0xff]
        %v2487 = vld [vmem:[%s711 + $0x22] sm:$0xff]
        %v2488 = vld [vmem:[%s711 + $0x32] sm:$0xff]
        %v2489 = vld [vmem:[%s711 + $0x42] sm:$0xff]
        %v2490 = vld [vmem:[%s711 + $0x52] sm:$0xff]
        %v2491 = vld [vmem:[%s711 + $0x62] sm:$0xff]
        %v2492 = vld [vmem:[%s711 + $0x72] sm:$0xff]
        %v2493 = vmax.f32 %v2477, %v2485
        %v2494 = vmax.f32 %v2478, %v2486
        %v2495 = vmax.f32 %v2479, %v2487
        %v2496 = vmax.f32 %v2480, %v2488
        %v2497 = vmax.f32 %v2481, %v2489
        %v2498 = vmax.f32 %v2482, %v2490
        %v2499 = vmax.f32 %v2483, %v2491
        %v2500 = vmax.f32 %v2484, %v2492
        %v2501 = vld [vmem:[%s888] sm:$0xff]
        %v2502 = vld [vmem:[%s888 + $0x10] sm:$0xff]
        %v2503 = vld [vmem:[%s888 + $0x20] sm:$0xff]
        %v2504 = vld [vmem:[%s888 + $0x30] sm:$0xff]
        %v2505 = vld [vmem:[%s888 + $0x40] sm:$0xff]
        %v2506 = vld [vmem:[%s888 + $0x50] sm:$0xff]
        %v2507 = vld [vmem:[%s888 + $0x60] sm:$0xff]
        %v2508 = vld [vmem:[%s888 + $0x70] sm:$0xff]
        %v2509 = vmax.f32 %v2493, %v2501
        %v2510 = vmax.f32 %v2494, %v2502
        %v2511 = vmax.f32 %v2495, %v2503
        %v2512 = vmax.f32 %v2496, %v2504
        %v2513 = vmax.f32 %v2497, %v2505
        %v2514 = vmax.f32 %v2498, %v2506
        %v2515 = vmax.f32 %v2499, %v2507
        %v2516 = vmax.f32 %v2500, %v2508
        %v2517 = vld [vmem:[%s888 + $0x1] sm:$0xff]
        %v2518 = vld [vmem:[%s888 + $0x11] sm:$0xff]
        %v2519 = vld [vmem:[%s888 + $0x21] sm:$0xff]
        %v2520 = vld [vmem:[%s888 + $0x31] sm:$0xff]
        %v2521 = vld [vmem:[%s888 + $0x41] sm:$0xff]
        %v2522 = vld [vmem:[%s888 + $0x51] sm:$0xff]
        %v2523 = vld [vmem:[%s888 + $0x61] sm:$0xff]
        %v2524 = vld [vmem:[%s888 + $0x71] sm:$0xff]
        %v2525 = vmax.f32 %v2509, %v2517
        %v2526 = vmax.f32 %v2510, %v2518
        %v2527 = vmax.f32 %v2511, %v2519
        %v2528 = vmax.f32 %v2512, %v2520
        %v2529 = vmax.f32 %v2513, %v2521
        %v2530 = vmax.f32 %v2514, %v2522
        %v2531 = vmax.f32 %v2515, %v2523
        %v2532 = vmax.f32 %v2516, %v2524
        %v2533 = vld [vmem:[%s888 + $0x2] sm:$0xff]
        %v2534 = vld [vmem:[%s888 + $0x12] sm:$0xff]
        %v2535 = vld [vmem:[%s888 + $0x22] sm:$0xff]
        %v2536 = vld [vmem:[%s888 + $0x32] sm:$0xff]
        %v2537 = vld [vmem:[%s888 + $0x42] sm:$0xff]
        %v2538 = vld [vmem:[%s888 + $0x52] sm:$0xff]
        %v2539 = vld [vmem:[%s888 + $0x62] sm:$0xff]
        %v2540 = vld [vmem:[%s888 + $0x72] sm:$0xff]
        %v2541 = vmax.f32 %v2525, %v2533
        %v2542 = vmax.f32 %v2526, %v2534
        %v2543 = vmax.f32 %v2527, %v2535
        %v2544 = vmax.f32 %v2528, %v2536
        %v2545 = vmax.f32 %v2529, %v2537
        %v2546 = vmax.f32 %v2530, %v2538
        %v2547 = vmax.f32 %v2531, %v2539
        %v2548 = vmax.f32 %v2532, %v2540
        %v2549 = vadd.f32 %v2541, %v492
        %v2550 = vadd.f32 %v2542, %v497
        %v2551 = vadd.f32 %v2543, %v502
        %v2552 = vadd.f32 %v2544, %v507
        %v2553 = vadd.f32 %v2545, %v512
        %v2554 = vadd.f32 %v2546, %v517
        %v2555 = vadd.f32 %v2547, %v522
        %v2556 = vadd.f32 %v2548, %v527
        %2557 = vst.msk [vmem:[#allocation2] sm:$0xff] %vm400, 0.0
        %2558 = vst.msk [vmem:[#allocation2 + $0x8] sm:$0x3] %vm691, 0.0
        %2559 = vst.msk [vmem:[#allocation2 + $0x10] sm:$0xff] %vm400, 0.0
        %2560 = vst.msk [vmem:[#allocation2 + $0x18] sm:$0x3] %vm691, 0.0
        %2561 = vst.msk [vmem:[#allocation2 + $0x20] sm:$0xff] %vm400, 0.0
        %2562 = vst.msk [vmem:[#allocation2 + $0x28] sm:$0x3] %vm691, 0.0
        %2563 = vst.msk [vmem:[#allocation2 + $0x30] sm:$0xff] %vm400, 0.0
        %2564 = vst.msk [vmem:[#allocation2 + $0x38] sm:$0x3] %vm691, 0.0
        %2565 = vst.msk [vmem:[#allocation2 + $0x40] sm:$0xff] %vm400, 0.0
        %2566 = vst.msk [vmem:[#allocation2 + $0x48] sm:$0x3] %vm691, 0.0
        %2567 = vst.msk [vmem:[#allocation2 + $0x50] sm:$0xff] %vm400, 0.0
        %2568 = vst.msk [vmem:[#allocation2 + $0x58] sm:$0x3] %vm691, 0.0
        %2569 = vst.msk [vmem:[#allocation2 + $0x60] sm:$0xff] %vm400, 0.0
        %2570 = vst.msk [vmem:[#allocation2 + $0x68] sm:$0x3] %vm691, 0.0
        %2571 = vst.msk [vmem:[#allocation2 + $0x70] sm:$0xff] %vm400, 0.0
        %2572 = vst.msk [vmem:[#allocation2 + $0x78] sm:$0x3] %vm691, 0.0
        %2573 = vst.msk [vmem:[#allocation2 + $0x80] sm:$0xff] %vm400, 0.0
        %2574 = vst.msk [vmem:[#allocation2 + $0x88] sm:$0x3] %vm691, 0.0
        %2575 = vst.msk [vmem:[#allocation2 + $0x90] sm:$0xff] %vm400, 0.0
        %2576 = vst.msk [vmem:[#allocation2 + $0x98] sm:$0x3] %vm691, 0.0
        %2577 = vst.msk [vmem:[%s711 + $0x1] sm:$0xff] %vm400, %v644
        %2578 = vst.msk [vmem:[%s711 + $0x11] sm:$0xff] %vm400, %v649
        %2579 = vst.msk [vmem:[%s711 + $0x21] sm:$0xff] %vm400, %v654
        %2580 = vst.msk [vmem:[%s711 + $0x31] sm:$0xff] %vm400, %v659
        %2581 = vst.msk [vmem:[%s711 + $0x41] sm:$0xff] %vm400, %v664
        %2582 = vst.msk [vmem:[%s711 + $0x51] sm:$0xff] %vm400, %v669
        %2583 = vst.msk [vmem:[%s711 + $0x61] sm:$0xff] %vm400, %v674
        %2584 = vst.msk [vmem:[%s711 + $0x71] sm:$0xff] %vm400, %v679
        %v2585 = vld [vmem:[#allocation2] sm:$0xff]
        %v2586 = vld [vmem:[#allocation2 + $0x10] sm:$0xff]
        %v2587 = vld [vmem:[#allocation2 + $0x20] sm:$0xff]
        %v2588 = vld [vmem:[#allocation2 + $0x30] sm:$0xff]
        %v2589 = vld [vmem:[#allocation2 + $0x40] sm:$0xff]
        %v2590 = vld [vmem:[#allocation2 + $0x50] sm:$0xff]
        %v2591 = vld [vmem:[#allocation2 + $0x60] sm:$0xff]
        %v2592 = vld [vmem:[#allocation2 + $0x70] sm:$0xff]
        %v2593 = vadd.f32 %v2585, 0.0
        %v2594 = vadd.f32 %v2586, 0.0
        %v2595 = vadd.f32 %v2587, 0.0
        %v2596 = vadd.f32 %v2588, 0.0
        %v2597 = vadd.f32 %v2589, 0.0
        %v2598 = vadd.f32 %v2590, 0.0
        %v2599 = vadd.f32 %v2591, 0.0
        %v2600 = vadd.f32 %v2592, 0.0
        %v2601 = vld [vmem:[#allocation2 + $0x1] sm:$0xff]
        %v2602 = vld [vmem:[#allocation2 + $0x11] sm:$0xff]
        %v2603 = vld [vmem:[#allocation2 + $0x21] sm:$0xff]
        %v2604 = vld [vmem:[#allocation2 + $0x31] sm:$0xff]
        %v2605 = vld [vmem:[#allocation2 + $0x41] sm:$0xff]
        %v2606 = vld [vmem:[#allocation2 + $0x51] sm:$0xff]
        %v2607 = vld [vmem:[#allocation2 + $0x61] sm:$0xff]
        %v2608 = vld [vmem:[#allocation2 + $0x71] sm:$0xff]
        %v2609 = vadd.f32 %v2593, %v2601
        %v2610 = vadd.f32 %v2594, %v2602
        %v2611 = vadd.f32 %v2595, %v2603
        %v2612 = vadd.f32 %v2596, %v2604
        %v2613 = vadd.f32 %v2597, %v2605
        %v2614 = vadd.f32 %v2598, %v2606
        %v2615 = vadd.f32 %v2599, %v2607
        %v2616 = vadd.f32 %v2600, %v2608
        %v2617 = vld [vmem:[#allocation2 + $0x2] sm:$0xff]
        %v2618 = vld [vmem:[#allocation2 + $0x12] sm:$0xff]
        %v2619 = vld [vmem:[#allocation2 + $0x22] sm:$0xff]
        %v2620 = vld [vmem:[#allocation2 + $0x32] sm:$0xff]
        %v2621 = vld [vmem:[#allocation2 + $0x42] sm:$0xff]
        %v2622 = vld [vmem:[#allocation2 + $0x52] sm:$0xff]
        %v2623 = vld [vmem:[#allocation2 + $0x62] sm:$0xff]
        %v2624 = vld [vmem:[#allocation2 + $0x72] sm:$0xff]
        %v2625 = vadd.f32 %v2609, %v2617
        %v2626 = vadd.f32 %v2610, %v2618
        %v2627 = vadd.f32 %v2611, %v2619
        %v2628 = vadd.f32 %v2612, %v2620
        %v2629 = vadd.f32 %v2613, %v2621
        %v2630 = vadd.f32 %v2614, %v2622
        %v2631 = vadd.f32 %v2615, %v2623
        %v2632 = vadd.f32 %v2616, %v2624
        %v2633 = vld [vmem:[%s711] sm:$0xff]
        %v2634 = vld [vmem:[%s711 + $0x10] sm:$0xff]
        %v2635 = vld [vmem:[%s711 + $0x20] sm:$0xff]
        %v2636 = vld [vmem:[%s711 + $0x30] sm:$0xff]
        %v2637 = vld [vmem:[%s711 + $0x40] sm:$0xff]
        %v2638 = vld [vmem:[%s711 + $0x50] sm:$0xff]
        %v2639 = vld [vmem:[%s711 + $0x60] sm:$0xff]
        %v2640 = vld [vmem:[%s711 + $0x70] sm:$0xff]
        %v2641 = vadd.f32 %v2625, %v2633
        %v2642 = vadd.f32 %v2626, %v2634
        %v2643 = vadd.f32 %v2627, %v2635
        %v2644 = vadd.f32 %v2628, %v2636
        %v2645 = vadd.f32 %v2629, %v2637
        %v2646 = vadd.f32 %v2630, %v2638
        %v2647 = vadd.f32 %v2631, %v2639
        %v2648 = vadd.f32 %v2632, %v2640
        %v2649 = vld [vmem:[%s711 + $0x1] sm:$0xff]
        %v2650 = vld [vmem:[%s711 + $0x11] sm:$0xff]
        %v2651 = vld [vmem:[%s711 + $0x21] sm:$0xff]
        %v2652 = vld [vmem:[%s711 + $0x31] sm:$0xff]
        %v2653 = vld [vmem:[%s711 + $0x41] sm:$0xff]
        %v2654 = vld [vmem:[%s711 + $0x51] sm:$0xff]
        %v2655 = vld [vmem:[%s711 + $0x61] sm:$0xff]
        %v2656 = vld [vmem:[%s711 + $0x71] sm:$0xff]
        %v2657 = vadd.f32 %v2641, %v2649
        %v2658 = vadd.f32 %v2642, %v2650
        %v2659 = vadd.f32 %v2643, %v2651
        %v2660 = vadd.f32 %v2644, %v2652
        %v2661 = vadd.f32 %v2645, %v2653
        %v2662 = vadd.f32 %v2646, %v2654
        %v2663 = vadd.f32 %v2647, %v2655
        %v2664 = vadd.f32 %v2648, %v2656
        %v2665 = vld [vmem:[%s711 + $0x2] sm:$0xff]
        %v2666 = vld [vmem:[%s711 + $0x12] sm:$0xff]
        %v2667 = vld [vmem:[%s711 + $0x22] sm:$0xff]
        %v2668 = vld [vmem:[%s711 + $0x32] sm:$0xff]
        %v2669 = vld [vmem:[%s711 + $0x42] sm:$0xff]
        %v2670 = vld [vmem:[%s711 + $0x52] sm:$0xff]
        %v2671 = vld [vmem:[%s711 + $0x62] sm:$0xff]
        %v2672 = vld [vmem:[%s711 + $0x72] sm:$0xff]
        %v2673 = vadd.f32 %v2657, %v2665
        %v2674 = vadd.f32 %v2658, %v2666
        %v2675 = vadd.f32 %v2659, %v2667
        %v2676 = vadd.f32 %v2660, %v2668
        %v2677 = vadd.f32 %v2661, %v2669
        %v2678 = vadd.f32 %v2662, %v2670
        %v2679 = vadd.f32 %v2663, %v2671
        %v2680 = vadd.f32 %v2664, %v2672
        %v2681 = vld [vmem:[%s888] sm:$0xff]
        %v2682 = vld [vmem:[%s888 + $0x10] sm:$0xff]
        %v2683 = vld [vmem:[%s888 + $0x20] sm:$0xff]
        %v2684 = vld [vmem:[%s888 + $0x30] sm:$0xff]
        %v2685 = vld [vmem:[%s888 + $0x40] sm:$0xff]
        %v2686 = vld [vmem:[%s888 + $0x50] sm:$0xff]
        %v2687 = vld [vmem:[%s888 + $0x60] sm:$0xff]
        %v2688 = vld [vmem:[%s888 + $0x70] sm:$0xff]
        %v2689 = vadd.f32 %v2673, %v2681
        %v2690 = vadd.f32 %v2674, %v2682
        %v2691 = vadd.f32 %v2675, %v2683
        %v2692 = vadd.f32 %v2676, %v2684
        %v2693 = vadd.f32 %v2677, %v2685
        %v2694 = vadd.f32 %v2678, %v2686
        %v2695 = vadd.f32 %v2679, %v2687
        %v2696 = vadd.f32 %v2680, %v2688
        %v2697 = vld [vmem:[%s888 + $0x1] sm:$0xff]
        %v2698 = vld [vmem:[%s888 + $0x11] sm:$0xff]
        %v2699 = vld [vmem:[%s888 + $0x21] sm:$0xff]
        %v2700 = vld [vmem:[%s888 + $0x31] sm:$0xff]
        %v2701 = vld [vmem:[%s888 + $0x41] sm:$0xff]
        %v2702 = vld [vmem:[%s888 + $0x51] sm:$0xff]
        %v2703 = vld [vmem:[%s888 + $0x61] sm:$0xff]
        %v2704 = vld [vmem:[%s888 + $0x71] sm:$0xff]
        %v2705 = vadd.f32 %v2689, %v2697
        %v2706 = vadd.f32 %v2690, %v2698
        %v2707 = vadd.f32 %v2691, %v2699
        %v2708 = vadd.f32 %v2692, %v2700
        %v2709 = vadd.f32 %v2693, %v2701
        %v2710 = vadd.f32 %v2694, %v2702
        %v2711 = vadd.f32 %v2695, %v2703
        %v2712 = vadd.f32 %v2696, %v2704
        %v2713 = vld [vmem:[%s888 + $0x2] sm:$0xff]
        %v2714 = vld [vmem:[%s888 + $0x12] sm:$0xff]
        %v2715 = vld [vmem:[%s888 + $0x22] sm:$0xff]
        %v2716 = vld [vmem:[%s888 + $0x32] sm:$0xff]
        %v2717 = vld [vmem:[%s888 + $0x42] sm:$0xff]
        %v2718 = vld [vmem:[%s888 + $0x52] sm:$0xff]
        %v2719 = vld [vmem:[%s888 + $0x62] sm:$0xff]
        %v2720 = vld [vmem:[%s888 + $0x72] sm:$0xff]
        %v2721 = vadd.f32 %v2705, %v2713
        %v2722 = vadd.f32 %v2706, %v2714
        %v2723 = vadd.f32 %v2707, %v2715
        %v2724 = vadd.f32 %v2708, %v2716
        %v2725 = vadd.f32 %v2709, %v2717
        %v2726 = vadd.f32 %v2710, %v2718
        %v2727 = vadd.f32 %v2711, %v2719
        %v2728 = vadd.f32 %v2712, %v2720
        %v2729 = vld [vmem:[%s8] sm:$0xff]
        %v2730 = vld [vmem:[%s8 + $0x8] sm:$0xff]
        %v2731 = vld [vmem:[%s8 + $0x10] sm:$0xff]
        %v2732 = vld [vmem:[%s8 + $0x18] sm:$0xff]
        %v2733 = vld [vmem:[%s8 + $0x20] sm:$0xff]
        %v2734 = vld [vmem:[%s8 + $0x28] sm:$0xff]
        %v2735 = vld [vmem:[%s8 + $0x30] sm:$0xff]
        %v2736 = vld [vmem:[%s8 + $0x38] sm:$0xff]
        %2738 = vset.pattern.permute.xlu0 0
        %2739 = vperm.xlu0 %2738, %v2729
        %v2740 = vpop.permute.xlu0 %2739
        %2743 = vset.pattern.permute.xlu0 0
        %2744 = vperm.xlu0 %2743, %v2730
        %v2745 = vpop.permute.xlu0 %2744
        %2748 = vset.pattern.permute.xlu0 0
        %2749 = vperm.xlu0 %2748, %v2731
        %v2750 = vpop.permute.xlu0 %2749
        %2753 = vset.pattern.permute.xlu0 0
        %2754 = vperm.xlu0 %2753, %v2732
        %v2755 = vpop.permute.xlu0 %2754
        %2758 = vset.pattern.permute.xlu0 0
        %2759 = vperm.xlu0 %2758, %v2733
        %v2760 = vpop.permute.xlu0 %2759
        %2763 = vset.pattern.permute.xlu0 0
        %2764 = vperm.xlu0 %2763, %v2734
        %v2765 = vpop.permute.xlu0 %2764
        %2768 = vset.pattern.permute.xlu0 0
        %2769 = vperm.xlu0 %2768, %v2735
        %v2770 = vpop.permute.xlu0 %2769
        %2773 = vset.pattern.permute.xlu0 0
        %2774 = vperm.xlu0 %2773, %v2736
        %v2775 = vpop.permute.xlu0 %2774
        %v2777 = vmul.f32 %v2721, %v2740
        %v2778 = vmul.f32 %v2722, %v2745
        %v2779 = vmul.f32 %v2723, %v2750
        %v2780 = vmul.f32 %v2724, %v2755
        %v2781 = vmul.f32 %v2725, %v2760
        %v2782 = vmul.f32 %v2726, %v2765
        %v2783 = vmul.f32 %v2727, %v2770
        %v2784 = vmul.f32 %v2728, %v2775
        %v2785 = vmax.f32 %v1531, 0.0
        %v2786 = vmax.f32 %v1532, 0.0
        %v2787 = vmax.f32 %v1533, 0.0
        %v2788 = vmax.f32 %v1534, 0.0
        %v2789 = vmax.f32 %v1535, 0.0
        %v2790 = vmax.f32 %v1536, 0.0
        %v2791 = vmax.f32 %v1537, 0.0
        %v2792 = vmax.f32 %v1538, 0.0
        %2793 = vst.msk [vmem:[#allocation2] sm:$0xff] %vm400, 0.0
        %2794 = vst.msk [vmem:[#allocation2 + $0x8] sm:$0x3] %vm691, 0.0
        %2795 = vst.msk [vmem:[#allocation2 + $0x10] sm:$0xff] %vm400, 0.0
        %2796 = vst.msk [vmem:[#allocation2 + $0x18] sm:$0x3] %vm691, 0.0
        %2797 = vst.msk [vmem:[#allocation2 + $0x20] sm:$0xff] %vm400, 0.0
        %2798 = vst.msk [vmem:[#allocation2 + $0x28] sm:$0x3] %vm691, 0.0
        %2799 = vst.msk [vmem:[#allocation2 + $0x30] sm:$0xff] %vm400, 0.0
        %2800 = vst.msk [vmem:[#allocation2 + $0x38] sm:$0x3] %vm691, 0.0
        %2801 = vst.msk [vmem:[#allocation2 + $0x40] sm:$0xff] %vm400, 0.0
        %2802 = vst.msk [vmem:[#allocation2 + $0x48] sm:$0x3] %vm691, 0.0
        %2803 = vst.msk [vmem:[#allocation2 + $0x50] sm:$0xff] %vm400, 0.0
        %2804 = vst.msk [vmem:[#allocation2 + $0x58] sm:$0x3] %vm691, 0.0
        %2805 = vst.msk [vmem:[#allocation2 + $0x60] sm:$0xff] %vm400, 0.0
        %2806 = vst.msk [vmem:[#allocation2 + $0x68] sm:$0x3] %vm691, 0.0
        %2807 = vst.msk [vmem:[#allocation2 + $0x70] sm:$0xff] %vm400, 0.0
        %2808 = vst.msk [vmem:[#allocation2 + $0x78] sm:$0x3] %vm691, 0.0
        %2809 = vst.msk [vmem:[#allocation2 + $0x80] sm:$0xff] %vm400, 0.0
        %2810 = vst.msk [vmem:[#allocation2 + $0x88] sm:$0x3] %vm691, 0.0
        %2811 = vst.msk [vmem:[#allocation2 + $0x90] sm:$0xff] %vm400, 0.0
        %2812 = vst.msk [vmem:[#allocation2 + $0x98] sm:$0x3] %vm691, 0.0
        %2813 = vst.msk [vmem:[%s711 + $0x1] sm:$0xff] %vm400, %v2785
        %2814 = vst.msk [vmem:[%s711 + $0x11] sm:$0xff] %vm400, %v2786
        %2815 = vst.msk [vmem:[%s711 + $0x21] sm:$0xff] %vm400, %v2787
        %2816 = vst.msk [vmem:[%s711 + $0x31] sm:$0xff] %vm400, %v2788
        %2817 = vst.msk [vmem:[%s711 + $0x41] sm:$0xff] %vm400, %v2789
        %2818 = vst.msk [vmem:[%s711 + $0x51] sm:$0xff] %vm400, %v2790
        %2819 = vst.msk [vmem:[%s711 + $0x61] sm:$0xff] %vm400, %v2791
        %2820 = vst.msk [vmem:[%s711 + $0x71] sm:$0xff] %vm400, %v2792
        %v2821 = vld [vmem:[#allocation2] sm:$0xff]
        %v2822 = vld [vmem:[#allocation2 + $0x10] sm:$0xff]
        %v2823 = vld [vmem:[#allocation2 + $0x20] sm:$0xff]
        %v2824 = vld [vmem:[#allocation2 + $0x30] sm:$0xff]
        %v2825 = vld [vmem:[#allocation2 + $0x40] sm:$0xff]
        %v2826 = vld [vmem:[#allocation2 + $0x50] sm:$0xff]
        %v2827 = vld [vmem:[#allocation2 + $0x60] sm:$0xff]
        %v2828 = vld [vmem:[#allocation2 + $0x70] sm:$0xff]
        %v2829 = vlaneseq
        %v2830 = vshrl.u32 %v2829, 7
        %v2831 = vsub.s32 0, %v2830
        %v2832 = vrot.slane %v359, %v2831
        %v2833 = vmul.f32 %v2821, %v2832
        %v2834 = vmul.f32 %v2822, %v2832
        %v2835 = vmul.f32 %v2823, %v2832
        %v2836 = vmul.f32 %v2824, %v2832
        %v2837 = vmul.f32 %v2825, %v2832
        %v2838 = vmul.f32 %v2826, %v2832
        %v2839 = vmul.f32 %v2827, %v2832
        %v2840 = vmul.f32 %v2828, %v2832
        %v2841 = vadd.f32 %v2833, 0.0
        %v2842 = vadd.f32 %v2834, 0.0
        %v2843 = vadd.f32 %v2835, 0.0
        %v2844 = vadd.f32 %v2836, 0.0
        %v2845 = vadd.f32 %v2837, 0.0
        %v2846 = vadd.f32 %v2838, 0.0
        %v2847 = vadd.f32 %v2839, 0.0
        %v2848 = vadd.f32 %v2840, 0.0
        %v2849 = vld [vmem:[#allocation2 + $0x1] sm:$0xff]
        %v2850 = vld [vmem:[#allocation2 + $0x11] sm:$0xff]
        %v2851 = vld [vmem:[#allocation2 + $0x21] sm:$0xff]
        %v2852 = vld [vmem:[#allocation2 + $0x31] sm:$0xff]
        %v2853 = vld [vmem:[#allocation2 + $0x41] sm:$0xff]
        %v2854 = vld [vmem:[#allocation2 + $0x51] sm:$0xff]
        %v2855 = vld [vmem:[#allocation2 + $0x61] sm:$0xff]
        %v2856 = vld [vmem:[#allocation2 + $0x71] sm:$0xff]
        %v2857 = vlaneseq
        %v2858 = vshrl.u32 %v2857, 7
        %v2859 = vsub.s32 1, %v2858
        %v2860 = vrot.slane %v359, %v2859
        %v2861 = vmul.f32 %v2849, %v2860
        %v2862 = vmul.f32 %v2850, %v2860
        %v2863 = vmul.f32 %v2851, %v2860
        %v2864 = vmul.f32 %v2852, %v2860
        %v2865 = vmul.f32 %v2853, %v2860
        %v2866 = vmul.f32 %v2854, %v2860
        %v2867 = vmul.f32 %v2855, %v2860
        %v2868 = vmul.f32 %v2856, %v2860
        %v2869 = vadd.f32 %v2841, %v2861
        %v2870 = vadd.f32 %v2842, %v2862
        %v2871 = vadd.f32 %v2843, %v2863
        %v2872 = vadd.f32 %v2844, %v2864
        %v2873 = vadd.f32 %v2845, %v2865
        %v2874 = vadd.f32 %v2846, %v2866
        %v2875 = vadd.f32 %v2847, %v2867
        %v2876 = vadd.f32 %v2848, %v2868
        %v2877 = vld [vmem:[#allocation2 + $0x2] sm:$0xff]
        %v2878 = vld [vmem:[#allocation2 + $0x12] sm:$0xff]
        %v2879 = vld [vmem:[#allocation2 + $0x22] sm:$0xff]
        %v2880 = vld [vmem:[#allocation2 + $0x32] sm:$0xff]
        %v2881 = vld [vmem:[#allocation2 + $0x42] sm:$0xff]
        %v2882 = vld [vmem:[#allocation2 + $0x52] sm:$0xff]
        %v2883 = vld [vmem:[#allocation2 + $0x62] sm:$0xff]
        %v2884 = vld [vmem:[#allocation2 + $0x72] sm:$0xff]
        %v2885 = vlaneseq
        %v2886 = vshrl.u32 %v2885, 7
        %v2887 = vsub.s32 2, %v2886
        %v2888 = vrot.slane %v359, %v2887
        %v2889 = vmul.f32 %v2877, %v2888
        %v2890 = vmul.f32 %v2878, %v2888
        %v2891 = vmul.f32 %v2879, %v2888
        %v2892 = vmul.f32 %v2880, %v2888
        %v2893 = vmul.f32 %v2881, %v2888
        %v2894 = vmul.f32 %v2882, %v2888
        %v2895 = vmul.f32 %v2883, %v2888
        %v2896 = vmul.f32 %v2884, %v2888
        %v2897 = vadd.f32 %v2869, %v2889
        %v2898 = vadd.f32 %v2870, %v2890
        %v2899 = vadd.f32 %v2871, %v2891
        %v2900 = vadd.f32 %v2872, %v2892
        %v2901 = vadd.f32 %v2873, %v2893
        %v2902 = vadd.f32 %v2874, %v2894
        %v2903 = vadd.f32 %v2875, %v2895
        %v2904 = vadd.f32 %v2876, %v2896
        %v2905 = vld [vmem:[%s711] sm:$0xff]
        %v2906 = vld [vmem:[%s711 + $0x10] sm:$0xff]
        %v2907 = vld [vmem:[%s711 + $0x20] sm:$0xff]
        %v2908 = vld [vmem:[%s711 + $0x30] sm:$0xff]
        %v2909 = vld [vmem:[%s711 + $0x40] sm:$0xff]
        %v2910 = vld [vmem:[%s711 + $0x50] sm:$0xff]
        %v2911 = vld [vmem:[%s711 + $0x60] sm:$0xff]
        %v2912 = vld [vmem:[%s711 + $0x70] sm:$0xff]
        %v2913 = vlaneseq
        %v2914 = vshrl.u32 %v2913, 7
        %v2915 = vsub.s32 3, %v2914
        %v2916 = vrot.slane %v359, %v2915
        %v2917 = vmul.f32 %v2905, %v2916
        %v2918 = vmul.f32 %v2906, %v2916
        %v2919 = vmul.f32 %v2907, %v2916
        %v2920 = vmul.f32 %v2908, %v2916
        %v2921 = vmul.f32 %v2909, %v2916
        %v2922 = vmul.f32 %v2910, %v2916
        %v2923 = vmul.f32 %v2911, %v2916
        %v2924 = vmul.f32 %v2912, %v2916
        %v2925 = vadd.f32 %v2897, %v2917
        %v2926 = vadd.f32 %v2898, %v2918
        %v2927 = vadd.f32 %v2899, %v2919
        %v2928 = vadd.f32 %v2900, %v2920
        %v2929 = vadd.f32 %v2901, %v2921
        %v2930 = vadd.f32 %v2902, %v2922
        %v2931 = vadd.f32 %v2903, %v2923
        %v2932 = vadd.f32 %v2904, %v2924
        %v2933 = vld [vmem:[%s711 + $0x1] sm:$0xff]
        %v2934 = vld [vmem:[%s711 + $0x11] sm:$0xff]
        %v2935 = vld [vmem:[%s711 + $0x21] sm:$0xff]
        %v2936 = vld [vmem:[%s711 + $0x31] sm:$0xff]
        %v2937 = vld [vmem:[%s711 + $0x41] sm:$0xff]
        %v2938 = vld [vmem:[%s711 + $0x51] sm:$0xff]
        %v2939 = vld [vmem:[%s711 + $0x61] sm:$0xff]
        %v2940 = vld [vmem:[%s711 + $0x71] sm:$0xff]
        %v2941 = vlaneseq
        %v2942 = vshrl.u32 %v2941, 7
        %v2943 = vsub.s32 4, %v2942
        %v2944 = vrot.slane %v359, %v2943
        %v2945 = vmul.f32 %v2933, %v2944
        %v2946 = vmul.f32 %v2934, %v2944
        %v2947 = vmul.f32 %v2935, %v2944
        %v2948 = vmul.f32 %v2936, %v2944
        %v2949 = vmul.f32 %v2937, %v2944
        %v2950 = vmul.f32 %v2938, %v2944
        %v2951 = vmul.f32 %v2939, %v2944
        %v2952 = vmul.f32 %v2940, %v2944
        %v2953 = vadd.f32 %v2925, %v2945
        %v2954 = vadd.f32 %v2926, %v2946
        %v2955 = vadd.f32 %v2927, %v2947
        %v2956 = vadd.f32 %v2928, %v2948
        %v2957 = vadd.f32 %v2929, %v2949
        %v2958 = vadd.f32 %v2930, %v2950
        %v2959 = vadd.f32 %v2931, %v2951
        %v2960 = vadd.f32 %v2932, %v2952
        %v2961 = vld [vmem:[%s711 + $0x2] sm:$0xff]
        %v2962 = vld [vmem:[%s711 + $0x12] sm:$0xff]
        %v2963 = vld [vmem:[%s711 + $0x22] sm:$0xff]
        %v2964 = vld [vmem:[%s711 + $0x32] sm:$0xff]
        %v2965 = vld [vmem:[%s711 + $0x42] sm:$0xff]
        %v2966 = vld [vmem:[%s711 + $0x52] sm:$0xff]
        %v2967 = vld [vmem:[%s711 + $0x62] sm:$0xff]
        %v2968 = vld [vmem:[%s711 + $0x72] sm:$0xff]
        %v2969 = vlaneseq
        %v2970 = vshrl.u32 %v2969, 7
        %v2971 = vsub.s32 5, %v2970
        %v2972 = vrot.slane %v359, %v2971
        %v2973 = vmul.f32 %v2961, %v2972
        %v2974 = vmul.f32 %v2962, %v2972
        %v2975 = vmul.f32 %v2963, %v2972
        %v2976 = vmul.f32 %v2964, %v2972
        %v2977 = vmul.f32 %v2965, %v2972
        %v2978 = vmul.f32 %v2966, %v2972
        %v2979 = vmul.f32 %v2967, %v2972
        %v2980 = vmul.f32 %v2968, %v2972
        %v2981 = vadd.f32 %v2953, %v2973
        %v2982 = vadd.f32 %v2954, %v2974
        %v2983 = vadd.f32 %v2955, %v2975
        %v2984 = vadd.f32 %v2956, %v2976
        %v2985 = vadd.f32 %v2957, %v2977
        %v2986 = vadd.f32 %v2958, %v2978
        %v2987 = vadd.f32 %v2959, %v2979
        %v2988 = vadd.f32 %v2960, %v2980
        %v2989 = vld [vmem:[%s888] sm:$0xff]
        %v2990 = vld [vmem:[%s888 + $0x10] sm:$0xff]
        %v2991 = vld [vmem:[%s888 + $0x20] sm:$0xff]
        %v2992 = vld [vmem:[%s888 + $0x30] sm:$0xff]
        %v2993 = vld [vmem:[%s888 + $0x40] sm:$0xff]
        %v2994 = vld [vmem:[%s888 + $0x50] sm:$0xff]
        %v2995 = vld [vmem:[%s888 + $0x60] sm:$0xff]
        %v2996 = vld [vmem:[%s888 + $0x70] sm:$0xff]
        %v2997 = vlaneseq
        %v2998 = vshrl.u32 %v2997, 7
        %v2999 = vsub.s32 6, %v2998
        %v3000 = vrot.slane %v359, %v2999
        %v3001 = vmul.f32 %v2989, %v3000
        %v3002 = vmul.f32 %v2990, %v3000
        %v3003 = vmul.f32 %v2991, %v3000
        %v3004 = vmul.f32 %v2992, %v3000
        %v3005 = vmul.f32 %v2993, %v3000
        %v3006 = vmul.f32 %v2994, %v3000
        %v3007 = vmul.f32 %v2995, %v3000
        %v3008 = vmul.f32 %v2996, %v3000
        %v3009 = vadd.f32 %v2981, %v3001
        %v3010 = vadd.f32 %v2982, %v3002
        %v3011 = vadd.f32 %v2983, %v3003
        %v3012 = vadd.f32 %v2984, %v3004
        %v3013 = vadd.f32 %v2985, %v3005
        %v3014 = vadd.f32 %v2986, %v3006
        %v3015 = vadd.f32 %v2987, %v3007
        %v3016 = vadd.f32 %v2988, %v3008
        %v3017 = vld [vmem:[%s888 + $0x1] sm:$0xff]
        %v3018 = vld [vmem:[%s888 + $0x11] sm:$0xff]
        %v3019 = vld [vmem:[%s888 + $0x21] sm:$0xff]
        %v3020 = vld [vmem:[%s888 + $0x31] sm:$0xff]
        %v3021 = vld [vmem:[%s888 + $0x41] sm:$0xff]
        %v3022 = vld [vmem:[%s888 + $0x51] sm:$0xff]
        %v3023 = vld [vmem:[%s888 + $0x61] sm:$0xff]
        %v3024 = vld [vmem:[%s888 + $0x71] sm:$0xff]
        %v3025 = vlaneseq
        %v3026 = vshrl.u32 %v3025, 7
        %v3027 = vsub.s32 7, %v3026
        %v3028 = vrot.slane %v359, %v3027
        %v3029 = vmul.f32 %v3017, %v3028
        %v3030 = vmul.f32 %v3018, %v3028
        %v3031 = vmul.f32 %v3019, %v3028
        %v3032 = vmul.f32 %v3020, %v3028
        %v3033 = vmul.f32 %v3021, %v3028
        %v3034 = vmul.f32 %v3022, %v3028
        %v3035 = vmul.f32 %v3023, %v3028
        %v3036 = vmul.f32 %v3024, %v3028
        %v3037 = vadd.f32 %v3009, %v3029
        %v3038 = vadd.f32 %v3010, %v3030
        %v3039 = vadd.f32 %v3011, %v3031
        %v3040 = vadd.f32 %v3012, %v3032
        %v3041 = vadd.f32 %v3013, %v3033
        %v3042 = vadd.f32 %v3014, %v3034
        %v3043 = vadd.f32 %v3015, %v3035
        %v3044 = vadd.f32 %v3016, %v3036
        %v3045 = vld [vmem:[%s888 + $0x2] sm:$0xff]
        %v3046 = vld [vmem:[%s888 + $0x12] sm:$0xff]
        %v3047 = vld [vmem:[%s888 + $0x22] sm:$0xff]
        %v3048 = vld [vmem:[%s888 + $0x32] sm:$0xff]
        %v3049 = vld [vmem:[%s888 + $0x42] sm:$0xff]
        %v3050 = vld [vmem:[%s888 + $0x52] sm:$0xff]
        %v3051 = vld [vmem:[%s888 + $0x62] sm:$0xff]
        %v3052 = vld [vmem:[%s888 + $0x72] sm:$0xff]
        %v3053 = vlaneseq
        %v3054 = vshrl.u32 %v3053, 7
        %v3055 = vsub.s32 0, %v3054
        %v3056 = vrot.slane %v360, %v3055
        %v3057 = vmul.f32 %v3045, %v3056
        %v3058 = vmul.f32 %v3046, %v3056
        %v3059 = vmul.f32 %v3047, %v3056
        %v3060 = vmul.f32 %v3048, %v3056
        %v3061 = vmul.f32 %v3049, %v3056
        %v3062 = vmul.f32 %v3050, %v3056
        %v3063 = vmul.f32 %v3051, %v3056
        %v3064 = vmul.f32 %v3052, %v3056
        %v3065 = vadd.f32 %v3037, %v3057
        %v3066 = vadd.f32 %v3038, %v3058
        %v3067 = vadd.f32 %v3039, %v3059
        %v3068 = vadd.f32 %v3040, %v3060
        %v3069 = vadd.f32 %v3041, %v3061
        %v3070 = vadd.f32 %v3042, %v3062
        %v3071 = vadd.f32 %v3043, %v3063
        %v3072 = vadd.f32 %v3044, %v3064
        %v3074 = vlaneseq
        %v3075 = vshrl.u32 %v3074, 7
        %v3076 = vsub.s32 0, %v3075
        %v3077 = vrot.slane %v373, %v3076
        %v3080 = vsel %vm400, %v3065, 0
        %v3083 = vsel %vm400, %v3066, 0
        %v3086 = vsel %vm400, %v3067, 0
        %v3089 = vsel %vm400, %v3068, 0
        %v3092 = vsel %vm400, %v3069, 0
        %v3095 = vsel %vm400, %v3070, 0
        %v3098 = vsel %vm400, %v3071, 0
        %v3101 = vsel %vm400, %v3072, 0
        %3103 = vmatprep.subr.mxu0 0.0
        %3104 = vmatpush1.msra.mxu0 0.0
        %3105 = vmatprep.subr.mxu0 0.0
        %3106 = vmatpush1.msra.mxu0 0.0
        %3107 = vmatprep.subr.mxu0 0.0
        %3108 = vmatpush1.msra.mxu0 0.0
        %3109 = vmatprep.subr.mxu0 0.0
        %3110 = vmatpush1.msra.mxu0 0.0
        %3111 = vmatprep.subr.mxu0 0.0
        %3112 = vmatpush1.msra.mxu0 0.0
        %3113 = vmatprep.subr.mxu0 0.0
        %3114 = vmatpush1.msra.mxu0 0.0
        %3115 = vmatprep.subr.mxu0 0.0
        %3116 = vmatpush1.msra.mxu0 0.0
        %3117 = vmatprep.subr.mxu0 0.0
        %3118 = vmatpush1.msra.mxu0 0.0
        %3119 = vmatprep.subr.mxu0 0.0
        %3120 = vmatpush1.msra.mxu0 0.0
        %3121 = vmatprep.subr.mxu0 0.0
        %3122 = vmatpush1.msra.mxu0 0.0
        %3123 = vmatprep.subr.mxu0 0.0
        %3124 = vmatpush1.msra.mxu0 0.0
        %3125 = vmatprep.subr.mxu0 0.0
        %3126 = vmatpush1.msra.mxu0 0.0
        %3127 = vmatprep.subr.mxu0 0.0
        %3128 = vmatpush1.msra.mxu0 0.0
        %3129 = vmatprep.subr.mxu0 0.0
        %3130 = vmatpush1.msra.mxu0 0.0
        %3131 = vmatprep.subr.mxu0 0.0
        %3132 = vmatpush1.msra.mxu0 0.0
        %3133 = vmatprep.subr.mxu0 0.0
        %3134 = vmatpush1.msra.mxu0 %v367
        %3135 = vmatprep.subr.mxu0 0.0
        %3136 = vmatpush2.msra.mxu0 0.0
        %3137 = vmatprep.subr.mxu0 0.0
        %3138 = vmatpush2.msra.mxu0 0.0
        %3139 = vmatprep.subr.mxu0 0.0
        %3140 = vmatpush2.msra.mxu0 0.0
        %3141 = vmatprep.subr.mxu0 0.0
        %3142 = vmatpush2.msra.mxu0 0.0
        %3143 = vmatprep.subr.mxu0 0.0
        %3144 = vmatpush2.msra.mxu0 0.0
        %3145 = vmatprep.subr.mxu0 0.0
        %3146 = vmatpush2.msra.mxu0 0.0
        %3147 = vmatprep.subr.mxu0 0.0
        %3148 = vmatpush2.msra.mxu0 0.0
        %3149 = vmatprep.subr.mxu0 0.0
        %3150 = vmatpush2.msra.mxu0 0.0
        %3151 = vmatprep.subr.mxu0 0.0
        %3152 = vmatpush2.msra.mxu0 0.0
        %3153 = vmatprep.subr.mxu0 0.0
        %3154 = vmatpush2.msra.mxu0 0.0
        %3155 = vmatprep.subr.mxu0 0.0
        %3156 = vmatpush2.msra.mxu0 0.0
        %3157 = vmatprep.subr.mxu0 0.0
        %3158 = vmatpush2.msra.mxu0 0.0
        %3159 = vmatprep.subr.mxu0 0.0
        %3160 = vmatpush2.msra.mxu0 0.0
        %3161 = vmatprep.subr.mxu0 0.0
        %3162 = vmatpush2.msra.mxu0 0.0
        %3163 = vmatprep.subr.mxu0 0.0
        %3164 = vmatpush2.msra.mxu0 0.0
        %3165 = vmatprep.subr.mxu0 0.0
        %3166 = vmatpush2.msra.mxu0 0.0
        %3167 = vmatprep.mubr.f32.mxu0 0.0
        %3168 = vmatmul.mubr.f32.gmra.mxu0 %v3080
        %v3169 = vpop.f32.mrf.mxu0
        %v3170 = vadd.f32 %v3077, %v3169
        %v3171 = vpop.f32.mrf.mxu0
        %3172 = vmatprep.mubr.f32.mxu0 0.0
        %3173 = vmatmul.mubr.f32.gmra.mxu0 %v3083
        %v3174 = vpop.f32.mrf.mxu0
        %v3175 = vadd.f32 %v3077, %v3174
        %v3176 = vpop.f32.mrf.mxu0
        %3177 = vmatprep.mubr.f32.mxu0 0.0
        %3178 = vmatmul.mubr.f32.gmra.mxu0 %v3086
        %v3179 = vpop.f32.mrf.mxu0
        %v3180 = vadd.f32 %v3077, %v3179
        %v3181 = vpop.f32.mrf.mxu0
        %3182 = vmatprep.mubr.f32.mxu0 0.0
        %3183 = vmatmul.mubr.f32.gmra.mxu0 %v3089
        %v3184 = vpop.f32.mrf.mxu0
        %v3185 = vadd.f32 %v3077, %v3184
        %v3186 = vpop.f32.mrf.mxu0
        %3187 = vmatprep.mubr.f32.mxu0 0.0
        %3188 = vmatmul.mubr.f32.gmra.mxu0 %v3092
        %v3189 = vpop.f32.mrf.mxu0
        %v3190 = vadd.f32 %v3077, %v3189
        %v3191 = vpop.f32.mrf.mxu0
        %3192 = vmatprep.mubr.f32.mxu0 0.0
        %3193 = vmatmul.mubr.f32.gmra.mxu0 %v3095
        %v3194 = vpop.f32.mrf.mxu0
        %v3195 = vadd.f32 %v3077, %v3194
        %v3196 = vpop.f32.mrf.mxu0
        %3197 = vmatprep.mubr.f32.mxu0 0.0
        %3198 = vmatmul.mubr.f32.gmra.mxu0 %v3098
        %v3199 = vpop.f32.mrf.mxu0
        %v3200 = vadd.f32 %v3077, %v3199
        %v3201 = vpop.f32.mrf.mxu0
        %3202 = vmatprep.mubr.f32.mxu0 0.0
        %3203 = vmatmul.mubr.f32.gmra.mxu0 %v3101
        %v3204 = vpop.f32.mrf.mxu0
        %v3205 = vadd.f32 %v3077, %v3204
        %v3206 = vpop.f32.mrf.mxu0
        %3207 = vdwg.mxu0
        %v3208 = vmax.f32 %v3170, 0.0
        %v3209 = vmax.f32 %v3175, 0.0
        %v3210 = vmax.f32 %v3180, 0.0
        %v3211 = vmax.f32 %v3185, 0.0
        %v3212 = vmax.f32 %v3190, 0.0
        %v3213 = vmax.f32 %v3195, 0.0
        %v3214 = vmax.f32 %v3200, 0.0
        %v3215 = vmax.f32 %v3205, 0.0
        %3216 = vst.msk [vmem:[#allocation2] sm:$0xff] %vm400, 0.0
        %3217 = vst.msk [vmem:[#allocation2 + $0x8] sm:$0x3] %vm691, 0.0
        %3218 = vst.msk [vmem:[#allocation2 + $0x10] sm:$0xff] %vm400, 0.0
        %3219 = vst.msk [vmem:[#allocation2 + $0x18] sm:$0x3] %vm691, 0.0
        %3220 = vst.msk [vmem:[#allocation2 + $0x20] sm:$0xff] %vm400, 0.0
        %3221 = vst.msk [vmem:[#allocation2 + $0x28] sm:$0x3] %vm691, 0.0
        %3222 = vst.msk [vmem:[#allocation2 + $0x30] sm:$0xff] %vm400, 0.0
        %3223 = vst.msk [vmem:[#allocation2 + $0x38] sm:$0x3] %vm691, 0.0
        %3224 = vst.msk [vmem:[#allocation2 + $0x40] sm:$0xff] %vm400, 0.0
        %3225 = vst.msk [vmem:[#allocation2 + $0x48] sm:$0x3] %vm691, 0.0
        %3226 = vst.msk [vmem:[#allocation2 + $0x50] sm:$0xff] %vm400, 0.0
        %3227 = vst.msk [vmem:[#allocation2 + $0x58] sm:$0x3] %vm691, 0.0
        %3228 = vst.msk [vmem:[#allocation2 + $0x60] sm:$0xff] %vm400, 0.0
        %3229 = vst.msk [vmem:[#allocation2 + $0x68] sm:$0x3] %vm691, 0.0
        %3230 = vst.msk [vmem:[#allocation2 + $0x70] sm:$0xff] %vm400, 0.0
        %3231 = vst.msk [vmem:[#allocation2 + $0x78] sm:$0x3] %vm691, 0.0
        %3232 = vst.msk [vmem:[#allocation2 + $0x80] sm:$0xff] %vm400, 0.0
        %3233 = vst.msk [vmem:[#allocation2 + $0x88] sm:$0x3] %vm691, 0.0
        %3234 = vst.msk [vmem:[#allocation2 + $0x90] sm:$0xff] %vm400, 0.0
        %3235 = vst.msk [vmem:[#allocation2 + $0x98] sm:$0x3] %vm691, 0.0
        %3236 = vst.msk [vmem:[%s711 + $0x1] sm:$0xff] %vm400, %v3208
        %3237 = vst.msk [vmem:[%s711 + $0x11] sm:$0xff] %vm400, %v3209
        %3238 = vst.msk [vmem:[%s711 + $0x21] sm:$0xff] %vm400, %v3210
        %3239 = vst.msk [vmem:[%s711 + $0x31] sm:$0xff] %vm400, %v3211
        %3240 = vst.msk [vmem:[%s711 + $0x41] sm:$0xff] %vm400, %v3212
        %3241 = vst.msk [vmem:[%s711 + $0x51] sm:$0xff] %vm400, %v3213
        %3242 = vst.msk [vmem:[%s711 + $0x61] sm:$0xff] %vm400, %v3214
        %3243 = vst.msk [vmem:[%s711 + $0x71] sm:$0xff] %vm400, %v3215
        %v3244 = vld [vmem:[#allocation2] sm:$0xff]
        %v3245 = vld [vmem:[#allocation2 + $0x10] sm:$0xff]
        %v3246 = vld [vmem:[#allocation2 + $0x20] sm:$0xff]
        %v3247 = vld [vmem:[#allocation2 + $0x30] sm:$0xff]
        %v3248 = vld [vmem:[#allocation2 + $0x40] sm:$0xff]
        %v3249 = vld [vmem:[#allocation2 + $0x50] sm:$0xff]
        %v3250 = vld [vmem:[#allocation2 + $0x60] sm:$0xff]
        %v3251 = vld [vmem:[#allocation2 + $0x70] sm:$0xff]
        %v3252 = vlaneseq
        %v3253 = vshrl.u32 %v3252, 7
        %v3254 = vsub.s32 0, %v3253
        %v3255 = vrot.slane %v361, %v3254
        %v3256 = vmul.f32 %v3244, %v3255
        %v3257 = vmul.f32 %v3245, %v3255
        %v3258 = vmul.f32 %v3246, %v3255
        %v3259 = vmul.f32 %v3247, %v3255
        %v3260 = vmul.f32 %v3248, %v3255
        %v3261 = vmul.f32 %v3249, %v3255
        %v3262 = vmul.f32 %v3250, %v3255
        %v3263 = vmul.f32 %v3251, %v3255
        %v3264 = vadd.f32 %v3256, 0.0
        %v3265 = vadd.f32 %v3257, 0.0
        %v3266 = vadd.f32 %v3258, 0.0
        %v3267 = vadd.f32 %v3259, 0.0
        %v3268 = vadd.f32 %v3260, 0.0
        %v3269 = vadd.f32 %v3261, 0.0
        %v3270 = vadd.f32 %v3262, 0.0
        %v3271 = vadd.f32 %v3263, 0.0
        %v3272 = vld [vmem:[#allocation2 + $0x1] sm:$0xff]
        %v3273 = vld [vmem:[#allocation2 + $0x11] sm:$0xff]
        %v3274 = vld [vmem:[#allocation2 + $0x21] sm:$0xff]
        %v3275 = vld [vmem:[#allocation2 + $0x31] sm:$0xff]
        %v3276 = vld [vmem:[#allocation2 + $0x41] sm:$0xff]
        %v3277 = vld [vmem:[#allocation2 + $0x51] sm:$0xff]
        %v3278 = vld [vmem:[#allocation2 + $0x61] sm:$0xff]
        %v3279 = vld [vmem:[#allocation2 + $0x71] sm:$0xff]
        %v3280 = vlaneseq
        %v3281 = vshrl.u32 %v3280, 7
        %v3282 = vsub.s32 1, %v3281
        %v3283 = vrot.slane %v361, %v3282
        %v3284 = vmul.f32 %v3272, %v3283
        %v3285 = vmul.f32 %v3273, %v3283
        %v3286 = vmul.f32 %v3274, %v3283
        %v3287 = vmul.f32 %v3275, %v3283
        %v3288 = vmul.f32 %v3276, %v3283
        %v3289 = vmul.f32 %v3277, %v3283
        %v3290 = vmul.f32 %v3278, %v3283
        %v3291 = vmul.f32 %v3279, %v3283
        %v3292 = vadd.f32 %v3264, %v3284
        %v3293 = vadd.f32 %v3265, %v3285
        %v3294 = vadd.f32 %v3266, %v3286
        %v3295 = vadd.f32 %v3267, %v3287
        %v3296 = vadd.f32 %v3268, %v3288
        %v3297 = vadd.f32 %v3269, %v3289
        %v3298 = vadd.f32 %v3270, %v3290
        %v3299 = vadd.f32 %v3271, %v3291
        %v3300 = vld [vmem:[#allocation2 + $0x2] sm:$0xff]
        %v3301 = vld [vmem:[#allocation2 + $0x12] sm:$0xff]
        %v3302 = vld [vmem:[#allocation2 + $0x22] sm:$0xff]
        %v3303 = vld [vmem:[#allocation2 + $0x32] sm:$0xff]
        %v3304 = vld [vmem:[#allocation2 + $0x42] sm:$0xff]
        %v3305 = vld [vmem:[#allocation2 + $0x52] sm:$0xff]
        %v3306 = vld [vmem:[#allocation2 + $0x62] sm:$0xff]
        %v3307 = vld [vmem:[#allocation2 + $0x72] sm:$0xff]
        %v3308 = vlaneseq
        %v3309 = vshrl.u32 %v3308, 7
        %v3310 = vsub.s32 2, %v3309
        %v3311 = vrot.slane %v361, %v3310
        %v3312 = vmul.f32 %v3300, %v3311
        %v3313 = vmul.f32 %v3301, %v3311
        %v3314 = vmul.f32 %v3302, %v3311
        %v3315 = vmul.f32 %v3303, %v3311
        %v3316 = vmul.f32 %v3304, %v3311
        %v3317 = vmul.f32 %v3305, %v3311
        %v3318 = vmul.f32 %v3306, %v3311
        %v3319 = vmul.f32 %v3307, %v3311
        %v3320 = vadd.f32 %v3292, %v3312
        %v3321 = vadd.f32 %v3293, %v3313
        %v3322 = vadd.f32 %v3294, %v3314
        %v3323 = vadd.f32 %v3295, %v3315
        %v3324 = vadd.f32 %v3296, %v3316
        %v3325 = vadd.f32 %v3297, %v3317
        %v3326 = vadd.f32 %v3298, %v3318
        %v3327 = vadd.f32 %v3299, %v3319
        %v3328 = vld [vmem:[%s711] sm:$0xff]
        %v3329 = vld [vmem:[%s711 + $0x10] sm:$0xff]
        %v3330 = vld [vmem:[%s711 + $0x20] sm:$0xff]
        %v3331 = vld [vmem:[%s711 + $0x30] sm:$0xff]
        %v3332 = vld [vmem:[%s711 + $0x40] sm:$0xff]
        %v3333 = vld [vmem:[%s711 + $0x50] sm:$0xff]
        %v3334 = vld [vmem:[%s711 + $0x60] sm:$0xff]
        %v3335 = vld [vmem:[%s711 + $0x70] sm:$0xff]
        %v3336 = vlaneseq
        %v3337 = vshrl.u32 %v3336, 7
        %v3338 = vsub.s32 3, %v3337
        %v3339 = vrot.slane %v361, %v3338
        %v3340 = vmul.f32 %v3328, %v3339
        %v3341 = vmul.f32 %v3329, %v3339
        %v3342 = vmul.f32 %v3330, %v3339
        %v3343 = vmul.f32 %v3331, %v3339
        %v3344 = vmul.f32 %v3332, %v3339
        %v3345 = vmul.f32 %v3333, %v3339
        %v3346 = vmul.f32 %v3334, %v3339
        %v3347 = vmul.f32 %v3335, %v3339
        %v3348 = vadd.f32 %v3320, %v3340
        %v3349 = vadd.f32 %v3321, %v3341
        %v3350 = vadd.f32 %v3322, %v3342
        %v3351 = vadd.f32 %v3323, %v3343
        %v3352 = vadd.f32 %v3324, %v3344
        %v3353 = vadd.f32 %v3325, %v3345
        %v3354 = vadd.f32 %v3326, %v3346
        %v3355 = vadd.f32 %v3327, %v3347
        %v3356 = vld [vmem:[%s711 + $0x1] sm:$0xff]
        %v3357 = vld [vmem:[%s711 + $0x11] sm:$0xff]
        %v3358 = vld [vmem:[%s711 + $0x21] sm:$0xff]
        %v3359 = vld [vmem:[%s711 + $0x31] sm:$0xff]
        %v3360 = vld [vmem:[%s711 + $0x41] sm:$0xff]
        %v3361 = vld [vmem:[%s711 + $0x51] sm:$0xff]
        %v3362 = vld [vmem:[%s711 + $0x61] sm:$0xff]
        %v3363 = vld [vmem:[%s711 + $0x71] sm:$0xff]
        %v3364 = vlaneseq
        %v3365 = vshrl.u32 %v3364, 7
        %v3366 = vsub.s32 4, %v3365
        %v3367 = vrot.slane %v361, %v3366
        %v3368 = vmul.f32 %v3356, %v3367
        %v3369 = vmul.f32 %v3357, %v3367
        %v3370 = vmul.f32 %v3358, %v3367
        %v3371 = vmul.f32 %v3359, %v3367
        %v3372 = vmul.f32 %v3360, %v3367
        %v3373 = vmul.f32 %v3361, %v3367
        %v3374 = vmul.f32 %v3362, %v3367
        %v3375 = vmul.f32 %v3363, %v3367
        %v3376 = vadd.f32 %v3348, %v3368
        %v3377 = vadd.f32 %v3349, %v3369
        %v3378 = vadd.f32 %v3350, %v3370
        %v3379 = vadd.f32 %v3351, %v3371
        %v3380 = vadd.f32 %v3352, %v3372
        %v3381 = vadd.f32 %v3353, %v3373
        %v3382 = vadd.f32 %v3354, %v3374
        %v3383 = vadd.f32 %v3355, %v3375
        %v3384 = vld [vmem:[%s711 + $0x2] sm:$0xff]
        %v3385 = vld [vmem:[%s711 + $0x12] sm:$0xff]
        %v3386 = vld [vmem:[%s711 + $0x22] sm:$0xff]
        %v3387 = vld [vmem:[%s711 + $0x32] sm:$0xff]
        %v3388 = vld [vmem:[%s711 + $0x42] sm:$0xff]
        %v3389 = vld [vmem:[%s711 + $0x52] sm:$0xff]
        %v3390 = vld [vmem:[%s711 + $0x62] sm:$0xff]
        %v3391 = vld [vmem:[%s711 + $0x72] sm:$0xff]
        %v3392 = vlaneseq
        %v3393 = vshrl.u32 %v3392, 7
        %v3394 = vsub.s32 5, %v3393
        %v3395 = vrot.slane %v361, %v3394
        %v3396 = vmul.f32 %v3384, %v3395
        %v3397 = vmul.f32 %v3385, %v3395
        %v3398 = vmul.f32 %v3386, %v3395
        %v3399 = vmul.f32 %v3387, %v3395
        %v3400 = vmul.f32 %v3388, %v3395
        %v3401 = vmul.f32 %v3389, %v3395
        %v3402 = vmul.f32 %v3390, %v3395
        %v3403 = vmul.f32 %v3391, %v3395
        %v3404 = vadd.f32 %v3376, %v3396
        %v3405 = vadd.f32 %v3377, %v3397
        %v3406 = vadd.f32 %v3378, %v3398
        %v3407 = vadd.f32 %v3379, %v3399
        %v3408 = vadd.f32 %v3380, %v3400
        %v3409 = vadd.f32 %v3381, %v3401
        %v3410 = vadd.f32 %v3382, %v3402
        %v3411 = vadd.f32 %v3383, %v3403
        %v3412 = vld [vmem:[%s888] sm:$0xff]
        %v3413 = vld [vmem:[%s888 + $0x10] sm:$0xff]
        %v3414 = vld [vmem:[%s888 + $0x20] sm:$0xff]
        %v3415 = vld [vmem:[%s888 + $0x30] sm:$0xff]
        %v3416 = vld [vmem:[%s888 + $0x40] sm:$0xff]
        %v3417 = vld [vmem:[%s888 + $0x50] sm:$0xff]
        %v3418 = vld [vmem:[%s888 + $0x60] sm:$0xff]
        %v3419 = vld [vmem:[%s888 + $0x70] sm:$0xff]
        %v3420 = vlaneseq
        %v3421 = vshrl.u32 %v3420, 7
        %v3422 = vsub.s32 6, %v3421
        %v3423 = vrot.slane %v361, %v3422
        %v3424 = vmul.f32 %v3412, %v3423
        %v3425 = vmul.f32 %v3413, %v3423
        %v3426 = vmul.f32 %v3414, %v3423
        %v3427 = vmul.f32 %v3415, %v3423
        %v3428 = vmul.f32 %v3416, %v3423
        %v3429 = vmul.f32 %v3417, %v3423
        %v3430 = vmul.f32 %v3418, %v3423
        %v3431 = vmul.f32 %v3419, %v3423
        %v3432 = vadd.f32 %v3404, %v3424
        %v3433 = vadd.f32 %v3405, %v3425
        %v3434 = vadd.f32 %v3406, %v3426
        %v3435 = vadd.f32 %v3407, %v3427
        %v3436 = vadd.f32 %v3408, %v3428
        %v3437 = vadd.f32 %v3409, %v3429
        %v3438 = vadd.f32 %v3410, %v3430
        %v3439 = vadd.f32 %v3411, %v3431
        %v3440 = vld [vmem:[%s888 + $0x1] sm:$0xff]
        %v3441 = vld [vmem:[%s888 + $0x11] sm:$0xff]
        %v3442 = vld [vmem:[%s888 + $0x21] sm:$0xff]
        %v3443 = vld [vmem:[%s888 + $0x31] sm:$0xff]
        %v3444 = vld [vmem:[%s888 + $0x41] sm:$0xff]
        %v3445 = vld [vmem:[%s888 + $0x51] sm:$0xff]
        %v3446 = vld [vmem:[%s888 + $0x61] sm:$0xff]
        %v3447 = vld [vmem:[%s888 + $0x71] sm:$0xff]
        %v3448 = vlaneseq
        %v3449 = vshrl.u32 %v3448, 7
        %v3450 = vsub.s32 7, %v3449
        %v3451 = vrot.slane %v361, %v3450
        %v3452 = vmul.f32 %v3440, %v3451
        %v3453 = vmul.f32 %v3441, %v3451
        %v3454 = vmul.f32 %v3442, %v3451
        %v3455 = vmul.f32 %v3443, %v3451
        %v3456 = vmul.f32 %v3444, %v3451
        %v3457 = vmul.f32 %v3445, %v3451
        %v3458 = vmul.f32 %v3446, %v3451
        %v3459 = vmul.f32 %v3447, %v3451
        %v3460 = vadd.f32 %v3432, %v3452
        %v3461 = vadd.f32 %v3433, %v3453
        %v3462 = vadd.f32 %v3434, %v3454
        %v3463 = vadd.f32 %v3435, %v3455
        %v3464 = vadd.f32 %v3436, %v3456
        %v3465 = vadd.f32 %v3437, %v3457
        %v3466 = vadd.f32 %v3438, %v3458
        %v3467 = vadd.f32 %v3439, %v3459
        %v3468 = vld [vmem:[%s888 + $0x2] sm:$0xff]
        %v3469 = vld [vmem:[%s888 + $0x12] sm:$0xff]
        %v3470 = vld [vmem:[%s888 + $0x22] sm:$0xff]
        %v3471 = vld [vmem:[%s888 + $0x32] sm:$0xff]
        %v3472 = vld [vmem:[%s888 + $0x42] sm:$0xff]
        %v3473 = vld [vmem:[%s888 + $0x52] sm:$0xff]
        %v3474 = vld [vmem:[%s888 + $0x62] sm:$0xff]
        %v3475 = vld [vmem:[%s888 + $0x72] sm:$0xff]
        %v3476 = vlaneseq
        %v3477 = vshrl.u32 %v3476, 7
        %v3478 = vsub.s32 0, %v3477
        %v3479 = vrot.slane %v362, %v3478
        %v3480 = vmul.f32 %v3468, %v3479
        %v3481 = vmul.f32 %v3469, %v3479
        %v3482 = vmul.f32 %v3470, %v3479
        %v3483 = vmul.f32 %v3471, %v3479
        %v3484 = vmul.f32 %v3472, %v3479
        %v3485 = vmul.f32 %v3473, %v3479
        %v3486 = vmul.f32 %v3474, %v3479
        %v3487 = vmul.f32 %v3475, %v3479
        %v3488 = vadd.f32 %v3460, %v3480
        %v3489 = vadd.f32 %v3461, %v3481
        %v3490 = vadd.f32 %v3462, %v3482
        %v3491 = vadd.f32 %v3463, %v3483
        %v3492 = vadd.f32 %v3464, %v3484
        %v3493 = vadd.f32 %v3465, %v3485
        %v3494 = vadd.f32 %v3466, %v3486
        %v3495 = vadd.f32 %v3467, %v3487
        %v3497 = vlaneseq
        %v3498 = vshrl.u32 %v3497, 7
        %v3499 = vsub.s32 0, %v3498
        %v3500 = vrot.slane %v374, %v3499
        %v3503 = vsel %vm400, %v3488, 0
        %v3506 = vsel %vm400, %v3489, 0
        %v3509 = vsel %vm400, %v3490, 0
        %v3512 = vsel %vm400, %v3491, 0
        %v3515 = vsel %vm400, %v3492, 0
        %v3518 = vsel %vm400, %v3493, 0
        %v3521 = vsel %vm400, %v3494, 0
        %v3524 = vsel %vm400, %v3495, 0
        %3526 = vmatprep.subr.mxu0 0.0
        %3527 = vmatpush1.msra.mxu0 0.0
        %3528 = vmatprep.subr.mxu0 0.0
        %3529 = vmatpush1.msra.mxu0 0.0
        %3530 = vmatprep.subr.mxu0 0.0
        %3531 = vmatpush1.msra.mxu0 0.0
        %3532 = vmatprep.subr.mxu0 0.0
        %3533 = vmatpush1.msra.mxu0 0.0
        %3534 = vmatprep.subr.mxu0 0.0
        %3535 = vmatpush1.msra.mxu0 0.0
        %3536 = vmatprep.subr.mxu0 0.0
        %3537 = vmatpush1.msra.mxu0 0.0
        %3538 = vmatprep.subr.mxu0 0.0
        %3539 = vmatpush1.msra.mxu0 0.0
        %3540 = vmatprep.subr.mxu0 0.0
        %3541 = vmatpush1.msra.mxu0 0.0
        %3542 = vmatprep.subr.mxu0 0.0
        %3543 = vmatpush1.msra.mxu0 0.0
        %3544 = vmatprep.subr.mxu0 0.0
        %3545 = vmatpush1.msra.mxu0 0.0
        %3546 = vmatprep.subr.mxu0 0.0
        %3547 = vmatpush1.msra.mxu0 0.0
        %3548 = vmatprep.subr.mxu0 0.0
        %3549 = vmatpush1.msra.mxu0 0.0
        %3550 = vmatprep.subr.mxu0 0.0
        %3551 = vmatpush1.msra.mxu0 0.0
        %3552 = vmatprep.subr.mxu0 0.0
        %3553 = vmatpush1.msra.mxu0 0.0
        %3554 = vmatprep.subr.mxu0 0.0
        %3555 = vmatpush1.msra.mxu0 0.0
        %3556 = vmatprep.subr.mxu0 0.0
        %3557 = vmatpush1.msra.mxu0 %v368
        %3558 = vmatprep.subr.mxu0 0.0
        %3559 = vmatpush2.msra.mxu0 0.0
        %3560 = vmatprep.subr.mxu0 0.0
        %3561 = vmatpush2.msra.mxu0 0.0
        %3562 = vmatprep.subr.mxu0 0.0
        %3563 = vmatpush2.msra.mxu0 0.0
        %3564 = vmatprep.subr.mxu0 0.0
        %3565 = vmatpush2.msra.mxu0 0.0
        %3566 = vmatprep.subr.mxu0 0.0
        %3567 = vmatpush2.msra.mxu0 0.0
        %3568 = vmatprep.subr.mxu0 0.0
        %3569 = vmatpush2.msra.mxu0 0.0
        %3570 = vmatprep.subr.mxu0 0.0
        %3571 = vmatpush2.msra.mxu0 0.0
        %3572 = vmatprep.subr.mxu0 0.0
        %3573 = vmatpush2.msra.mxu0 0.0
        %3574 = vmatprep.subr.mxu0 0.0
        %3575 = vmatpush2.msra.mxu0 0.0
        %3576 = vmatprep.subr.mxu0 0.0
        %3577 = vmatpush2.msra.mxu0 0.0
        %3578 = vmatprep.subr.mxu0 0.0
        %3579 = vmatpush2.msra.mxu0 0.0
        %3580 = vmatprep.subr.mxu0 0.0
        %3581 = vmatpush2.msra.mxu0 0.0
        %3582 = vmatprep.subr.mxu0 0.0
        %3583 = vmatpush2.msra.mxu0 0.0
        %3584 = vmatprep.subr.mxu0 0.0
        %3585 = vmatpush2.msra.mxu0 0.0
        %3586 = vmatprep.subr.mxu0 0.0
        %3587 = vmatpush2.msra.mxu0 0.0
        %3588 = vmatprep.subr.mxu0 0.0
        %3589 = vmatpush2.msra.mxu0 0.0
        %3590 = vmatprep.mubr.f32.mxu0 0.0
        %3591 = vmatmul.mubr.f32.gmra.mxu0 %v3503
        %v3592 = vpop.f32.mrf.mxu0
        %v3593 = vadd.f32 %v3500, %v3592
        %v3594 = vpop.f32.mrf.mxu0
        %3595 = vmatprep.mubr.f32.mxu0 0.0
        %3596 = vmatmul.mubr.f32.gmra.mxu0 %v3506
        %v3597 = vpop.f32.mrf.mxu0
        %v3598 = vadd.f32 %v3500, %v3597
        %v3599 = vpop.f32.mrf.mxu0
        %3600 = vmatprep.mubr.f32.mxu0 0.0
        %3601 = vmatmul.mubr.f32.gmra.mxu0 %v3509
        %v3602 = vpop.f32.mrf.mxu0
        %v3603 = vadd.f32 %v3500, %v3602
        %v3604 = vpop.f32.mrf.mxu0
        %3605 = vmatprep.mubr.f32.mxu0 0.0
        %3606 = vmatmul.mubr.f32.gmra.mxu0 %v3512
        %v3607 = vpop.f32.mrf.mxu0
        %v3608 = vadd.f32 %v3500, %v3607
        %v3609 = vpop.f32.mrf.mxu0
        %3610 = vmatprep.mubr.f32.mxu0 0.0
        %3611 = vmatmul.mubr.f32.gmra.mxu0 %v3515
        %v3612 = vpop.f32.mrf.mxu0
        %v3613 = vadd.f32 %v3500, %v3612
        %v3614 = vpop.f32.mrf.mxu0
        %3615 = vmatprep.mubr.f32.mxu0 0.0
        %3616 = vmatmul.mubr.f32.gmra.mxu0 %v3518
        %v3617 = vpop.f32.mrf.mxu0
        %v3618 = vadd.f32 %v3500, %v3617
        %v3619 = vpop.f32.mrf.mxu0
        %3620 = vmatprep.mubr.f32.mxu0 0.0
        %3621 = vmatmul.mubr.f32.gmra.mxu0 %v3521
        %v3622 = vpop.f32.mrf.mxu0
        %v3623 = vadd.f32 %v3500, %v3622
        %v3624 = vpop.f32.mrf.mxu0
        %3625 = vmatprep.mubr.f32.mxu0 0.0
        %3626 = vmatmul.mubr.f32.gmra.mxu0 %v3524
        %v3627 = vpop.f32.mrf.mxu0
        %v3628 = vadd.f32 %v3500, %v3627
        %v3629 = vpop.f32.mrf.mxu0
        %3630 = vdwg.mxu0
        %v3631 = vadd.f32 %v2777, %v3593
        %v3632 = vadd.f32 %v2778, %v3598
        %v3633 = vadd.f32 %v2779, %v3603
        %v3634 = vadd.f32 %v2780, %v3608
        %v3635 = vadd.f32 %v2781, %v3613
        %v3636 = vadd.f32 %v2782, %v3618
        %v3637 = vadd.f32 %v2783, %v3623
        %v3638 = vadd.f32 %v2784, %v3628
        %3639 = vst.msk [vmem:[%s340] sm:$0xff] %vm400, %v1531
        %3640 = vst.msk [vmem:[%s340 + $0x8] sm:$0xff] %vm400, %v1532
        %3641 = vst.msk [vmem:[%s340 + $0x10] sm:$0xff] %vm400, %v1533
        %3642 = vst.msk [vmem:[%s340 + $0x18] sm:$0xff] %vm400, %v1534
        %3643 = vst.msk [vmem:[%s340 + $0x20] sm:$0xff] %vm400, %v1535
        %3644 = vst.msk [vmem:[%s340 + $0x28] sm:$0xff] %vm400, %v1536
        %3645 = vst.msk [vmem:[%s340 + $0x30] sm:$0xff] %vm400, %v1537
        %3646 = vst.msk [vmem:[%s340 + $0x38] sm:$0xff] %vm400, %v1538
        %3655 = vrot.lane.b32.xlu0 %v2377, 8
        %v3656 = vpop.permute.xlu0 %3655
        %3657 = vrot.lane.b32.xlu0 %v2378, 8
        %v3658 = vpop.permute.xlu0 %3657
        %3659 = vrot.lane.b32.xlu0 %v2379, 8
        %v3660 = vpop.permute.xlu0 %3659
        %3661 = vrot.lane.b32.xlu0 %v2380, 8
        %v3662 = vpop.permute.xlu0 %3661
        %3663 = vrot.lane.b32.xlu0 %v2381, 8
        %v3664 = vpop.permute.xlu0 %3663
        %3665 = vrot.lane.b32.xlu0 %v2382, 8
        %v3666 = vpop.permute.xlu0 %3665
        %3667 = vrot.lane.b32.xlu0 %v2383, 8
        %v3668 = vpop.permute.xlu0 %3667
        %3669 = vrot.lane.b32.xlu0 %v2384, 8
        %v3670 = vpop.permute.xlu0 %3669
        %vm3679 = vcmask 130112
        %3680 = vst.msk [vmem:[%s340] sm:$0xff] %vm3679, %v3656
        %3681 = vst.msk [vmem:[%s340 + $0x8] sm:$0xff] %vm3679, %v3658
        %3682 = vst.msk [vmem:[%s340 + $0x10] sm:$0xff] %vm3679, %v3660
        %3683 = vst.msk [vmem:[%s340 + $0x18] sm:$0xff] %vm3679, %v3662
        %3684 = vst.msk [vmem:[%s340 + $0x20] sm:$0xff] %vm3679, %v3664
        %3685 = vst.msk [vmem:[%s340 + $0x28] sm:$0xff] %vm3679, %v3666
        %3686 = vst.msk [vmem:[%s340 + $0x30] sm:$0xff] %vm3679, %v3668
        %3687 = vst.msk [vmem:[%s340 + $0x38] sm:$0xff] %vm3679, %v3670
        %3696 = vrot.lane.b32.xlu0 %v2549, 16
        %v3697 = vpop.permute.xlu0 %3696
        %3698 = vrot.lane.b32.xlu0 %v2550, 16
        %v3699 = vpop.permute.xlu0 %3698
        %3700 = vrot.lane.b32.xlu0 %v2551, 16
        %v3701 = vpop.permute.xlu0 %3700
        %3702 = vrot.lane.b32.xlu0 %v2552, 16
        %v3703 = vpop.permute.xlu0 %3702
        %3704 = vrot.lane.b32.xlu0 %v2553, 16
        %v3705 = vpop.permute.xlu0 %3704
        %3706 = vrot.lane.b32.xlu0 %v2554, 16
        %v3707 = vpop.permute.xlu0 %3706
        %3708 = vrot.lane.b32.xlu0 %v2555, 16
        %v3709 = vpop.permute.xlu0 %3708
        %3710 = vrot.lane.b32.xlu0 %v2556, 16
        %v3711 = vpop.permute.xlu0 %3710
        %vm3720 = vcmask 195712
        %3721 = vst.msk [vmem:[%s340] sm:$0xff] %vm3720, %v3697
        %3722 = vst.msk [vmem:[%s340 + $0x8] sm:$0xff] %vm3720, %v3699
        %3723 = vst.msk [vmem:[%s340 + $0x10] sm:$0xff] %vm3720, %v3701
        %3724 = vst.msk [vmem:[%s340 + $0x18] sm:$0xff] %vm3720, %v3703
        %3725 = vst.msk [vmem:[%s340 + $0x20] sm:$0xff] %vm3720, %v3705
        %3726 = vst.msk [vmem:[%s340 + $0x28] sm:$0xff] %vm3720, %v3707
        %3727 = vst.msk [vmem:[%s340 + $0x30] sm:$0xff] %vm3720, %v3709
        %3728 = vst.msk [vmem:[%s340 + $0x38] sm:$0xff] %vm3720, %v3711
        %3737 = vrot.lane.b32.xlu0 %v3631, 24
        %v3738 = vpop.permute.xlu0 %3737
        %3739 = vrot.lane.b32.xlu0 %v3632, 24
        %v3740 = vpop.permute.xlu0 %3739
        %3741 = vrot.lane.b32.xlu0 %v3633, 24
        %v3742 = vpop.permute.xlu0 %3741
        %3743 = vrot.lane.b32.xlu0 %v3634, 24
        %v3744 = vpop.permute.xlu0 %3743
        %3745 = vrot.lane.b32.xlu0 %v3635, 24
        %v3746 = vpop.permute.xlu0 %3745
        %3747 = vrot.lane.b32.xlu0 %v3636, 24
        %v3748 = vpop.permute.xlu0 %3747
        %3749 = vrot.lane.b32.xlu0 %v3637, 24
        %v3750 = vpop.permute.xlu0 %3749
        %3751 = vrot.lane.b32.xlu0 %v3638, 24
        %v3752 = vpop.permute.xlu0 %3751
        %vm3761 = vcmask 261312
        %3762 = vst.msk [vmem:[%s340] sm:$0xff] %vm3761, %v3738
        %3763 = vst.msk [vmem:[%s340 + $0x8] sm:$0xff] %vm3761, %v3740
        %3764 = vst.msk [vmem:[%s340 + $0x10] sm:$0xff] %vm3761, %v3742
        %3765 = vst.msk [vmem:[%s340 + $0x18] sm:$0xff] %vm3761, %v3744
        %3766 = vst.msk [vmem:[%s340 + $0x20] sm:$0xff] %vm3761, %v3746
        %3767 = vst.msk [vmem:[%s340 + $0x28] sm:$0xff] %vm3761, %v3748
        %3768 = vst.msk [vmem:[%s340 + $0x30] sm:$0xff] %vm3761, %v3750
        %3769 = vst.msk [vmem:[%s340 + $0x38] sm:$0xff] %vm3761, %v3752
        %s3770 = sand.u32 %s230, 1
        %s3771 = scalar_lea.sflag [#allocation4], %s3770
        %s3772 = sand.u32 %s230, 1
        %s3773 = smul.addr %s3772, 64
        %s3774 = scalar_lea.vmem [#allocation3], %s3773
        // Predicated region
        $region57: #{cell_forward.1} parent=55 // pred_check
          %p3775 = pneg %p240
        $region58: #{cell_forward.1} parent=55 // pred_check_branch
          %3777 = sbr.rel (%p3775) target = $region60
        $region59: #{cell_forward.1} parent=55 // pred_region
          %s3779 = ssub.s32 1024, 1024
          %3780 = vsyncadd %s3771, %s3779
          %s3781 = smul.addr %s23, 8
          %s3782 = smul.addr %s3781, 128
          %s3783 = scalar_lea.hbm %s9, %s3782
          %s3784 = sshll.u32 %s3774, 4
          %s3785 = int_to_ptr.vmem [resolvable:$true] %s3784
          %3790 = dma.vmem_to_hbm [thread:$0]  %s3785, 1024, %s3783, %s3771, 128, 128, 8
        $region60: #{cell_forward.1} parent=55 // pred_fallthru
          _
      $region56: #{cell_forward.1} parent=5 // pred_fallthru
        _
      %p3791 = scmp.le.s32.totalorder 2, %s18
      // Predicated region
      $region61: #{cell_forward.1} parent=5 // pred_check
        %p3792 = pneg %p3791
      $region62: #{cell_forward.1} parent=5 // pred_check_branch
        %3794 = sbr.rel (%p3792) target = $region64
      $region63: #{cell_forward.1} parent=5 // pred_region
        %s3795 = ssub.s32 %s18, 2
        // Predicated region
        $region65: #{cell_forward.1} parent=63 // pred_check
          %p3796 = pneg %p246
        $region66: #{cell_forward.1} parent=63 // pred_check_branch
          %3798 = sbr.rel (%p3796) target = $region68
        $region67: #{cell_forward.1} parent=63 // pred_region
          %s3799 = sand.u32 %s231, 1
          %s3800 = scalar_lea.sflag [#allocation4], %s3799
          %s3801 = sand.u32 %s231, 1
          %s3802 = smul.addr %s3801, 64
          %s3803 = scalar_lea.vmem [#allocation3], %s3802
          %3804 = dma.done %s3800, 1024
        $region68: #{cell_forward.1} parent=63 // pred_fallthru
          _
      $region64: #{cell_forward.1} parent=5 // pred_fallthru
        _
    $region6: #{cell_forward.1} parent=1 // loop_footer
      %s22 = sadd.s32 1, %s18
    $region7: #{cell_forward.1} parent=1 // loop_footer_branch
      %17 = sbr.rel target = $region3
    $region8: #{cell_forward.1} parent=1 // loop_exit
      _
    %3805 = vsyncpa [#allocation4], 1
    %s3806 = scalar_lea.sflag [#allocation4], 1
    %3807 = vsyncpa %s3806, 1

</llo_original>
